<compile_context>
chip_gen: v7x
topology: tpu7x:2x2x1
jax: 0.10.0
libtpu: 0.0.40
codegen_flags: <defaults>
</compile_context>

<pallas_src>
import jax
import jax.numpy as jnp
from jax.experimental import pallas as pl
from jax.experimental.pallas import tpu as pltpu


def _round_up(x, m):
    return (x + m - 1) // m * m


def _choose_m_tiling(M, target=512, want_blocks=2):
    """Pick (bm, nb): bm % 8 == 0, few blocks, little padding, >=2 blocks
    when M allows so v7x's second TensorCore gets work from the parallel axis."""
    nb = max(-(-M // target), 1)
    if M >= 8 * want_blocks:
        nb = max(nb, want_blocks)
    bm = _round_up(-(-M // nb), 8)
    return bm, nb


# ---------------------------------------------------------------------------
# Single-K-step matmul with fused bias + PReLU epilogue (used for both convs
# via im2col).  Whole K in one block -> no accumulator scratch needed.
# ---------------------------------------------------------------------------

def _matmul_bias_prelu_kernel(a_ref, b_ref, bias_ref, alpha_ref, o_ref):
    a = a_ref[...].astype(b_ref.dtype)              # in-kernel cast (f32 or bf16)
    y = jnp.dot(a, b_ref[...], preferred_element_type=jnp.float32) + bias_ref[...]
    alpha = alpha_ref[0]                            # scalar from SMEM
    o_ref[...] = jnp.maximum(y, 0.0) + alpha * jnp.minimum(y, 0.0)


def conv_matmul(a, layer):
    """a: (M, K) f32 im2col matrix.  Fused matmul + bias + PReLU."""
    M, K = a.shape
    assert K == layer["K"], (K, layer["K"])
    N = layer["N"]
    bm, nb = _choose_m_tiling(M)
    Mp = bm * nb
    if Mp > M:
        a = jnp.pad(a, ((0, Mp - M), (0, 0)))

    out = pl.pallas_call(
        _matmul_bias_prelu_kernel,
        out_shape=jax.ShapeDtypeStruct((Mp, N), jnp.float32),
        grid_spec=pltpu.PrefetchScalarGridSpec(
            num_scalar_prefetch=0,
            grid=(nb,),
            in_specs=[
                pl.BlockSpec((bm, K), lambda i: (i, 0)),     # whole K in one block
                pl.BlockSpec((K, N), lambda i: (0, 0)),      # whole weight in VMEM
                pl.BlockSpec((1, N), lambda i: (0, 0)),
                pl.BlockSpec(memory_space=pltpu.SMEM),       # PReLU alpha scalar
            ],
            out_specs=pl.BlockSpec((bm, N), lambda i: (i, 0)),
        ),
        compiler_params=pltpu.CompilerParams(
            dimension_semantics=("parallel",)),
    )(a, layer["w"], layer["bias"], layer["alpha"])
    return out[:M] if Mp > M else out


def _im2col(x, ksz):
    n, h, w, cin = x.shape
    ho, wo = h - ksz + 1, w - ksz + 1
    cols = [x[:, dy:dy + ho, dx:dx + wo, :]
            for dy in range(ksz) for dx in range(ksz)]
    return jnp.concatenate(cols, axis=-1).reshape(n * ho * wo, ksz * ksz * cin)


def conv2d_bias_prelu(x, layer, ksz):
    n, h, w, _ = x.shape
    ho, wo = h - ksz + 1, w - ksz + 1
    out = conv_matmul(_im2col(x, ksz), layer)
    return out.reshape(n, ho, wo, layer["N"])


# ---------------------------------------------------------------------------
# 2x2 stride-2 max pool: four lane-dense views -> single-step pairwise max.
# ---------------------------------------------------------------------------

def _max4_kernel(a_ref, b_ref, c_ref, d_ref, o_ref):
    o_ref[...] = jnp.maximum(jnp.maximum(a_ref[...], b_ref[...]),
                             jnp.maximum(c_ref[...], d_ref[...]))


def maxpool_2x2(x):
    n, h, w, c = x.shape
    ho, wo = h // 2, w // 2
    x6 = x.reshape(n, ho, 2, wo, 2, c)
    # Lane-dense views: rows = (n, ho), lanes = wo*c  (384 / 256 lanes here).
    views = [x6[:, :, dy, :, dx, :].reshape(n * ho, wo * c)
             for dy in (0, 1) for dx in (0, 1)]

    out = pl.pallas_call(
        _max4_kernel,
        out_shape=jax.ShapeDtypeStruct((n * ho, wo * c), jnp.float32),
        grid_spec=pltpu.PrefetchScalarGridSpec(
            num_scalar_prefetch=0,
            grid=(1,),
            in_specs=[pl.BlockSpec((n * ho, wo * c), lambda i: (0, 0))] * 4,
            out_specs=pl.BlockSpec((n * ho, wo * c), lambda i: (0, 0)),
        ),
        compiler_params=pltpu.CompilerParams(
            dimension_semantics=("arbitrary",)),
    )(*views)
    return out.reshape(n, ho, wo, c)


# ---------------------------------------------------------------------------
# Fused FC stage: fc1 -> PReLU -> fc2 -> PReLU -> fc3 in one pallas_call.
# All weights are full-array VMEM blocks (~0.7 MB bf16), one grid step.
# ---------------------------------------------------------------------------

def _fc_fused_kernel(a_ref, w1_ref, b1_ref, w2_ref, b2_ref, w3_ref, b3_ref,
                     alphas_ref, o_ref):
    def prelu(v, alpha):
        return jnp.maximum(v, 0.0) + alpha * jnp.minimum(v, 0.0)

    h = jnp.dot(a_ref[...].astype(jnp.bfloat16), w1_ref[...],
                preferred_element_type=jnp.float32) + b1_ref[...]
    h = prelu(h, alphas_ref[0])
    h = jnp.dot(h.astype(jnp.bfloat16), w2_ref[...],
                preferred_element_type=jnp.float32) + b2_ref[...]
    h = prelu(h, alphas_ref[1])
    o_ref[...] = jnp.dot(h.astype(jnp.bfloat16), w3_ref[...],
                         preferred_element_type=jnp.float32) + b3_ref[...]


def fc_fused(a, fc):
    M, K = a.shape
    dim = fc["w3"].shape[1]

    def full(shape):
        return pl.BlockSpec(shape, lambda i: (0,) * len(shape))

    return pl.pallas_call(
        _fc_fused_kernel,
        out_shape=jax.ShapeDtypeStruct((M, dim), jnp.float32),
        grid_spec=pltpu.PrefetchScalarGridSpec(
            num_scalar_prefetch=0,
            grid=(1,),
            in_specs=[
                full((M, K)),
                full(fc["w1"].shape), full(fc["b1"].shape),
                full(fc["w2"].shape), full(fc["b2"].shape),
                full(fc["w3"].shape), full(fc["b3"].shape),
                pl.BlockSpec(memory_space=pltpu.SMEM),       # two PReLU alphas
            ],
            out_specs=full((M, dim)),
        ),
        compiler_params=pltpu.CompilerParams(
            dimension_semantics=("arbitrary",)),
    )(a, fc["w1"], fc["b1"], fc["w2"], fc["b2"], fc["w3"], fc["b3"], fc["alphas"])


# ---------------------------------------------------------------------------
# Deterministic synthetic parameters (packed / permuted / cast ONCE at init)
# ---------------------------------------------------------------------------

def _conv_weights(key, cin, cout, ksz):
    kw, kb = jax.random.split(key)
    fan_in = cin * ksz * ksz
    bound = 1.0 / float(fan_in) ** 0.5
    w = jax.random.uniform(kw, (cout, cin, ksz, ksz), jnp.float32, -bound, bound)
    b = jax.random.uniform(kb, (cout,), jnp.float32, -bound, bound)
    # (Cout,Cin,kh,kw) -> (kh*kw*Cin, Cout): rows ordered (dy, dx, cin), cin
    # fastest, matching the im2col concatenation order above.
    B = jnp.transpose(w, (2, 3, 1, 0)).reshape(ksz * ksz * cin, cout)
    return B, b


def _linear_weights(key, cin, cout):
    kw, kb = jax.random.split(key)
    bound = 1.0 / float(cin) ** 0.5
    w = jax.random.uniform(kw, (cout, cin), jnp.float32, -bound, bound)
    b = jax.random.uniform(kb, (cout,), jnp.float32, -bound, bound)
    return jnp.transpose(w), b                      # (cin, cout)


def init_params(key, dimension):
    ks = jax.random.split(key, 5)
    alpha0 = 0.25                                   # nn.PReLU() default init
    B1, b1 = _conv_weights(ks[0], 1, 32, 5)
    B2, b2 = _conv_weights(ks[1], 32, 64, 5)
    W1, c1 = _linear_weights(ks[2], 64 * 4 * 4, 256)
    W2, c2 = _linear_weights(ks[3], 256, 256)
    W3, c3 = _linear_weights(ks[4], 256, dimension)

    # fc1's 1024 input rows are PyTorch NCHW-flatten order (c, h, w); the conv
    # stage hands over NHWC-flatten (h, w, c), so permute the weight rows once
    # at init instead of transposing the activation every forward (equivalent).
    W1_hwc = W1.reshape(64, 4, 4, 256).transpose(1, 2, 0, 3).reshape(1024, 256)

    return {
        "conv1": {"w": B1.astype(jnp.float32),       # keep conv1 in f32 (K=25)
                  "bias": b1.reshape(1, -1).astype(jnp.float32),
                  "alpha": jnp.full((1,), alpha0, jnp.float32),
                  "K": 25, "N": 32},
        "conv2": {"w": B2.astype(jnp.bfloat16),
                  "bias": b2.reshape(1, -1).astype(jnp.float32),
                  "alpha": jnp.full((1,), alpha0, jnp.float32),
                  "K": 800, "N": 64},
        "fc": {"w1": W1_hwc.astype(jnp.bfloat16), "b1": c1.reshape(1, -1),
               "w2": W2.astype(jnp.bfloat16), "b2": c2.reshape(1, -1),
               "w3": W3.astype(jnp.bfloat16), "b3": c3.reshape(1, -1),
               "alphas": jnp.full((2,), alpha0, jnp.float32)},
    }


# ---------------------------------------------------------------------------
# Forward pass (matches EmbeddingNet.forward)
# ---------------------------------------------------------------------------

def embedding_forward(params, x_nchw):
    n = x_nchw.shape[0]
    x = jnp.transpose(x_nchw, (0, 2, 3, 1)).astype(jnp.float32)   # NHWC
    x = conv2d_bias_prelu(x, params["conv1"], 5)    # conv1 + bias + PReLU fused
    x = maxpool_2x2(x)
    x = conv2d_bias_prelu(x, params["conv2"], 5)    # conv2 + bias + PReLU fused
    x = maxpool_2x2(x)
    x = x.reshape(n, -1)                            # NHWC flatten (fc1 rows permuted)
    return fc_fused(x, params["fc"])                # fc1+PReLU+fc2+PReLU+fc3 fused


# ---------------------------------------------------------------------------
# Pure-JAX reference using the SAME packed params / dtypes (sanity check)
# ---------------------------------------------------------------------------

def reference_forward(params, x_nchw):
    def prelu(v, a):
        return jnp.maximum(v, 0.0) + a * jnp.minimum(v, 0.0)

    def conv(x, layer, ksz):
        n, h, w, _ = x.shape
        ho, wo = h - ksz + 1, w - ksz + 1
        a = _im2col(x, ksz).astype(layer["w"].dtype)
        y = jnp.dot(a, layer["w"], preferred_element_type=jnp.float32) + layer["bias"]
        return prelu(y, layer["alpha"][0]).reshape(n, ho, wo, layer["N"])

    def pool(x):
        n, h, w, c = x.shape
        return x.reshape(n, h // 2, 2, w // 2, 2, c).max(axis=(2, 4))

    x = jnp.transpose(x_nchw, (0, 2, 3, 1)).astype(jnp.float32)
    y = pool(conv(x, params["conv1"], 5))
    y = pool(conv(y, params["conv2"], 5))
    a = y.reshape(y.shape[0], -1)
    fc = params["fc"]
    h = prelu(jnp.dot(a.astype(jnp.bfloat16), fc["w1"],
                      preferred_element_type=jnp.float32) + fc["b1"], fc["alphas"][0])
    h = prelu(jnp.dot(h.astype(jnp.bfloat16), fc["w2"],
                      preferred_element_type=jnp.float32) + fc["b2"], fc["alphas"][1])
    return jnp.dot(h.astype(jnp.bfloat16), fc["w3"],
                   preferred_element_type=jnp.float32) + fc["b3"]


# ---------------------------------------------------------------------------

if __name__ == "__main__":
    key = jax.random.PRNGKey(0)
    pkey, xkey = jax.random.split(key)

    dimension = 128
    params = init_params(pkey, dimension)

    # The fc input size 64*4*4 implies 28x28 single-channel inputs.
    x = jax.random.normal(xkey, (2, 1, 28, 28), jnp.float32)

    fwd = jax.jit(lambda inp: embedding_forward(params, inp))
    out = jax.block_until_ready(fwd(x))

    assert out.shape == (2, dimension), out.shape
    assert bool(jnp.all(jnp.isfinite(out)))

    ref = jax.jit(lambda inp: reference_forward(params, inp))(x)
    assert bool(jnp.allclose(out, ref, rtol=2e-2, atol=2e-2)), \
        float(jnp.max(jnp.abs(out - ref)))

    print("KERNEL_OK")
</pallas_src>

<mosaic_0001>
module attributes {stable_mosaic.version = 11 : i64} {
  func.func @_matmul_bias_prelu_kernel(%arg0: i32, %arg1: memref<384x25xf32, #tpu.memory_space<vmem>>, %arg2: memref<25x32xf32, #tpu.memory_space<vmem>>, %arg3: memref<1x32xf32, #tpu.memory_space<vmem>>, %arg4: memref<1xf32, #tpu.memory_space<smem>>, %arg5: memref<384x32xf32, #tpu.memory_space<vmem>>) attributes {dimension_semantics = [#tpu.dimension_semantics<parallel>], iteration_bounds = array<i64: 3>, scalar_prefetch = 0 : i64, scratch_operands = 0 : i64, tpu.core_type = #tpu.core_type<tc>, window_params = [{transform_indices = @transform_0, window_bounds = array<i64: 384, 25>}, {pipeline_mode = #tpu.pipeline_mode<synchronous>, transform_indices = @transform_1, window_bounds = array<i64: 25, 32>}, {pipeline_mode = #tpu.pipeline_mode<synchronous>, transform_indices = @transform_2, window_bounds = array<i64: 1, 32>}, {transform_indices = @transform_3, window_bounds = array<i64: 1>}, {transform_indices = @transform_4, window_bounds = array<i64: 384, 32>}]} {
    %c0 = arith.constant 0 : index
    %c0_0 = arith.constant 0 : index
    %0 = vector.load %arg1[%c0, %c0_0] : memref<384x25xf32, #tpu.memory_space<vmem>>, vector<384x25xf32>
    %c0_1 = arith.constant 0 : index
    %c0_2 = arith.constant 0 : index
    %1 = vector.load %arg2[%c0_1, %c0_2] : memref<25x32xf32, #tpu.memory_space<vmem>>, vector<25x32xf32>
    %cst = arith.constant dense<0.000000e+00> : vector<384x32xf32>
    %2 = tpu.matmul %0, %1, %cst {dimension_numbers = #tpu.dot_dimension_numbers<[1], [0], [0], [1], [0, 0, 1, 1], [], []>} : vector<384x25xf32>, vector<25x32xf32>, vector<384x32xf32> -> vector<384x32xf32>
    %c0_3 = arith.constant 0 : index
    %c0_4 = arith.constant 0 : index
    %3 = vector.load %arg3[%c0_3, %c0_4] : memref<1x32xf32, #tpu.memory_space<vmem>>, vector<1x32xf32>
    %4 = vector.broadcast %3 : vector<1x32xf32> to vector<384x32xf32>
    %5 = arith.addf %2, %4 : vector<384x32xf32>
    %c0_5 = arith.constant 0 : index
    %6 = memref.load %arg4[%c0_5] : memref<1xf32, #tpu.memory_space<smem>>
    %cst_6 = arith.constant 0.000000e+00 : f32
    %7 = vector.broadcast %cst_6 : f32 to vector<384x32xf32>
    %8 = arith.maximumf %5, %7 : vector<384x32xf32>
    %cst_7 = arith.constant 0.000000e+00 : f32
    %9 = vector.broadcast %cst_7 : f32 to vector<384x32xf32>
    %10 = arith.minimumf %5, %9 : vector<384x32xf32>
    %11 = vector.broadcast %6 : f32 to vector<384x32xf32>
    %12 = arith.mulf %11, %10 : vector<384x32xf32>
    %13 = arith.addf %8, %12 : vector<384x32xf32>
    %c0_8 = arith.constant 0 : index
    %c0_9 = arith.constant 0 : index
    %14 = vector.load %arg5[%c0_8, %c0_9] : memref<384x32xf32, #tpu.memory_space<vmem>>, vector<384x32xf32>
    tpu.vector_store %arg5[%c0_8, %c0_9], %13 {strides = array<i32>} : memref<384x32xf32, #tpu.memory_space<vmem>>, vector<384x32xf32>,
    return
  }
  func.func @transform_0(%arg0: i32) -> (i32, i32) {
    %c0_i32 = arith.constant 0 : i32
    %c0_i32_0 = arith.constant 0 : i32
    return %arg0, %c0_i32 : i32, i32
  }
  func.func @transform_1(%arg0: i32) -> (i32, i32) {
    %c0_i32 = arith.constant 0 : i32
    %c0_i32_0 = arith.constant 0 : i32
    %c0_i32_1 = arith.constant 0 : i32
    return %c0_i32, %c0_i32_0 : i32, i32
  }
  func.func @transform_2(%arg0: i32) -> (i32, i32) {
    %c0_i32 = arith.constant 0 : i32
    %c0_i32_0 = arith.constant 0 : i32
    %c0_i32_1 = arith.constant 0 : i32
    return %c0_i32, %c0_i32_0 : i32, i32
  }
  func.func @transform_3(%arg0: i32) -> i32 {
    %c0_i32 = arith.constant 0 : i32
    %c0_i32_0 = arith.constant 0 : i32
    return %c0_i32 : i32
  }
  func.func @transform_4(%arg0: i32) -> (i32, i32) {
    %c0_i32 = arith.constant 0 : i32
    %c0_i32_0 = arith.constant 0 : i32
    return %arg0, %c0_i32 : i32, i32
  }
}

module attributes {stable_mosaic.version = 11 : i64} {
  func.func @_max4_kernel(%arg0: i32, %arg1: memref<24x384xf32, #tpu.memory_space<vmem>>, %arg2: memref<24x384xf32, #tpu.memory_space<vmem>>, %arg3: memref<24x384xf32, #tpu.memory_space<vmem>>, %arg4: memref<24x384xf32, #tpu.memory_space<vmem>>, %arg5: memref<24x384xf32, #tpu.memory_space<vmem>>) attributes {dimension_semantics = [#tpu.dimension_semantics<arbitrary>], iteration_bounds = array<i64: 1>, scalar_prefetch = 0 : i64, scratch_operands = 0 : i64, tpu.core_type = #tpu.core_type<tc>, window_params = [{pipeline_mode = #tpu.pipeline_mode<synchronous>, transform_indices = @transform_0, window_bounds = array<i64: 24, 384>}, {pipeline_mode = #tpu.pipeline_mode<synchronous>, transform_indices = @transform_1, window_bounds = array<i64: 24, 384>}, {pipeline_mode = #tpu.pipeline_mode<synchronous>, transform_indices = @transform_2, window_bounds = array<i64: 24, 384>}, {pipeline_mode = #tpu.pipeline_mode<synchronous>, transform_indices = @transform_3, window_bounds = array<i64: 24, 384>}, {pipeline_mode = #tpu.pipeline_mode<synchronous>, transform_indices = @transform_4, window_bounds = array<i64: 24, 384>}]} {
    %c0 = arith.constant 0 : index
    %c0_0 = arith.constant 0 : index
    %0 = vector.load %arg1[%c0, %c0_0] : memref<24x384xf32, #tpu.memory_space<vmem>>, vector<24x384xf32>
    %c0_1 = arith.constant 0 : index
    %c0_2 = arith.constant 0 : index
    %1 = vector.load %arg2[%c0_1, %c0_2] : memref<24x384xf32, #tpu.memory_space<vmem>>, vector<24x384xf32>
    %2 = arith.maximumf %0, %1 : vector<24x384xf32>
    %c0_3 = arith.constant 0 : index
    %c0_4 = arith.constant 0 : index
    %3 = vector.load %arg3[%c0_3, %c0_4] : memref<24x384xf32, #tpu.memory_space<vmem>>, vector<24x384xf32>
    %c0_5 = arith.constant 0 : index
    %c0_6 = arith.constant 0 : index
    %4 = vector.load %arg4[%c0_5, %c0_6] : memref<24x384xf32, #tpu.memory_space<vmem>>, vector<24x384xf32>
    %5 = arith.maximumf %3, %4 : vector<24x384xf32>
    %6 = arith.maximumf %2, %5 : vector<24x384xf32>
    %c0_7 = arith.constant 0 : index
    %c0_8 = arith.constant 0 : index
    %7 = vector.load %arg5[%c0_7, %c0_8] : memref<24x384xf32, #tpu.memory_space<vmem>>, vector<24x384xf32>
    tpu.vector_store %arg5[%c0_7, %c0_8], %6 {strides = array<i32>} : memref<24x384xf32, #tpu.memory_space<vmem>>, vector<24x384xf32>,
    return
  }
  func.func @transform_0(%arg0: i32) -> (i32, i32) {
    %c0_i32 = arith.constant 0 : i32
    %c0_i32_0 = arith.constant 0 : i32
    %c0_i32_1 = arith.constant 0 : i32
    return %c0_i32, %c0_i32_0 : i32, i32
  }
  func.func @transform_1(%arg0: i32) -> (i32, i32) {
    %c0_i32 = arith.constant 0 : i32
    %c0_i32_0 = arith.constant 0 : i32
    %c0_i32_1 = arith.constant 0 : i32
    return %c0_i32, %c0_i32_0 : i32, i32
  }
  func.func @transform_2(%arg0: i32) -> (i32, i32) {
    %c0_i32 = arith.constant 0 : i32
    %c0_i32_0 = arith.constant 0 : i32
    %c0_i32_1 = arith.constant 0 : i32
    return %c0_i32, %c0_i32_0 : i32, i32
  }
  func.func @transform_3(%arg0: i32) -> (i32, i32) {
    %c0_i32 = arith.constant 0 : i32
    %c0_i32_0 = arith.constant 0 : i32
    %c0_i32_1 = arith.constant 0 : i32
    return %c0_i32, %c0_i32_0 : i32, i32
  }
  func.func @transform_4(%arg0: i32) -> (i32, i32) {
    %c0_i32 = arith.constant 0 : i32
    %c0_i32_0 = arith.constant 0 : i32
    %c0_i32_1 = arith.constant 0 : i32
    return %c0_i32, %c0_i32_0 : i32, i32
  }
}

module attributes {stable_mosaic.version = 11 : i64} {
  func.func @_matmul_bias_prelu_kernel(%arg0: i32, %arg1: memref<64x800xf32, #tpu.memory_space<vmem>>, %arg2: memref<800x64xbf16, #tpu.memory_space<vmem>>, %arg3: memref<1x64xf32, #tpu.memory_space<vmem>>, %arg4: memref<1xf32, #tpu.memory_space<smem>>, %arg5: memref<64x64xf32, #tpu.memory_space<vmem>>) attributes {dimension_semantics = [#tpu.dimension_semantics<parallel>], iteration_bounds = array<i64: 2>, scalar_prefetch = 0 : i64, scratch_operands = 0 : i64, tpu.core_type = #tpu.core_type<tc>, window_params = [{transform_indices = @transform_0, window_bounds = array<i64: 64, 800>}, {pipeline_mode = #tpu.pipeline_mode<synchronous>, transform_indices = @transform_1, window_bounds = array<i64: 800, 64>}, {pipeline_mode = #tpu.pipeline_mode<synchronous>, transform_indices = @transform_2, window_bounds = array<i64: 1, 64>}, {transform_indices = @transform_3, window_bounds = array<i64: 1>}, {transform_indices = @transform_4, window_bounds = array<i64: 64, 64>}]} {
    %c0 = arith.constant 0 : index
    %c0_0 = arith.constant 0 : index
    %0 = vector.load %arg1[%c0, %c0_0] : memref<64x800xf32, #tpu.memory_space<vmem>>, vector<64x800xf32>
    %1 = arith.truncf %0 : vector<64x800xf32> to vector<64x800xbf16>
    %c0_1 = arith.constant 0 : index
    %c0_2 = arith.constant 0 : index
    %2 = vector.load %arg2[%c0_1, %c0_2] : memref<800x64xbf16, #tpu.memory_space<vmem>>, vector<800x64xbf16>
    %cst = arith.constant dense<0.000000e+00> : vector<64x64xf32>
    %3 = tpu.matmul %1, %2, %cst {dimension_numbers = #tpu.dot_dimension_numbers<[1], [0], [0], [1], [0, 0, 1, 1], [], []>} : vector<64x800xbf16>, vector<800x64xbf16>, vector<64x64xf32> -> vector<64x64xf32>
    %c0_3 = arith.constant 0 : index
    %c0_4 = arith.constant 0 : index
    %4 = vector.load %arg3[%c0_3, %c0_4] : memref<1x64xf32, #tpu.memory_space<vmem>>, vector<1x64xf32>
    %5 = vector.broadcast %4 : vector<1x64xf32> to vector<64x64xf32>
    %6 = arith.addf %3, %5 : vector<64x64xf32>
    %c0_5 = arith.constant 0 : index
    %7 = memref.load %arg4[%c0_5] : memref<1xf32, #tpu.memory_space<smem>>
    %cst_6 = arith.constant 0.000000e+00 : f32
    %8 = vector.broadcast %cst_6 : f32 to vector<64x64xf32>
    %9 = arith.maximumf %6, %8 : vector<64x64xf32>
    %cst_7 = arith.constant 0.000000e+00 : f32
    %10 = vector.broadcast %cst_7 : f32 to vector<64x64xf32>
    %11 = arith.minimumf %6, %10 : vector<64x64xf32>
    %12 = vector.broadcast %7 : f32 to vector<64x64xf32>
    %13 = arith.mulf %12, %11 : vector<64x64xf32>
    %14 = arith.addf %9, %13 : vector<64x64xf32>
    %c0_8 = arith.constant 0 : index
    %c0_9 = arith.constant 0 : index
    %15 = vector.load %arg5[%c0_8, %c0_9] : memref<64x64xf32, #tpu.memory_space<vmem>>, vector<64x64xf32>
    tpu.vector_store %arg5[%c0_8, %c0_9], %14 {strides = array<i32>} : memref<64x64xf32, #tpu.memory_space<vmem>>, vector<64x64xf32>,
    return
  }
  func.func @transform_0(%arg0: i32) -> (i32, i32) {
    %c0_i32 = arith.constant 0 : i32
    %c0_i32_0 = arith.constant 0 : i32
    return %arg0, %c0_i32 : i32, i32
  }
  func.func @transform_1(%arg0: i32) -> (i32, i32) {
    %c0_i32 = arith.constant 0 : i32
    %c0_i32_0 = arith.constant 0 : i32
    %c0_i32_1 = arith.constant 0 : i32
    return %c0_i32, %c0_i32_0 : i32, i32
  }
  func.func @transform_2(%arg0: i32) -> (i32, i32) {
    %c0_i32 = arith.constant 0 : i32
    %c0_i32_0 = arith.constant 0 : i32
    %c0_i32_1 = arith.constant 0 : i32
    return %c0_i32, %c0_i32_0 : i32, i32
  }
  func.func @transform_3(%arg0: i32) -> i32 {
    %c0_i32 = arith.constant 0 : i32
    %c0_i32_0 = arith.constant 0 : i32
    return %c0_i32 : i32
  }
  func.func @transform_4(%arg0: i32) -> (i32, i32) {
    %c0_i32 = arith.constant 0 : i32
    %c0_i32_0 = arith.constant 0 : i32
    return %arg0, %c0_i32 : i32, i32
  }
}

module attributes {stable_mosaic.version = 11 : i64} {
  func.func @_max4_kernel(%arg0: i32, %arg1: memref<8x256xf32, #tpu.memory_space<vmem>>, %arg2: memref<8x256xf32, #tpu.memory_space<vmem>>, %arg3: memref<8x256xf32, #tpu.memory_space<vmem>>, %arg4: memref<8x256xf32, #tpu.memory_space<vmem>>, %arg5: memref<8x256xf32, #tpu.memory_space<vmem>>) attributes {dimension_semantics = [#tpu.dimension_semantics<arbitrary>], iteration_bounds = array<i64: 1>, scalar_prefetch = 0 : i64, scratch_operands = 0 : i64, tpu.core_type = #tpu.core_type<tc>, window_params = [{pipeline_mode = #tpu.pipeline_mode<synchronous>, transform_indices = @transform_0, window_bounds = array<i64: 8, 256>}, {pipeline_mode = #tpu.pipeline_mode<synchronous>, transform_indices = @transform_1, window_bounds = array<i64: 8, 256>}, {pipeline_mode = #tpu.pipeline_mode<synchronous>, transform_indices = @transform_2, window_bounds = array<i64: 8, 256>}, {pipeline_mode = #tpu.pipeline_mode<synchronous>, transform_indices = @transform_3, window_bounds = array<i64: 8, 256>}, {pipeline_mode = #tpu.pipeline_mode<synchronous>, transform_indices = @transform_4, window_bounds = array<i64: 8, 256>}]} {
    %c0 = arith.constant 0 : index
    %c0_0 = arith.constant 0 : index
    %0 = vector.load %arg1[%c0, %c0_0] : memref<8x256xf32, #tpu.memory_space<vmem>>, vector<8x256xf32>
    %c0_1 = arith.constant 0 : index
    %c0_2 = arith.constant 0 : index
    %1 = vector.load %arg2[%c0_1, %c0_2] : memref<8x256xf32, #tpu.memory_space<vmem>>, vector<8x256xf32>
    %2 = arith.maximumf %0, %1 : vector<8x256xf32>
    %c0_3 = arith.constant 0 : index
    %c0_4 = arith.constant 0 : index
    %3 = vector.load %arg3[%c0_3, %c0_4] : memref<8x256xf32, #tpu.memory_space<vmem>>, vector<8x256xf32>
    %c0_5 = arith.constant 0 : index
    %c0_6 = arith.constant 0 : index
    %4 = vector.load %arg4[%c0_5, %c0_6] : memref<8x256xf32, #tpu.memory_space<vmem>>, vector<8x256xf32>
    %5 = arith.maximumf %3, %4 : vector<8x256xf32>
    %6 = arith.maximumf %2, %5 : vector<8x256xf32>
    %c0_7 = arith.constant 0 : index
    %c0_8 = arith.constant 0 : index
    %7 = vector.load %arg5[%c0_7, %c0_8] : memref<8x256xf32, #tpu.memory_space<vmem>>, vector<8x256xf32>
    tpu.vector_store %arg5[%c0_7, %c0_8], %6 {strides = array<i32>} : memref<8x256xf32, #tpu.memory_space<vmem>>, vector<8x256xf32>,
    return
  }
  func.func @transform_0(%arg0: i32) -> (i32, i32) {
    %c0_i32 = arith.constant 0 : i32
    %c0_i32_0 = arith.constant 0 : i32
    %c0_i32_1 = arith.constant 0 : i32
    return %c0_i32, %c0_i32_0 : i32, i32
  }
  func.func @transform_1(%arg0: i32) -> (i32, i32) {
    %c0_i32 = arith.constant 0 : i32
    %c0_i32_0 = arith.constant 0 : i32
    %c0_i32_1 = arith.constant 0 : i32
    return %c0_i32, %c0_i32_0 : i32, i32
  }
  func.func @transform_2(%arg0: i32) -> (i32, i32) {
    %c0_i32 = arith.constant 0 : i32
    %c0_i32_0 = arith.constant 0 : i32
    %c0_i32_1 = arith.constant 0 : i32
    return %c0_i32, %c0_i32_0 : i32, i32
  }
  func.func @transform_3(%arg0: i32) -> (i32, i32) {
    %c0_i32 = arith.constant 0 : i32
    %c0_i32_0 = arith.constant 0 : i32
    %c0_i32_1 = arith.constant 0 : i32
    return %c0_i32, %c0_i32_0 : i32, i32
  }
  func.func @transform_4(%arg0: i32) -> (i32, i32) {
    %c0_i32 = arith.constant 0 : i32
    %c0_i32_0 = arith.constant 0 : i32
    %c0_i32_1 = arith.constant 0 : i32
    return %c0_i32, %c0_i32_0 : i32, i32
  }
}

module attributes {stable_mosaic.version = 11 : i64} {
  func.func @_fc_fused_kernel(%arg0: i32, %arg1: memref<2x1024xf32, #tpu.memory_space<vmem>>, %arg2: memref<1024x256xbf16, #tpu.memory_space<vmem>>, %arg3: memref<1x256xf32, #tpu.memory_space<vmem>>, %arg4: memref<256x256xbf16, #tpu.memory_space<vmem>>, %arg5: memref<1x256xf32, #tpu.memory_space<vmem>>, %arg6: memref<256x128xbf16, #tpu.memory_space<vmem>>, %arg7: memref<1x128xf32, #tpu.memory_space<vmem>>, %arg8: memref<2xf32, #tpu.memory_space<smem>>, %arg9: memref<2x128xf32, #tpu.memory_space<vmem>>) attributes {dimension_semantics = [#tpu.dimension_semantics<arbitrary>], iteration_bounds = array<i64: 1>, scalar_prefetch = 0 : i64, scratch_operands = 0 : i64, tpu.core_type = #tpu.core_type<tc>, window_params = [{pipeline_mode = #tpu.pipeline_mode<synchronous>, transform_indices = @transform_0, window_bounds = array<i64: 2, 1024>}, {pipeline_mode = #tpu.pipeline_mode<synchronous>, transform_indices = @transform_1, window_bounds = array<i64: 1024, 256>}, {pipeline_mode = #tpu.pipeline_mode<synchronous>, transform_indices = @transform_2, window_bounds = array<i64: 1, 256>}, {pipeline_mode = #tpu.pipeline_mode<synchronous>, transform_indices = @transform_3, window_bounds = array<i64: 256, 256>}, {pipeline_mode = #tpu.pipeline_mode<synchronous>, transform_indices = @transform_4, window_bounds = array<i64: 1, 256>}, {pipeline_mode = #tpu.pipeline_mode<synchronous>, transform_indices = @transform_5, window_bounds = array<i64: 256, 128>}, {pipeline_mode = #tpu.pipeline_mode<synchronous>, transform_indices = @transform_6, window_bounds = array<i64: 1, 128>}, {transform_indices = @transform_7, window_bounds = array<i64: 2>}, {pipeline_mode = #tpu.pipeline_mode<synchronous>, transform_indices = @transform_8, window_bounds = array<i64: 2, 128>}]} {
    %c0 = arith.constant 0 : index
    %c0_0 = arith.constant 0 : index
    %0 = vector.load %arg1[%c0, %c0_0] : memref<2x1024xf32, #tpu.memory_space<vmem>>, vector<2x1024xf32>
    %1 = arith.truncf %0 : vector<2x1024xf32> to vector<2x1024xbf16>
    %c0_1 = arith.constant 0 : index
    %c0_2 = arith.constant 0 : index
    %2 = vector.load %arg2[%c0_1, %c0_2] : memref<1024x256xbf16, #tpu.memory_space<vmem>>, vector<1024x256xbf16>
    %cst = arith.constant dense<0.000000e+00> : vector<2x256xf32>
    %3 = tpu.matmul %1, %2, %cst {dimension_numbers = #tpu.dot_dimension_numbers<[1], [0], [0], [1], [0, 0, 1, 1], [], []>} : vector<2x1024xbf16>, vector<1024x256xbf16>, vector<2x256xf32> -> vector<2x256xf32>
    %c0_3 = arith.constant 0 : index
    %c0_4 = arith.constant 0 : index
    %4 = vector.load %arg3[%c0_3, %c0_4] : memref<1x256xf32, #tpu.memory_space<vmem>>, vector<1x256xf32>
    %5 = vector.broadcast %4 : vector<1x256xf32> to vector<2x256xf32>
    %6 = arith.addf %3, %5 : vector<2x256xf32>
    %c0_5 = arith.constant 0 : index
    %7 = memref.load %arg8[%c0_5] : memref<2xf32, #tpu.memory_space<smem>>
    %cst_6 = arith.constant 0.000000e+00 : f32
    %8 = vector.broadcast %cst_6 : f32 to vector<2x256xf32>
    %9 = arith.maximumf %6, %8 : vector<2x256xf32>
    %cst_7 = arith.constant 0.000000e+00 : f32
    %10 = vector.broadcast %cst_7 : f32 to vector<2x256xf32>
    %11 = arith.minimumf %6, %10 : vector<2x256xf32>
    %12 = vector.broadcast %7 : f32 to vector<2x256xf32>
    %13 = arith.mulf %12, %11 : vector<2x256xf32>
    %14 = arith.addf %9, %13 : vector<2x256xf32>
    %15 = arith.truncf %14 : vector<2x256xf32> to vector<2x256xbf16>
    %c0_8 = arith.constant 0 : index
    %c0_9 = arith.constant 0 : index
    %16 = vector.load %arg4[%c0_8, %c0_9] : memref<256x256xbf16, #tpu.memory_space<vmem>>, vector<256x256xbf16>
    %cst_10 = arith.constant dense<0.000000e+00> : vector<2x256xf32>
    %17 = tpu.matmul %15, %16, %cst_10 {dimension_numbers = #tpu.dot_dimension_numbers<[1], [0], [0], [1], [0, 0, 1, 1], [], []>} : vector<2x256xbf16>, vector<256x256xbf16>, vector<2x256xf32> -> vector<2x256xf32>
    %c0_11 = arith.constant 0 : index
    %c0_12 = arith.constant 0 : index
    %18 = vector.load %arg5[%c0_11, %c0_12] : memref<1x256xf32, #tpu.memory_space<vmem>>, vector<1x256xf32>
    %19 = vector.broadcast %18 : vector<1x256xf32> to vector<2x256xf32>
    %20 = arith.addf %17, %19 : vector<2x256xf32>
    %c1 = arith.constant 1 : index
    %21 = memref.load %arg8[%c1] : memref<2xf32, #tpu.memory_space<smem>>
    %cst_13 = arith.constant 0.000000e+00 : f32
    %22 = vector.broadcast %cst_13 : f32 to vector<2x256xf32>
    %23 = arith.maximumf %20, %22 : vector<2x256xf32>
    %cst_14 = arith.constant 0.000000e+00 : f32
    %24 = vector.broadcast %cst_14 : f32 to vector<2x256xf32>
    %25 = arith.minimumf %20, %24 : vector<2x256xf32>
    %26 = vector.broadcast %21 : f32 to vector<2x256xf32>
    %27 = arith.mulf %26, %25 : vector<2x256xf32>
    %28 = arith.addf %23, %27 : vector<2x256xf32>
    %29 = arith.truncf %28 : vector<2x256xf32> to vector<2x256xbf16>
    %c0_15 = arith.constant 0 : index
    %c0_16 = arith.constant 0 : index
    %30 = vector.load %arg6[%c0_15, %c0_16] : memref<256x128xbf16, #tpu.memory_space<vmem>>, vector<256x128xbf16>
    %cst_17 = arith.constant dense<0.000000e+00> : vector<2x128xf32>
    %31 = tpu.matmul %29, %30, %cst_17 {dimension_numbers = #tpu.dot_dimension_numbers<[1], [0], [0], [1], [0, 0, 1, 1], [], []>} : vector<2x256xbf16>, vector<256x128xbf16>, vector<2x128xf32> -> vector<2x128xf32>
    %c0_18 = arith.constant 0 : index
    %c0_19 = arith.constant 0 : index
    %32 = vector.load %arg7[%c0_18, %c0_19] : memref<1x128xf32, #tpu.memory_space<vmem>>, vector<1x128xf32>
    %33 = vector.broadcast %32 : vector<1x128xf32> to vector<2x128xf32>
    %34 = arith.addf %31, %33 : vector<2x128xf32>
    %c0_20 = arith.constant 0 : index
    %c0_21 = arith.constant 0 : index
    %35 = vector.load %arg9[%c0_20, %c0_21] : memref<2x128xf32, #tpu.memory_space<vmem>>, vector<2x128xf32>
    tpu.vector_store %arg9[%c0_20, %c0_21], %34 {strides = array<i32>} : memref<2x128xf32, #tpu.memory_space<vmem>>, vector<2x128xf32>,
    return
  }
  func.func @transform_0(%arg0: i32) -> (i32, i32) {
    %c0_i32 = arith.constant 0 : i32
    %c0_i32_0 = arith.constant 0 : i32
    %c0_i32_1 = arith.constant 0 : i32
    return %c0_i32, %c0_i32_0 : i32, i32
  }
  func.func @transform_1(%arg0: i32) -> (i32, i32) {
    %c0_i32 = arith.constant 0 : i32
    %c0_i32_0 = arith.constant 0 : i32
    %c0_i32_1 = arith.constant 0 : i32
    return %c0_i32, %c0_i32_0 : i32, i32
  }
  func.func @transform_2(%arg0: i32) -> (i32, i32) {
    %c0_i32 = arith.constant 0 : i32
    %c0_i32_0 = arith.constant 0 : i32
    %c0_i32_1 = arith.constant 0 : i32
    return %c0_i32, %c0_i32_0 : i32, i32
  }
  func.func @transform_3(%arg0: i32) -> (i32, i32) {
    %c0_i32 = arith.constant 0 : i32
    %c0_i32_0 = arith.constant 0 : i32
    %c0_i32_1 = arith.constant 0 : i32
    return %c0_i32, %c0_i32_0 : i32, i32
  }
  func.func @transform_4(%arg0: i32) -> (i32, i32) {
    %c0_i32 = arith.constant 0 : i32
    %c0_i32_0 = arith.constant 0 : i32
    %c0_i32_1 = arith.constant 0 : i32
    return %c0_i32, %c0_i32_0 : i32, i32
  }
  func.func @transform_5(%arg0: i32) -> (i32, i32) {
    %c0_i32 = arith.constant 0 : i32
    %c0_i32_0 = arith.constant 0 : i32
    %c0_i32_1 = arith.constant 0 : i32
    return %c0_i32, %c0_i32_0 : i32, i32
  }
  func.func @transform_6(%arg0: i32) -> (i32, i32) {
    %c0_i32 = arith.constant 0 : i32
    %c0_i32_0 = arith.constant 0 : i32
    %c0_i32_1 = arith.constant 0 : i32
    return %c0_i32, %c0_i32_0 : i32, i32
  }
  func.func @transform_7(%arg0: i32) -> i32 {
    %c0_i32 = arith.constant 0 : i32
    %c0_i32_0 = arith.constant 0 : i32
    return %c0_i32 : i32
  }
  func.func @transform_8(%arg0: i32) -> (i32, i32) {
    %c0_i32 = arith.constant 0 : i32
    %c0_i32_0 = arith.constant 0 : i32
    %c0_i32_1 = arith.constant 0 : i32
    return %c0_i32, %c0_i32_0 : i32, i32
  }
}

</mosaic_0001>

<llo_original>
// kernel: _lambda_.5
$region0: #{_lambda_.5}
  #allocation0 [shape = 'u32[]', space=smem, size = 0x4, offset = 0x4, fixed_abs, tag = 'smem constant byte address 0x4 - core index']
  #allocation1 [shape = 'u32[144,128]{1,0:T(1,128)}', space=vmem, size = 0x12000, scoped, tag = 'internal scratch']
  #allocation2 [shape = 'f32[1]{0:T(128)S(6)}', space=smem, size = 0x200, scoped, tag = 'scoped memory for _lambda_.5']
  %s0 = inlined_call_operand.vmem [shape: f32[1152,25], index: 0, kind: input, shape index: {}]
  %s1 = inlined_call_operand.vmem [shape: f32[25,32], index: 1, kind: input, shape index: {}]
  %s2 = inlined_call_operand.vmem [shape: f32[1,32], index: 2, kind: input, shape index: {}]
  %s3 = inlined_call_operand.<no memory space> [shape: f32[1], index: 3, kind: input, shape index: {}]
  %s4 = inlined_call_operand.vmem [shape: f32[1152,32], index: 4, kind: output, shape index: {}]
  %s5 = sld [smem:[#allocation0]]
  $region49: #{_lambda_.5} parent=0
    _
  %s7 = ssub.s32 1, %s5
  %s8 = scalar_select 0, %s7, %s5
  %9 = sst [smem:[#allocation2]] %s3
  loop: start=0, step=1, limit=5
  $region2: #{_lambda_.5} parent=0 // loop_pre_header
    _
  $region3: #{_lambda_.5} parent=0 // loop_header
    %s11 = sphi 0, %s15
    %p12 = scmp.ge.s32.totalorder %s11, 5
    %s21 = sphi 0, %s23
    %s24 = sphi 0, %s21
    %s25 = sphi 0, %s24
    %s41 = sphi 0, %s25
    %s45 = sphi 0, %s45
    %s47 = sphi 0, %s45
    %s48 = sphi 0, %s47
    %s62 = sphi 0, %s48
    %s66 = sphi 0, %s66
    %s68 = sphi 0, %s66
    %s69 = sphi 0, %s68
    %s83 = sphi 0, %s69
    %s87 = sphi 0, %s87
    %s89 = sphi 0, %s87
    %s90 = sphi 0, %s89
    %s104 = sphi 0, %s90
    %s110 = sphi 0, %s112
    %s113 = sphi 0, %s110
    %s114 = sphi 0, %s113
    %s130 = sphi 0, %s114
  $region4: #{_lambda_.5} parent=0 // loop_header_branch
    %14 = sbr.rel (%p12) target = $region8
  $region5: #{_lambda_.5} parent=0 // loop_body
    %s16 = ssub.s32 %s11, 1
    %s17 = ssub.s32 %s11, 2
    %s18 = sadd.s32 %s11, 1
    %s19 = ssub.s32 %s11, %s18
    %p20 = scmp.eq.s32.totalorder %s19, 0
    %s22 = sadd.s32 %s21, 1
    %s23 = scalar_select %p20, %s21, %s22
    %p26 = pneg %p20
    %p27 = scmp.eq.s32.totalorder %s11, 2
    %p28 = por %p26, %p27
    %p29 = scmp.ne.s32.totalorder %s21, %s24
    %p30 = scmp.eq.s32.totalorder %s11, 0
    %p31 = por %p29, %p30
    %p32 = scmp.ne.s32.totalorder %s21, %s24
    %p33 = scmp.eq.s32.totalorder %s16, 2
    %p34 = por %p32, %p33
    %p35 = scmp.ne.s32.totalorder %s24, %s25
    %p36 = scmp.eq.s32.totalorder %s16, 0
    %p37 = por %p35, %p36
    %p38 = scmp.ne.s32.totalorder %s24, %s25
    %p39 = scmp.eq.s32.totalorder %s17, 2
    %p40 = por %p38, %p39
    %p42 = scmp.ne.s32.totalorder %s25, %s41
    %p43 = scmp.eq.s32.totalorder %s17, 0
    %p44 = por %p42, %p43
    %s46 = sadd.s32 %s45, 1
    %p49 = scmp.eq.s32.totalorder %s11, 2
    %p50 = scmp.ne.s32.totalorder %s45, %s47
    %p51 = scmp.eq.s32.totalorder %s11, 0
    %p52 = por %p50, %p51
    %p53 = scmp.ne.s32.totalorder %s45, %s47
    %p54 = scmp.eq.s32.totalorder %s16, 2
    %p55 = por %p53, %p54
    %p56 = scmp.ne.s32.totalorder %s47, %s48
    %p57 = scmp.eq.s32.totalorder %s16, 0
    %p58 = por %p56, %p57
    %p59 = scmp.ne.s32.totalorder %s47, %s48
    %p60 = scmp.eq.s32.totalorder %s17, 2
    %p61 = por %p59, %p60
    %p63 = scmp.ne.s32.totalorder %s48, %s62
    %p64 = scmp.eq.s32.totalorder %s17, 0
    %p65 = por %p63, %p64
    %s67 = sadd.s32 %s66, 1
    %p70 = scmp.eq.s32.totalorder %s11, 2
    %p71 = scmp.ne.s32.totalorder %s66, %s68
    %p72 = scmp.eq.s32.totalorder %s11, 0
    %p73 = por %p71, %p72
    %p74 = scmp.ne.s32.totalorder %s66, %s68
    %p75 = scmp.eq.s32.totalorder %s16, 2
    %p76 = por %p74, %p75
    %p77 = scmp.ne.s32.totalorder %s68, %s69
    %p78 = scmp.eq.s32.totalorder %s16, 0
    %p79 = por %p77, %p78
    %p80 = scmp.ne.s32.totalorder %s68, %s69
    %p81 = scmp.eq.s32.totalorder %s17, 2
    %p82 = por %p80, %p81
    %p84 = scmp.ne.s32.totalorder %s69, %s83
    %p85 = scmp.eq.s32.totalorder %s17, 0
    %p86 = por %p84, %p85
    %s88 = sadd.s32 %s87, 1
    %p91 = scmp.eq.s32.totalorder %s11, 2
    %p92 = scmp.ne.s32.totalorder %s87, %s89
    %p93 = scmp.eq.s32.totalorder %s11, 0
    %p94 = por %p92, %p93
    %p95 = scmp.ne.s32.totalorder %s87, %s89
    %p96 = scmp.eq.s32.totalorder %s16, 2
    %p97 = por %p95, %p96
    %p98 = scmp.ne.s32.totalorder %s89, %s90
    %p99 = scmp.eq.s32.totalorder %s16, 0
    %p100 = por %p98, %p99
    %p101 = scmp.ne.s32.totalorder %s89, %s90
    %p102 = scmp.eq.s32.totalorder %s17, 2
    %p103 = por %p101, %p102
    %p105 = scmp.ne.s32.totalorder %s90, %s104
    %p106 = scmp.eq.s32.totalorder %s17, 0
    %p107 = por %p105, %p106
    %s108 = ssub.s32 %s11, %s18
    %p109 = scmp.eq.s32.totalorder %s108, 0
    %s111 = sadd.s32 %s110, 1
    %s112 = scalar_select %p109, %s110, %s111
    %p115 = pneg %p109
    %p116 = scmp.eq.s32.totalorder %s11, 2
    %p117 = por %p115, %p116
    %p118 = scmp.ne.s32.totalorder %s110, %s113
    %p119 = scmp.eq.s32.totalorder %s11, 0
    %p120 = por %p118, %p119
    %p121 = scmp.ne.s32.totalorder %s110, %s113
    %p122 = scmp.eq.s32.totalorder %s16, 2
    %p123 = por %p121, %p122
    %p124 = scmp.ne.s32.totalorder %s113, %s114
    %p125 = scmp.eq.s32.totalorder %s16, 0
    %p126 = por %p124, %p125
    %p127 = scmp.ne.s32.totalorder %s113, %s114
    %p128 = scmp.eq.s32.totalorder %s17, 2
    %p129 = por %p127, %p128
    %p131 = scmp.ne.s32.totalorder %s114, %s130
    %p132 = scmp.eq.s32.totalorder %s17, 0
    %p133 = por %p131, %p132
    %p134 = scmp.le.s32.totalorder 1, %s11
    %p135 = scmp.lt.s32.totalorder %s11, 4
    %p136 = pnand %p134, %p135
    %p137 = pneg %p136
    // Predicated region
    $region9: #{_lambda_.5} parent=5 // pred_check
      _
    $region10: #{_lambda_.5} parent=5 // pred_check_branch
      %139 = sbr.rel (%p136) target = $region12
    $region11: #{_lambda_.5} parent=5 // pred_region
      %s140 = ssub.s32 %s11, 1
      // Predicated region
      $region13: #{_lambda_.5} parent=11 // pred_check
        %p141 = pneg %p58
      $region14: #{_lambda_.5} parent=11 // pred_check_branch
        %143 = sbr.rel (%p141) target = $region16
      $region15: #{_lambda_.5} parent=11 // pred_region
        _
      $region16: #{_lambda_.5} parent=11 // pred_fallthru
        _
      // Predicated region
      $region17: #{_lambda_.5} parent=11 // pred_check
        %p144 = pneg %p79
      $region18: #{_lambda_.5} parent=11 // pred_check_branch
        %146 = sbr.rel (%p144) target = $region20
      $region19: #{_lambda_.5} parent=11 // pred_region
        _
      $region20: #{_lambda_.5} parent=11 // pred_fallthru
        _
      // Predicated region
      $region21: #{_lambda_.5} parent=11 // pred_check
        %p147 = pneg %p100
      $region22: #{_lambda_.5} parent=11 // pred_check_branch
        %149 = sbr.rel (%p147) target = $region24
      $region23: #{_lambda_.5} parent=11 // pred_region
        _
      $region24: #{_lambda_.5} parent=11 // pred_fallthru
        _
    $region12: #{_lambda_.5} parent=5 // pred_fallthru
      _
    %p150 = scmp.lt.s32.totalorder %s11, 3
    // Predicated region
    $region25: #{_lambda_.5} parent=5 // pred_check
      %p151 = pneg %p150
    $region26: #{_lambda_.5} parent=5 // pred_check_branch
      %153 = sbr.rel (%p151) target = $region28
    $region27: #{_lambda_.5} parent=5 // pred_region
      // Predicated region
      $region29: #{_lambda_.5} parent=27 // pred_check
        %p154 = pneg %p31
      $region30: #{_lambda_.5} parent=27 // pred_check_branch
        %156 = sbr.rel (%p154) target = $region32
      $region31: #{_lambda_.5} parent=27 // pred_region
        %s157 = smul.u32 48, %s11
        %p158 = scmp.lt.s32.totalorder %s157, 143
        %s159 = scalar_select %p158, %s157, 143
        %s160 = smul.addr %s159, 8
        %s161 = scalar_lea.vmem %s0, %s160
        %s162 = smul.u32 48, %s11
      $region32: #{_lambda_.5} parent=27 // pred_fallthru
        _
    $region28: #{_lambda_.5} parent=5 // pred_fallthru
      _
    %p163 = scmp.le.s32.totalorder 1, %s11
    %p164 = scmp.lt.s32.totalorder %s11, 4
    %p165 = pnand %p163, %p164
    %p166 = pneg %p165
    // Predicated region
    $region33: #{_lambda_.5} parent=5 // pred_check
      _
    $region34: #{_lambda_.5} parent=5 // pred_check_branch
      %168 = sbr.rel (%p165) target = $region36
    $region35: #{_lambda_.5} parent=5 // pred_region
      %s169 = ssub.s32 %s11, 1
      %s170 = smul.u32 48, %s16
      %p171 = scmp.lt.s32.totalorder %s170, 143
      %s172 = scalar_select %p171, %s170, 143
      %s173 = smul.addr %s172, 8
      %s174 = scalar_lea.vmem %s0, %s173
      %p175 = pneg %p37
      %p176 = pneg %p34
      %p177 = pneg %p58
      %p178 = pneg %p55
      %p179 = pneg %p79
      %p180 = pneg %p76
      %p181 = pneg %p100
      %p182 = pneg %p97
      %p183 = pneg %p126
      %p184 = pneg %p123
      %s185 = smul.u32 48, %s16
      %p186 = scmp.lt.s32.totalorder %s185, 143
      %s187 = scalar_select %p186, %s185, 143
      %s188 = smul.addr %s187, 8
      %s189 = scalar_lea.vmem %s4, %s188
      %s190 = smul.u32 48, %s16
      %p191 = scmp.lt.s32.totalorder %s190, 143
      %s192 = scalar_select %p191, %s190, 143
      %s193 = smul.addr %s192, 8
      %s194 = scalar_lea.vmem %s0, %s193
      %s195 = smul.u32 48, %s16
      %s196 = smul.u32 48, %s16
      %p197 = scmp.lt.s32.totalorder %s196, 143
      %s198 = scalar_select %p197, %s196, 143
      %s199 = smul.addr %s198, 8
      %s200 = scalar_lea.vmem %s4, %s199
      %s201 = smul.u32 48, %s16
      %v202 = vld [vmem:[%s194] sm:$0xff]
      %v203 = vld [vmem:[%s194 + $0x8] sm:$0xff]
      %v204 = vld [vmem:[%s194 + $0x10] sm:$0xff]
      %v205 = vld [vmem:[%s194 + $0x18] sm:$0xff]
      %v206 = vld [vmem:[%s194 + $0x20] sm:$0xff]
      %v207 = vld [vmem:[%s194 + $0x28] sm:$0xff]
      %v208 = vld [vmem:[%s194 + $0x30] sm:$0xff]
      %v209 = vld [vmem:[%s194 + $0x38] sm:$0xff]
      %v210 = vld [vmem:[%s194 + $0x40] sm:$0xff]
      %v211 = vld [vmem:[%s194 + $0x48] sm:$0xff]
      %v212 = vld [vmem:[%s194 + $0x50] sm:$0xff]
      %v213 = vld [vmem:[%s194 + $0x58] sm:$0xff]
      %v214 = vld [vmem:[%s194 + $0x60] sm:$0xff]
      %v215 = vld [vmem:[%s194 + $0x68] sm:$0xff]
      %v216 = vld [vmem:[%s194 + $0x70] sm:$0xff]
      %v217 = vld [vmem:[%s194 + $0x78] sm:$0xff]
      %v218 = vld [vmem:[%s194 + $0x80] sm:$0xff]
      %v219 = vld [vmem:[%s194 + $0x88] sm:$0xff]
      %v220 = vld [vmem:[%s194 + $0x90] sm:$0xff]
      %v221 = vld [vmem:[%s194 + $0x98] sm:$0xff]
      %v222 = vld [vmem:[%s194 + $0xa0] sm:$0xff]
      %v223 = vld [vmem:[%s194 + $0xa8] sm:$0xff]
      %v224 = vld [vmem:[%s194 + $0xb0] sm:$0xff]
      %v225 = vld [vmem:[%s194 + $0xb8] sm:$0xff]
      %v226 = vld [vmem:[%s194 + $0xc0] sm:$0xff]
      %v227 = vld [vmem:[%s194 + $0xc8] sm:$0xff]
      %v228 = vld [vmem:[%s194 + $0xd0] sm:$0xff]
      %v229 = vld [vmem:[%s194 + $0xd8] sm:$0xff]
      %v230 = vld [vmem:[%s194 + $0xe0] sm:$0xff]
      %v231 = vld [vmem:[%s194 + $0xe8] sm:$0xff]
      %v232 = vld [vmem:[%s194 + $0xf0] sm:$0xff]
      %v233 = vld [vmem:[%s194 + $0xf8] sm:$0xff]
      %v234 = vld [vmem:[%s194 + $0x100] sm:$0xff]
      %v235 = vld [vmem:[%s194 + $0x108] sm:$0xff]
      %v236 = vld [vmem:[%s194 + $0x110] sm:$0xff]
      %v237 = vld [vmem:[%s194 + $0x118] sm:$0xff]
      %v238 = vld [vmem:[%s194 + $0x120] sm:$0xff]
      %v239 = vld [vmem:[%s194 + $0x128] sm:$0xff]
      %v240 = vld [vmem:[%s194 + $0x130] sm:$0xff]
      %v241 = vld [vmem:[%s194 + $0x138] sm:$0xff]
      %v242 = vld [vmem:[%s194 + $0x140] sm:$0xff]
      %v243 = vld [vmem:[%s194 + $0x148] sm:$0xff]
      %v244 = vld [vmem:[%s194 + $0x150] sm:$0xff]
      %v245 = vld [vmem:[%s194 + $0x158] sm:$0xff]
      %v246 = vld [vmem:[%s194 + $0x160] sm:$0xff]
      %v247 = vld [vmem:[%s194 + $0x168] sm:$0xff]
      %v248 = vld [vmem:[%s194 + $0x170] sm:$0xff]
      %v249 = vld [vmem:[%s194 + $0x178] sm:$0xff]
      %v250 = vld [vmem:[%s1] sm:$0xff]
      %v251 = vld [vmem:[%s1 + $0x8] sm:$0xff]
      %v252 = vld [vmem:[%s1 + $0x10] sm:$0xff]
      %v253 = vld [vmem:[%s1 + $0x18] sm:$0x1]
      %v254 = vld [vmem:[%s2] sm:$0x1]
      %v256 = vlaneseq
      %v257 = vshrl.u32 %v256, 7
      %v258 = vsub.s32 0, %v257
      %v259 = vrot.slane %v254, %v258
      %vm261 = vcmask 203776
      %v263 = vsel %vm261, %v202, 0
      %v266 = vsel %vm261, %v203, 0
      %v269 = vsel %vm261, %v204, 0
      %v272 = vsel %vm261, %v205, 0
      %v275 = vsel %vm261, %v206, 0
      %v278 = vsel %vm261, %v207, 0
      %v281 = vsel %vm261, %v208, 0
      %v284 = vsel %vm261, %v209, 0
      %v287 = vsel %vm261, %v210, 0
      %v290 = vsel %vm261, %v211, 0
      %v293 = vsel %vm261, %v212, 0
      %v296 = vsel %vm261, %v213, 0
      %v299 = vsel %vm261, %v214, 0
      %v302 = vsel %vm261, %v215, 0
      %v305 = vsel %vm261, %v216, 0
      %v308 = vsel %vm261, %v217, 0
      %v311 = vsel %vm261, %v218, 0
      %v314 = vsel %vm261, %v219, 0
      %v317 = vsel %vm261, %v220, 0
      %v320 = vsel %vm261, %v221, 0
      %v323 = vsel %vm261, %v222, 0
      %v326 = vsel %vm261, %v223, 0
      %v329 = vsel %vm261, %v224, 0
      %v332 = vsel %vm261, %v225, 0
      %v335 = vsel %vm261, %v226, 0
      %v338 = vsel %vm261, %v227, 0
      %v341 = vsel %vm261, %v228, 0
      %v344 = vsel %vm261, %v229, 0
      %v347 = vsel %vm261, %v230, 0
      %v350 = vsel %vm261, %v231, 0
      %v353 = vsel %vm261, %v232, 0
      %v356 = vsel %vm261, %v233, 0
      %v359 = vsel %vm261, %v234, 0
      %v362 = vsel %vm261, %v235, 0
      %v365 = vsel %vm261, %v236, 0
      %v368 = vsel %vm261, %v237, 0
      %v371 = vsel %vm261, %v238, 0
      %v374 = vsel %vm261, %v239, 0
      %v377 = vsel %vm261, %v240, 0
      %v380 = vsel %vm261, %v241, 0
      %v383 = vsel %vm261, %v242, 0
      %v386 = vsel %vm261, %v243, 0
      %v389 = vsel %vm261, %v244, 0
      %v392 = vsel %vm261, %v245, 0
      %v395 = vsel %vm261, %v246, 0
      %v398 = vsel %vm261, %v247, 0
      %v401 = vsel %vm261, %v248, 0
      %v404 = vsel %vm261, %v249, 0
      %vm406 = vcmask 1040384
      %v408 = vsel %vm406, %v253, 0
      %410 = vmatprep.subr.mxu0 0.0
      %411 = vmatpush1.msra.mxu0 %v250
      %412 = vmatprep.subr.mxu0 0.0
      %413 = vmatpush1.msra.mxu0 %v251
      %414 = vmatprep.subr.mxu0 0.0
      %415 = vmatpush1.msra.mxu0 %v252
      %416 = vmatprep.subr.mxu0 0.0
      %417 = vmatpush1.msra.mxu0 %v408
      %418 = vmatprep.subr.mxu0 0.0
      %419 = vmatpush1.msra.mxu0 0.0
      %420 = vmatprep.subr.mxu0 0.0
      %421 = vmatpush1.msra.mxu0 0.0
      %422 = vmatprep.subr.mxu0 0.0
      %423 = vmatpush1.msra.mxu0 0.0
      %424 = vmatprep.subr.mxu0 0.0
      %425 = vmatpush1.msra.mxu0 0.0
      %426 = vmatprep.subr.mxu0 0.0
      %427 = vmatpush1.msra.mxu0 0.0
      %428 = vmatprep.subr.mxu0 0.0
      %429 = vmatpush1.msra.mxu0 0.0
      %430 = vmatprep.subr.mxu0 0.0
      %431 = vmatpush1.msra.mxu0 0.0
      %432 = vmatprep.subr.mxu0 0.0
      %433 = vmatpush1.msra.mxu0 0.0
      %434 = vmatprep.subr.mxu0 0.0
      %435 = vmatpush1.msra.mxu0 0.0
      %436 = vmatprep.subr.mxu0 0.0
      %437 = vmatpush1.msra.mxu0 0.0
      %438 = vmatprep.subr.mxu0 0.0
      %439 = vmatpush1.msra.mxu0 0.0
      %440 = vmatprep.subr.mxu0 0.0
      %441 = vmatpush1.msra.mxu0 0.0
      %442 = vmatprep.subr.mxu0 0.0
      %443 = vmatpush1.msra.mxu0 0.0
      %444 = vmatprep.subr.mxu0 0.0
      %445 = vmatpush1.msra.mxu0 0.0
      %446 = vmatprep.subr.mxu0 0.0
      %447 = vmatpush1.msra.mxu0 0.0
      %448 = vmatprep.subr.mxu0 0.0
      %449 = vmatpush1.msra.mxu0 0.0
      %450 = vmatprep.subr.mxu0 0.0
      %451 = vmatpush1.msra.mxu0 0.0
      %452 = vmatprep.subr.mxu0 0.0
      %453 = vmatpush1.msra.mxu0 0.0
      %454 = vmatprep.subr.mxu0 0.0
      %455 = vmatpush1.msra.mxu0 0.0
      %456 = vmatprep.subr.mxu0 0.0
      %457 = vmatpush1.msra.mxu0 0.0
      %458 = vmatprep.subr.mxu0 0.0
      %459 = vmatpush1.msra.mxu0 0.0
      %460 = vmatprep.subr.mxu0 0.0
      %461 = vmatpush1.msra.mxu0 0.0
      %462 = vmatprep.subr.mxu0 0.0
      %463 = vmatpush1.msra.mxu0 0.0
      %464 = vmatprep.subr.mxu0 0.0
      %465 = vmatpush1.msra.mxu0 0.0
      %466 = vmatprep.subr.mxu0 0.0
      %467 = vmatpush1.msra.mxu0 0.0
      %468 = vmatprep.subr.mxu0 0.0
      %469 = vmatpush1.msra.mxu0 0.0
      %470 = vmatprep.subr.mxu0 0.0
      %471 = vmatpush1.msra.mxu0 0.0
      %472 = vmatprep.subr.mxu0 0.0
      %473 = vmatpush1.msra.mxu0 0.0
      %474 = vmatprep.mubr.f32.mxu0 0.0
      %475 = vmatmul.mubr.f32.gmra.mrb[0].mxu0 %v263
      %v476 = vpop.f32.mrb[0].mxu0
      %v477 = vadd.f32 %v259, %v476
      %v478 = vpop.f32.mrb[0].mxu0
      %479 = vmatprep.mubr.f32.mxu0 0.0
      %480 = vmatmul.mubr.f32.gmra.mrb[0].mxu0 %v266
      %v481 = vpop.f32.mrb[0].mxu0
      %v482 = vadd.f32 %v259, %v481
      %v483 = vpop.f32.mrb[0].mxu0
      %484 = vmatprep.mubr.f32.mxu0 0.0
      %485 = vmatmul.mubr.f32.gmra.mrb[0].mxu0 %v269
      %v486 = vpop.f32.mrb[0].mxu0
      %v487 = vadd.f32 %v259, %v486
      %v488 = vpop.f32.mrb[0].mxu0
      %489 = vmatprep.mubr.f32.mxu0 0.0
      %490 = vmatmul.mubr.f32.gmra.mrb[0].mxu0 %v272
      %v491 = vpop.f32.mrb[0].mxu0
      %v492 = vadd.f32 %v259, %v491
      %v493 = vpop.f32.mrb[0].mxu0
      %494 = vmatprep.mubr.f32.mxu0 0.0
      %495 = vmatmul.mubr.f32.gmra.mrb[0].mxu0 %v275
      %v496 = vpop.f32.mrb[0].mxu0
      %v497 = vadd.f32 %v259, %v496
      %v498 = vpop.f32.mrb[0].mxu0
      %499 = vmatprep.mubr.f32.mxu0 0.0
      %500 = vmatmul.mubr.f32.gmra.mrb[0].mxu0 %v278
      %v501 = vpop.f32.mrb[0].mxu0
      %v502 = vadd.f32 %v259, %v501
      %v503 = vpop.f32.mrb[0].mxu0
      %504 = vmatprep.mubr.f32.mxu0 0.0
      %505 = vmatmul.mubr.f32.gmra.mrb[0].mxu0 %v281
      %v506 = vpop.f32.mrb[0].mxu0
      %v507 = vadd.f32 %v259, %v506
      %v508 = vpop.f32.mrb[0].mxu0
      %509 = vmatprep.mubr.f32.mxu0 0.0
      %510 = vmatmul.mubr.f32.gmra.mrb[0].mxu0 %v284
      %v511 = vpop.f32.mrb[0].mxu0
      %v512 = vadd.f32 %v259, %v511
      %v513 = vpop.f32.mrb[0].mxu0
      %514 = vmatprep.mubr.f32.mxu0 0.0
      %515 = vmatmul.mubr.f32.gmra.mrb[0].mxu0 %v287
      %v516 = vpop.f32.mrb[0].mxu0
      %v517 = vadd.f32 %v259, %v516
      %v518 = vpop.f32.mrb[0].mxu0
      %519 = vmatprep.mubr.f32.mxu0 0.0
      %520 = vmatmul.mubr.f32.gmra.mrb[0].mxu0 %v290
      %v521 = vpop.f32.mrb[0].mxu0
      %v522 = vadd.f32 %v259, %v521
      %v523 = vpop.f32.mrb[0].mxu0
      %524 = vmatprep.mubr.f32.mxu0 0.0
      %525 = vmatmul.mubr.f32.gmra.mrb[0].mxu0 %v293
      %v526 = vpop.f32.mrb[0].mxu0
      %v527 = vadd.f32 %v259, %v526
      %v528 = vpop.f32.mrb[0].mxu0
      %529 = vmatprep.mubr.f32.mxu0 0.0
      %530 = vmatmul.mubr.f32.gmra.mrb[0].mxu0 %v296
      %v531 = vpop.f32.mrb[0].mxu0
      %v532 = vadd.f32 %v259, %v531
      %v533 = vpop.f32.mrb[0].mxu0
      %534 = vmatprep.mubr.f32.mxu0 0.0
      %535 = vmatmul.mubr.f32.gmra.mrb[0].mxu0 %v299
      %v536 = vpop.f32.mrb[0].mxu0
      %v537 = vadd.f32 %v259, %v536
      %v538 = vpop.f32.mrb[0].mxu0
      %539 = vmatprep.mubr.f32.mxu0 0.0
      %540 = vmatmul.mubr.f32.gmra.mrb[0].mxu0 %v302
      %v541 = vpop.f32.mrb[0].mxu0
      %v542 = vadd.f32 %v259, %v541
      %v543 = vpop.f32.mrb[0].mxu0
      %544 = vmatprep.mubr.f32.mxu0 0.0
      %545 = vmatmul.mubr.f32.gmra.mrb[0].mxu0 %v305
      %v546 = vpop.f32.mrb[0].mxu0
      %v547 = vadd.f32 %v259, %v546
      %v548 = vpop.f32.mrb[0].mxu0
      %549 = vmatprep.mubr.f32.mxu0 0.0
      %550 = vmatmul.mubr.f32.gmra.mrb[0].mxu0 %v308
      %v551 = vpop.f32.mrb[0].mxu0
      %v552 = vadd.f32 %v259, %v551
      %v553 = vpop.f32.mrb[0].mxu0
      %554 = vmatprep.mubr.f32.mxu0 0.0
      %555 = vmatmul.mubr.f32.gmra.mrb[0].mxu0 %v311
      %v556 = vpop.f32.mrb[0].mxu0
      %v557 = vadd.f32 %v259, %v556
      %v558 = vpop.f32.mrb[0].mxu0
      %559 = vmatprep.mubr.f32.mxu0 0.0
      %560 = vmatmul.mubr.f32.gmra.mrb[0].mxu0 %v314
      %v561 = vpop.f32.mrb[0].mxu0
      %v562 = vadd.f32 %v259, %v561
      %v563 = vpop.f32.mrb[0].mxu0
      %564 = vmatprep.mubr.f32.mxu0 0.0
      %565 = vmatmul.mubr.f32.gmra.mrb[0].mxu0 %v317
      %v566 = vpop.f32.mrb[0].mxu0
      %v567 = vadd.f32 %v259, %v566
      %v568 = vpop.f32.mrb[0].mxu0
      %569 = vmatprep.mubr.f32.mxu0 0.0
      %570 = vmatmul.mubr.f32.gmra.mrb[0].mxu0 %v320
      %v571 = vpop.f32.mrb[0].mxu0
      %v572 = vadd.f32 %v259, %v571
      %v573 = vpop.f32.mrb[0].mxu0
      %574 = vmatprep.mubr.f32.mxu0 0.0
      %575 = vmatmul.mubr.f32.gmra.mrb[0].mxu0 %v323
      %v576 = vpop.f32.mrb[0].mxu0
      %v577 = vadd.f32 %v259, %v576
      %v578 = vpop.f32.mrb[0].mxu0
      %579 = vmatprep.mubr.f32.mxu0 0.0
      %580 = vmatmul.mubr.f32.gmra.mrb[0].mxu0 %v326
      %v581 = vpop.f32.mrb[0].mxu0
      %v582 = vadd.f32 %v259, %v581
      %v583 = vpop.f32.mrb[0].mxu0
      %584 = vmatprep.mubr.f32.mxu0 0.0
      %585 = vmatmul.mubr.f32.gmra.mrb[0].mxu0 %v329
      %v586 = vpop.f32.mrb[0].mxu0
      %v587 = vadd.f32 %v259, %v586
      %v588 = vpop.f32.mrb[0].mxu0
      %589 = vmatprep.mubr.f32.mxu0 0.0
      %590 = vmatmul.mubr.f32.gmra.mrb[0].mxu0 %v332
      %v591 = vpop.f32.mrb[0].mxu0
      %v592 = vadd.f32 %v259, %v591
      %v593 = vpop.f32.mrb[0].mxu0
      %594 = vmatprep.mubr.f32.mxu0 0.0
      %595 = vmatmul.mubr.f32.gmra.mrb[0].mxu0 %v335
      %v596 = vpop.f32.mrb[0].mxu0
      %v597 = vadd.f32 %v259, %v596
      %v598 = vpop.f32.mrb[0].mxu0
      %599 = vmatprep.mubr.f32.mxu0 0.0
      %600 = vmatmul.mubr.f32.gmra.mrb[0].mxu0 %v338
      %v601 = vpop.f32.mrb[0].mxu0
      %v602 = vadd.f32 %v259, %v601
      %v603 = vpop.f32.mrb[0].mxu0
      %604 = vmatprep.mubr.f32.mxu0 0.0
      %605 = vmatmul.mubr.f32.gmra.mrb[0].mxu0 %v341
      %v606 = vpop.f32.mrb[0].mxu0
      %v607 = vadd.f32 %v259, %v606
      %v608 = vpop.f32.mrb[0].mxu0
      %609 = vmatprep.mubr.f32.mxu0 0.0
      %610 = vmatmul.mubr.f32.gmra.mrb[0].mxu0 %v344
      %v611 = vpop.f32.mrb[0].mxu0
      %v612 = vadd.f32 %v259, %v611
      %v613 = vpop.f32.mrb[0].mxu0
      %614 = vmatprep.mubr.f32.mxu0 0.0
      %615 = vmatmul.mubr.f32.gmra.mrb[0].mxu0 %v347
      %v616 = vpop.f32.mrb[0].mxu0
      %v617 = vadd.f32 %v259, %v616
      %v618 = vpop.f32.mrb[0].mxu0
      %619 = vmatprep.mubr.f32.mxu0 0.0
      %620 = vmatmul.mubr.f32.gmra.mrb[0].mxu0 %v350
      %v621 = vpop.f32.mrb[0].mxu0
      %v622 = vadd.f32 %v259, %v621
      %v623 = vpop.f32.mrb[0].mxu0
      %624 = vmatprep.mubr.f32.mxu0 0.0
      %625 = vmatmul.mubr.f32.gmra.mrb[0].mxu0 %v353
      %v626 = vpop.f32.mrb[0].mxu0
      %v627 = vadd.f32 %v259, %v626
      %v628 = vpop.f32.mrb[0].mxu0
      %629 = vmatprep.mubr.f32.mxu0 0.0
      %630 = vmatmul.mubr.f32.gmra.mrb[0].mxu0 %v356
      %v631 = vpop.f32.mrb[0].mxu0
      %v632 = vadd.f32 %v259, %v631
      %v633 = vpop.f32.mrb[0].mxu0
      %634 = vmatprep.mubr.f32.mxu0 0.0
      %635 = vmatmul.mubr.f32.gmra.mrb[0].mxu0 %v359
      %v636 = vpop.f32.mrb[0].mxu0
      %v637 = vadd.f32 %v259, %v636
      %v638 = vpop.f32.mrb[0].mxu0
      %639 = vmatprep.mubr.f32.mxu0 0.0
      %640 = vmatmul.mubr.f32.gmra.mrb[0].mxu0 %v362
      %v641 = vpop.f32.mrb[0].mxu0
      %v642 = vadd.f32 %v259, %v641
      %v643 = vpop.f32.mrb[0].mxu0
      %644 = vmatprep.mubr.f32.mxu0 0.0
      %645 = vmatmul.mubr.f32.gmra.mrb[0].mxu0 %v365
      %v646 = vpop.f32.mrb[0].mxu0
      %v647 = vadd.f32 %v259, %v646
      %v648 = vpop.f32.mrb[0].mxu0
      %649 = vmatprep.mubr.f32.mxu0 0.0
      %650 = vmatmul.mubr.f32.gmra.mrb[0].mxu0 %v368
      %v651 = vpop.f32.mrb[0].mxu0
      %v652 = vadd.f32 %v259, %v651
      %v653 = vpop.f32.mrb[0].mxu0
      %654 = vmatprep.mubr.f32.mxu0 0.0
      %655 = vmatmul.mubr.f32.gmra.mrb[0].mxu0 %v371
      %v656 = vpop.f32.mrb[0].mxu0
      %v657 = vadd.f32 %v259, %v656
      %v658 = vpop.f32.mrb[0].mxu0
      %659 = vmatprep.mubr.f32.mxu0 0.0
      %660 = vmatmul.mubr.f32.gmra.mrb[0].mxu0 %v374
      %v661 = vpop.f32.mrb[0].mxu0
      %v662 = vadd.f32 %v259, %v661
      %v663 = vpop.f32.mrb[0].mxu0
      %664 = vmatprep.mubr.f32.mxu0 0.0
      %665 = vmatmul.mubr.f32.gmra.mrb[0].mxu0 %v377
      %v666 = vpop.f32.mrb[0].mxu0
      %v667 = vadd.f32 %v259, %v666
      %v668 = vpop.f32.mrb[0].mxu0
      %669 = vmatprep.mubr.f32.mxu0 0.0
      %670 = vmatmul.mubr.f32.gmra.mrb[0].mxu0 %v380
      %v671 = vpop.f32.mrb[0].mxu0
      %v672 = vadd.f32 %v259, %v671
      %v673 = vpop.f32.mrb[0].mxu0
      %674 = vmatprep.mubr.f32.mxu0 0.0
      %675 = vmatmul.mubr.f32.gmra.mrb[0].mxu0 %v383
      %v676 = vpop.f32.mrb[0].mxu0
      %v677 = vadd.f32 %v259, %v676
      %v678 = vpop.f32.mrb[0].mxu0
      %679 = vmatprep.mubr.f32.mxu0 0.0
      %680 = vmatmul.mubr.f32.gmra.mrb[0].mxu0 %v386
      %v681 = vpop.f32.mrb[0].mxu0
      %v682 = vadd.f32 %v259, %v681
      %v683 = vpop.f32.mrb[0].mxu0
      %684 = vmatprep.mubr.f32.mxu0 0.0
      %685 = vmatmul.mubr.f32.gmra.mrb[0].mxu0 %v389
      %v686 = vpop.f32.mrb[0].mxu0
      %v687 = vadd.f32 %v259, %v686
      %v688 = vpop.f32.mrb[0].mxu0
      %689 = vmatprep.mubr.f32.mxu0 0.0
      %690 = vmatmul.mubr.f32.gmra.mrb[0].mxu0 %v392
      %v691 = vpop.f32.mrb[0].mxu0
      %v692 = vadd.f32 %v259, %v691
      %v693 = vpop.f32.mrb[0].mxu0
      %694 = vmatprep.mubr.f32.mxu0 0.0
      %695 = vmatmul.mubr.f32.gmra.mrb[0].mxu0 %v395
      %v696 = vpop.f32.mrb[0].mxu0
      %v697 = vadd.f32 %v259, %v696
      %v698 = vpop.f32.mrb[0].mxu0
      %699 = vmatprep.mubr.f32.mxu0 0.0
      %700 = vmatmul.mubr.f32.gmra.mrb[0].mxu0 %v398
      %v701 = vpop.f32.mrb[0].mxu0
      %v702 = vadd.f32 %v259, %v701
      %v703 = vpop.f32.mrb[0].mxu0
      %704 = vmatprep.mubr.f32.mxu0 0.0
      %705 = vmatmul.mubr.f32.gmra.mrb[0].mxu0 %v401
      %v706 = vpop.f32.mrb[0].mxu0
      %v707 = vadd.f32 %v259, %v706
      %v708 = vpop.f32.mrb[0].mxu0
      %709 = vmatprep.mubr.f32.mxu0 0.0
      %710 = vmatmul.mubr.f32.gmra.mrb[0].mxu0 %v404
      %v711 = vpop.f32.mrb[0].mxu0
      %v712 = vadd.f32 %v259, %v711
      %v713 = vpop.f32.mrb[0].mxu0
      %714 = vdwg.mxu0
      %s715 = sld [smem:[#allocation2]]
      %v716 = vmax.f32 %v477, 0.0
      %v717 = vmax.f32 %v482, 0.0
      %v718 = vmax.f32 %v487, 0.0
      %v719 = vmax.f32 %v492, 0.0
      %v720 = vmax.f32 %v497, 0.0
      %v721 = vmax.f32 %v502, 0.0
      %v722 = vmax.f32 %v507, 0.0
      %v723 = vmax.f32 %v512, 0.0
      %v724 = vmax.f32 %v517, 0.0
      %v725 = vmax.f32 %v522, 0.0
      %v726 = vmax.f32 %v527, 0.0
      %v727 = vmax.f32 %v532, 0.0
      %v728 = vmax.f32 %v537, 0.0
      %v729 = vmax.f32 %v542, 0.0
      %v730 = vmax.f32 %v547, 0.0
      %v731 = vmax.f32 %v552, 0.0
      %v732 = vmax.f32 %v557, 0.0
      %v733 = vmax.f32 %v562, 0.0
      %v734 = vmax.f32 %v567, 0.0
      %v735 = vmax.f32 %v572, 0.0
      %v736 = vmax.f32 %v577, 0.0
      %v737 = vmax.f32 %v582, 0.0
      %v738 = vmax.f32 %v587, 0.0
      %v739 = vmax.f32 %v592, 0.0
      %v740 = vmax.f32 %v597, 0.0
      %v741 = vmax.f32 %v602, 0.0
      %v742 = vmax.f32 %v607, 0.0
      %v743 = vmax.f32 %v612, 0.0
      %v744 = vmax.f32 %v617, 0.0
      %v745 = vmax.f32 %v622, 0.0
      %v746 = vmax.f32 %v627, 0.0
      %v747 = vmax.f32 %v632, 0.0
      %v748 = vmax.f32 %v637, 0.0
      %v749 = vmax.f32 %v642, 0.0
      %v750 = vmax.f32 %v647, 0.0
      %v751 = vmax.f32 %v652, 0.0
      %v752 = vmax.f32 %v657, 0.0
      %v753 = vmax.f32 %v662, 0.0
      %v754 = vmax.f32 %v667, 0.0
      %v755 = vmax.f32 %v672, 0.0
      %v756 = vmax.f32 %v677, 0.0
      %v757 = vmax.f32 %v682, 0.0
      %v758 = vmax.f32 %v687, 0.0
      %v759 = vmax.f32 %v692, 0.0
      %v760 = vmax.f32 %v697, 0.0
      %v761 = vmax.f32 %v702, 0.0
      %v762 = vmax.f32 %v707, 0.0
      %v763 = vmax.f32 %v712, 0.0
      %v764 = vmin.f32 %v477, 0.0
      %v765 = vmin.f32 %v482, 0.0
      %v766 = vmin.f32 %v487, 0.0
      %v767 = vmin.f32 %v492, 0.0
      %v768 = vmin.f32 %v497, 0.0
      %v769 = vmin.f32 %v502, 0.0
      %v770 = vmin.f32 %v507, 0.0
      %v771 = vmin.f32 %v512, 0.0
      %v772 = vmin.f32 %v517, 0.0
      %v773 = vmin.f32 %v522, 0.0
      %v774 = vmin.f32 %v527, 0.0
      %v775 = vmin.f32 %v532, 0.0
      %v776 = vmin.f32 %v537, 0.0
      %v777 = vmin.f32 %v542, 0.0
      %v778 = vmin.f32 %v547, 0.0
      %v779 = vmin.f32 %v552, 0.0
      %v780 = vmin.f32 %v557, 0.0
      %v781 = vmin.f32 %v562, 0.0
      %v782 = vmin.f32 %v567, 0.0
      %v783 = vmin.f32 %v572, 0.0
      %v784 = vmin.f32 %v577, 0.0
      %v785 = vmin.f32 %v582, 0.0
      %v786 = vmin.f32 %v587, 0.0
      %v787 = vmin.f32 %v592, 0.0
      %v788 = vmin.f32 %v597, 0.0
      %v789 = vmin.f32 %v602, 0.0
      %v790 = vmin.f32 %v607, 0.0
      %v791 = vmin.f32 %v612, 0.0
      %v792 = vmin.f32 %v617, 0.0
      %v793 = vmin.f32 %v622, 0.0
      %v794 = vmin.f32 %v627, 0.0
      %v795 = vmin.f32 %v632, 0.0
      %v796 = vmin.f32 %v637, 0.0
      %v797 = vmin.f32 %v642, 0.0
      %v798 = vmin.f32 %v647, 0.0
      %v799 = vmin.f32 %v652, 0.0
      %v800 = vmin.f32 %v657, 0.0
      %v801 = vmin.f32 %v662, 0.0
      %v802 = vmin.f32 %v667, 0.0
      %v803 = vmin.f32 %v672, 0.0
      %v804 = vmin.f32 %v677, 0.0
      %v805 = vmin.f32 %v682, 0.0
      %v806 = vmin.f32 %v687, 0.0
      %v807 = vmin.f32 %v692, 0.0
      %v808 = vmin.f32 %v697, 0.0
      %v809 = vmin.f32 %v702, 0.0
      %v810 = vmin.f32 %v707, 0.0
      %v811 = vmin.f32 %v712, 0.0
      %v812 = vstv %s715
      %v813 = vmul.f32 %v812, %v764
      %v814 = vmul.f32 %v812, %v765
      %v815 = vmul.f32 %v812, %v766
      %v816 = vmul.f32 %v812, %v767
      %v817 = vmul.f32 %v812, %v768
      %v818 = vmul.f32 %v812, %v769
      %v819 = vmul.f32 %v812, %v770
      %v820 = vmul.f32 %v812, %v771
      %v821 = vmul.f32 %v812, %v772
      %v822 = vmul.f32 %v812, %v773
      %v823 = vmul.f32 %v812, %v774
      %v824 = vmul.f32 %v812, %v775
      %v825 = vmul.f32 %v812, %v776
      %v826 = vmul.f32 %v812, %v777
      %v827 = vmul.f32 %v812, %v778
      %v828 = vmul.f32 %v812, %v779
      %v829 = vmul.f32 %v812, %v780
      %v830 = vmul.f32 %v812, %v781
      %v831 = vmul.f32 %v812, %v782
      %v832 = vmul.f32 %v812, %v783
      %v833 = vmul.f32 %v812, %v784
      %v834 = vmul.f32 %v812, %v785
      %v835 = vmul.f32 %v812, %v786
      %v836 = vmul.f32 %v812, %v787
      %v837 = vmul.f32 %v812, %v788
      %v838 = vmul.f32 %v812, %v789
      %v839 = vmul.f32 %v812, %v790
      %v840 = vmul.f32 %v812, %v791
      %v841 = vmul.f32 %v812, %v792
      %v842 = vmul.f32 %v812, %v793
      %v843 = vmul.f32 %v812, %v794
      %v844 = vmul.f32 %v812, %v795
      %v845 = vmul.f32 %v812, %v796
      %v846 = vmul.f32 %v812, %v797
      %v847 = vmul.f32 %v812, %v798
      %v848 = vmul.f32 %v812, %v799
      %v849 = vmul.f32 %v812, %v800
      %v850 = vmul.f32 %v812, %v801
      %v851 = vmul.f32 %v812, %v802
      %v852 = vmul.f32 %v812, %v803
      %v853 = vmul.f32 %v812, %v804
      %v854 = vmul.f32 %v812, %v805
      %v855 = vmul.f32 %v812, %v806
      %v856 = vmul.f32 %v812, %v807
      %v857 = vmul.f32 %v812, %v808
      %v858 = vmul.f32 %v812, %v809
      %v859 = vmul.f32 %v812, %v810
      %v860 = vmul.f32 %v812, %v811
      %v861 = vadd.f32 %v716, %v813
      %v862 = vadd.f32 %v717, %v814
      %v863 = vadd.f32 %v718, %v815
      %v864 = vadd.f32 %v719, %v816
      %v865 = vadd.f32 %v720, %v817
      %v866 = vadd.f32 %v721, %v818
      %v867 = vadd.f32 %v722, %v819
      %v868 = vadd.f32 %v723, %v820
      %v869 = vadd.f32 %v724, %v821
      %v870 = vadd.f32 %v725, %v822
      %v871 = vadd.f32 %v726, %v823
      %v872 = vadd.f32 %v727, %v824
      %v873 = vadd.f32 %v728, %v825
      %v874 = vadd.f32 %v729, %v826
      %v875 = vadd.f32 %v730, %v827
      %v876 = vadd.f32 %v731, %v828
      %v877 = vadd.f32 %v732, %v829
      %v878 = vadd.f32 %v733, %v830
      %v879 = vadd.f32 %v734, %v831
      %v880 = vadd.f32 %v735, %v832
      %v881 = vadd.f32 %v736, %v833
      %v882 = vadd.f32 %v737, %v834
      %v883 = vadd.f32 %v738, %v835
      %v884 = vadd.f32 %v739, %v836
      %v885 = vadd.f32 %v740, %v837
      %v886 = vadd.f32 %v741, %v838
      %v887 = vadd.f32 %v742, %v839
      %v888 = vadd.f32 %v743, %v840
      %v889 = vadd.f32 %v744, %v841
      %v890 = vadd.f32 %v745, %v842
      %v891 = vadd.f32 %v746, %v843
      %v892 = vadd.f32 %v747, %v844
      %v893 = vadd.f32 %v748, %v845
      %v894 = vadd.f32 %v749, %v846
      %v895 = vadd.f32 %v750, %v847
      %v896 = vadd.f32 %v751, %v848
      %v897 = vadd.f32 %v752, %v849
      %v898 = vadd.f32 %v753, %v850
      %v899 = vadd.f32 %v754, %v851
      %v900 = vadd.f32 %v755, %v852
      %v901 = vadd.f32 %v756, %v853
      %v902 = vadd.f32 %v757, %v854
      %v903 = vadd.f32 %v758, %v855
      %v904 = vadd.f32 %v759, %v856
      %v905 = vadd.f32 %v760, %v857
      %v906 = vadd.f32 %v761, %v858
      %v907 = vadd.f32 %v762, %v859
      %v908 = vadd.f32 %v763, %v860
      %vm909 = vcmask 261120
      %910 = vst.msk [vmem:[%s200] sm:$0xff] %vm909, %v861
      %911 = vst.msk [vmem:[%s200 + $0x8] sm:$0xff] %vm909, %v862
      %912 = vst.msk [vmem:[%s200 + $0x10] sm:$0xff] %vm909, %v863
      %913 = vst.msk [vmem:[%s200 + $0x18] sm:$0xff] %vm909, %v864
      %914 = vst.msk [vmem:[%s200 + $0x20] sm:$0xff] %vm909, %v865
      %915 = vst.msk [vmem:[%s200 + $0x28] sm:$0xff] %vm909, %v866
      %916 = vst.msk [vmem:[%s200 + $0x30] sm:$0xff] %vm909, %v867
      %917 = vst.msk [vmem:[%s200 + $0x38] sm:$0xff] %vm909, %v868
      %918 = vst.msk [vmem:[%s200 + $0x40] sm:$0xff] %vm909, %v869
      %919 = vst.msk [vmem:[%s200 + $0x48] sm:$0xff] %vm909, %v870
      %920 = vst.msk [vmem:[%s200 + $0x50] sm:$0xff] %vm909, %v871
      %921 = vst.msk [vmem:[%s200 + $0x58] sm:$0xff] %vm909, %v872
      %922 = vst.msk [vmem:[%s200 + $0x60] sm:$0xff] %vm909, %v873
      %923 = vst.msk [vmem:[%s200 + $0x68] sm:$0xff] %vm909, %v874
      %924 = vst.msk [vmem:[%s200 + $0x70] sm:$0xff] %vm909, %v875
      %925 = vst.msk [vmem:[%s200 + $0x78] sm:$0xff] %vm909, %v876
      %926 = vst.msk [vmem:[%s200 + $0x80] sm:$0xff] %vm909, %v877
      %927 = vst.msk [vmem:[%s200 + $0x88] sm:$0xff] %vm909, %v878
      %928 = vst.msk [vmem:[%s200 + $0x90] sm:$0xff] %vm909, %v879
      %929 = vst.msk [vmem:[%s200 + $0x98] sm:$0xff] %vm909, %v880
      %930 = vst.msk [vmem:[%s200 + $0xa0] sm:$0xff] %vm909, %v881
      %931 = vst.msk [vmem:[%s200 + $0xa8] sm:$0xff] %vm909, %v882
      %932 = vst.msk [vmem:[%s200 + $0xb0] sm:$0xff] %vm909, %v883
      %933 = vst.msk [vmem:[%s200 + $0xb8] sm:$0xff] %vm909, %v884
      %934 = vst.msk [vmem:[%s200 + $0xc0] sm:$0xff] %vm909, %v885
      %935 = vst.msk [vmem:[%s200 + $0xc8] sm:$0xff] %vm909, %v886
      %936 = vst.msk [vmem:[%s200 + $0xd0] sm:$0xff] %vm909, %v887
      %937 = vst.msk [vmem:[%s200 + $0xd8] sm:$0xff] %vm909, %v888
      %938 = vst.msk [vmem:[%s200 + $0xe0] sm:$0xff] %vm909, %v889
      %939 = vst.msk [vmem:[%s200 + $0xe8] sm:$0xff] %vm909, %v890
      %940 = vst.msk [vmem:[%s200 + $0xf0] sm:$0xff] %vm909, %v891
      %941 = vst.msk [vmem:[%s200 + $0xf8] sm:$0xff] %vm909, %v892
      %942 = vst.msk [vmem:[%s200 + $0x100] sm:$0xff] %vm909, %v893
      %943 = vst.msk [vmem:[%s200 + $0x108] sm:$0xff] %vm909, %v894
      %944 = vst.msk [vmem:[%s200 + $0x110] sm:$0xff] %vm909, %v895
      %945 = vst.msk [vmem:[%s200 + $0x118] sm:$0xff] %vm909, %v896
      %946 = vst.msk [vmem:[%s200 + $0x120] sm:$0xff] %vm909, %v897
      %947 = vst.msk [vmem:[%s200 + $0x128] sm:$0xff] %vm909, %v898
      %948 = vst.msk [vmem:[%s200 + $0x130] sm:$0xff] %vm909, %v899
      %949 = vst.msk [vmem:[%s200 + $0x138] sm:$0xff] %vm909, %v900
      %950 = vst.msk [vmem:[%s200 + $0x140] sm:$0xff] %vm909, %v901
      %951 = vst.msk [vmem:[%s200 + $0x148] sm:$0xff] %vm909, %v902
      %952 = vst.msk [vmem:[%s200 + $0x150] sm:$0xff] %vm909, %v903
      %953 = vst.msk [vmem:[%s200 + $0x158] sm:$0xff] %vm909, %v904
      %954 = vst.msk [vmem:[%s200 + $0x160] sm:$0xff] %vm909, %v905
      %955 = vst.msk [vmem:[%s200 + $0x168] sm:$0xff] %vm909, %v906
      %956 = vst.msk [vmem:[%s200 + $0x170] sm:$0xff] %vm909, %v907
      %957 = vst.msk [vmem:[%s200 + $0x178] sm:$0xff] %vm909, %v908
      %s958 = smul.u32 48, %s16
      %p959 = scmp.lt.s32.totalorder %s958, 143
      %s960 = scalar_select %p959, %s958, 143
      %s961 = smul.addr %s960, 8
      %s962 = scalar_lea.vmem %s4, %s961
      // Predicated region
      $region37: #{_lambda_.5} parent=35 // pred_check
        %p963 = pneg %p123
      $region38: #{_lambda_.5} parent=35 // pred_check_branch
        %965 = sbr.rel (%p963) target = $region40
      $region39: #{_lambda_.5} parent=35 // pred_region
        %s966 = smul.u32 48, %s16
      $region40: #{_lambda_.5} parent=35 // pred_fallthru
        _
    $region36: #{_lambda_.5} parent=5 // pred_fallthru
      _
    %p967 = scmp.le.s32.totalorder 2, %s11
    // Predicated region
    $region41: #{_lambda_.5} parent=5 // pred_check
      %p968 = pneg %p967
    $region42: #{_lambda_.5} parent=5 // pred_check_branch
      %970 = sbr.rel (%p968) target = $region44
    $region43: #{_lambda_.5} parent=5 // pred_region
      %s971 = ssub.s32 %s11, 2
      // Predicated region
      $region45: #{_lambda_.5} parent=43 // pred_check
        %p972 = pneg %p129
      $region46: #{_lambda_.5} parent=43 // pred_check_branch
        %974 = sbr.rel (%p972) target = $region48
      $region47: #{_lambda_.5} parent=43 // pred_region
        %s975 = smul.u32 48, %s17
        %p976 = scmp.lt.s32.totalorder %s975, 143
        %s977 = scalar_select %p976, %s975, 143
        %s978 = smul.addr %s977, 8
        %s979 = scalar_lea.vmem %s4, %s978
      $region48: #{_lambda_.5} parent=43 // pred_fallthru
        _
    $region44: #{_lambda_.5} parent=5 // pred_fallthru
      _
  $region6: #{_lambda_.5} parent=0 // loop_footer
    %s15 = sadd.s32 1, %s11
  $region7: #{_lambda_.5} parent=0 // loop_footer_branch
    %10 = sbr.rel target = $region3
  $region8: #{_lambda_.5} parent=0 // loop_exit
    _

// kernel: squeeze.10
$region0: #{squeeze.10}
  %s0 = inlined_call_operand.vmem [shape: f32[2,12,12,32], index: 0, kind: input, shape index: {}]
  %s1 = inlined_call_operand.vmem [shape: f32[24,384], index: 1, kind: output, shape index: {}]
  %v2 = vld [vmem:[%s0] ss:$4 sm:$0x7]
  %vm3 = vcmask 261120
  %4 = vst.msk [vmem:[%s1] ss:$8 sm:$0x7] %vm3, %v2
  %s5 = scalar_lea.vmem %s0, 16
  %v6 = vld [vmem:[%s5] ss:$4 sm:$0x7]
  %vm7 = vcmask 261120
  %s8 = scalar_lea.vmem %s1, 1
  %9 = vst.msk [vmem:[%s8] ss:$8 sm:$0x7] %vm7, %v6
  %s10 = scalar_lea.vmem %s0, 32
  %v11 = vld [vmem:[%s10] ss:$4 sm:$0x7]
  %vm12 = vcmask 261120
  %s13 = scalar_lea.vmem %s1, 2
  %14 = vst.msk [vmem:[%s13] ss:$8 sm:$0x7] %vm12, %v11
  %s15 = scalar_lea.vmem %s0, 48
  %v16 = vld [vmem:[%s15] ss:$4 sm:$0x7]
  %vm17 = vcmask 261120
  %s18 = scalar_lea.vmem %s1, 3
  %19 = vst.msk [vmem:[%s18] ss:$8 sm:$0x7] %vm17, %v16
  %s20 = scalar_lea.vmem %s0, 64
  %v21 = vld [vmem:[%s20] ss:$4 sm:$0x7]
  %vm22 = vcmask 261120
  %s23 = scalar_lea.vmem %s1, 4
  %24 = vst.msk [vmem:[%s23] ss:$8 sm:$0x7] %vm22, %v21
  %s25 = scalar_lea.vmem %s0, 80
  %v26 = vld [vmem:[%s25] ss:$4 sm:$0x7]
  %vm27 = vcmask 261120
  %s28 = scalar_lea.vmem %s1, 5
  %29 = vst.msk [vmem:[%s28] ss:$8 sm:$0x7] %vm27, %v26
  %s30 = scalar_lea.vmem %s0, 96
  %v31 = vld [vmem:[%s30] ss:$4 sm:$0x7]
  %vm32 = vcmask 261120
  %s33 = scalar_lea.vmem %s1, 6
  %34 = vst.msk [vmem:[%s33] ss:$8 sm:$0x7] %vm32, %v31
  %s35 = scalar_lea.vmem %s0, 112
  %v36 = vld [vmem:[%s35] ss:$4 sm:$0x7]
  %vm37 = vcmask 261120
  %s38 = scalar_lea.vmem %s1, 7
  %39 = vst.msk [vmem:[%s38] ss:$8 sm:$0x7] %vm37, %v36
  %s40 = scalar_lea.vmem %s0, 128
  %v41 = vld [vmem:[%s40] ss:$4 sm:$0x7]
  %vm42 = vcmask 261120
  %s43 = scalar_lea.vmem %s1, 24
  %44 = vst.msk [vmem:[%s43] ss:$8 sm:$0x7] %vm42, %v41
  %s45 = scalar_lea.vmem %s0, 144
  %v46 = vld [vmem:[%s45] ss:$4 sm:$0x7]
  %vm47 = vcmask 261120
  %s48 = scalar_lea.vmem %s1, 25
  %49 = vst.msk [vmem:[%s48] ss:$8 sm:$0x7] %vm47, %v46
  %s50 = scalar_lea.vmem %s0, 160
  %v51 = vld [vmem:[%s50] ss:$4 sm:$0x7]
  %vm52 = vcmask 261120
  %s53 = scalar_lea.vmem %s1, 26
  %54 = vst.msk [vmem:[%s53] ss:$8 sm:$0x7] %vm52, %v51
  %s55 = scalar_lea.vmem %s0, 176
  %v56 = vld [vmem:[%s55] ss:$4 sm:$0x7]
  %vm57 = vcmask 261120
  %s58 = scalar_lea.vmem %s1, 27
  %59 = vst.msk [vmem:[%s58] ss:$8 sm:$0x7] %vm57, %v56
  %s60 = scalar_lea.vmem %s0, 192
  %v61 = vld [vmem:[%s60] ss:$4 sm:$0x7]
  %vm62 = vcmask 261120
  %s63 = scalar_lea.vmem %s1, 28
  %64 = vst.msk [vmem:[%s63] ss:$8 sm:$0x7] %vm62, %v61
  %s65 = scalar_lea.vmem %s0, 208
  %v66 = vld [vmem:[%s65] ss:$4 sm:$0x7]
  %vm67 = vcmask 261120
  %s68 = scalar_lea.vmem %s1, 29
  %69 = vst.msk [vmem:[%s68] ss:$8 sm:$0x7] %vm67, %v66
  %s70 = scalar_lea.vmem %s0, 224
  %v71 = vld [vmem:[%s70] ss:$4 sm:$0x7]
  %vm72 = vcmask 261120
  %s73 = scalar_lea.vmem %s1, 30
  %74 = vst.msk [vmem:[%s73] ss:$8 sm:$0x7] %vm72, %v71
  %s75 = scalar_lea.vmem %s0, 240
  %v76 = vld [vmem:[%s75] ss:$4 sm:$0x7]
  %vm77 = vcmask 261120
  %s78 = scalar_lea.vmem %s1, 31
  %79 = vst.msk [vmem:[%s78] ss:$8 sm:$0x7] %vm77, %v76
  %s80 = scalar_lea.vmem %s0, 256
  %v81 = vld [vmem:[%s80] ss:$4 sm:$0x7]
  %vm82 = vcmask 261120
  %s83 = scalar_lea.vmem %s1, 48
  %84 = vst.msk [vmem:[%s83] ss:$8 sm:$0x7] %vm82, %v81
  %s85 = scalar_lea.vmem %s0, 272
  %v86 = vld [vmem:[%s85] ss:$4 sm:$0x7]
  %vm87 = vcmask 261120
  %s88 = scalar_lea.vmem %s1, 49
  %89 = vst.msk [vmem:[%s88] ss:$8 sm:$0x7] %vm87, %v86
  %s90 = scalar_lea.vmem %s0, 288
  %v91 = vld [vmem:[%s90] ss:$4 sm:$0x7]
  %vm92 = vcmask 261120
  %s93 = scalar_lea.vmem %s1, 50
  %94 = vst.msk [vmem:[%s93] ss:$8 sm:$0x7] %vm92, %v91
  %s95 = scalar_lea.vmem %s0, 304
  %v96 = vld [vmem:[%s95] ss:$4 sm:$0x7]
  %vm97 = vcmask 261120
  %s98 = scalar_lea.vmem %s1, 51
  %99 = vst.msk [vmem:[%s98] ss:$8 sm:$0x7] %vm97, %v96
  %s100 = scalar_lea.vmem %s0, 320
  %v101 = vld [vmem:[%s100] ss:$4 sm:$0x7]
  %vm102 = vcmask 261120
  %s103 = scalar_lea.vmem %s1, 52
  %104 = vst.msk [vmem:[%s103] ss:$8 sm:$0x7] %vm102, %v101
  %s105 = scalar_lea.vmem %s0, 336
  %v106 = vld [vmem:[%s105] ss:$4 sm:$0x7]
  %vm107 = vcmask 261120
  %s108 = scalar_lea.vmem %s1, 53
  %109 = vst.msk [vmem:[%s108] ss:$8 sm:$0x7] %vm107, %v106
  %s110 = scalar_lea.vmem %s0, 352
  %v111 = vld [vmem:[%s110] ss:$4 sm:$0x7]
  %vm112 = vcmask 261120
  %s113 = scalar_lea.vmem %s1, 54
  %114 = vst.msk [vmem:[%s113] ss:$8 sm:$0x7] %vm112, %v111
  %s115 = scalar_lea.vmem %s0, 368
  %v116 = vld [vmem:[%s115] ss:$4 sm:$0x7]
  %vm117 = vcmask 261120
  %s118 = scalar_lea.vmem %s1, 55
  %119 = vst.msk [vmem:[%s118] ss:$8 sm:$0x7] %vm117, %v116
  %s120 = scalar_lea.vmem %s0, 3
  %s121 = smov 3
  %v122 = vld [vmem:[%s120] ss:$16 sm:%s121]
  %s123 = scalar_lea.vmem %s0, 3
  %s124 = smov 12
  %v125 = vld [vmem:[%s123] ss:$16 sm:%s124]
  %vm126 = vcmask 1043458
  %v127 = vsel %vm126, %v125, %v122
  %s128 = scalar_lea.vmem %s0, 3
  %s129 = smov 48
  %v130 = vld [vmem:[%s128] ss:$16 sm:%s129]
  %vm131 = vcmask 1045508
  %v132 = vsel %vm131, %v130, %v127
  %s133 = scalar_lea.vmem %s0, 3
  %s134 = smov 192
  %v135 = vld [vmem:[%s133] ss:$16 sm:%s134]
  %vm136 = vcmask 1047558
  %v137 = vsel %vm136, %v135, %v132
  %138 = vrot.lane.b32.xlu0 %v137, 96
  %v139 = vpop.permute.xlu0 %138
  %vm140 = vcmask 1048320
  %141 = vst.msk [vmem:[%s1] sm:$0xff] %vm140, %v139
  %s142 = scalar_lea.vmem %s0, 135
  %s143 = smov 3
  %v144 = vld [vmem:[%s142] ss:$16 sm:%s143]
  %s145 = scalar_lea.vmem %s0, 135
  %s146 = smov 12
  %v147 = vld [vmem:[%s145] ss:$16 sm:%s146]
  %vm148 = vcmask 1043458
  %v149 = vsel %vm148, %v147, %v144
  %s150 = scalar_lea.vmem %s0, 135
  %s151 = smov 48
  %v152 = vld [vmem:[%s150] ss:$16 sm:%s151]
  %vm153 = vcmask 1045508
  %v154 = vsel %vm153, %v152, %v149
  %s155 = scalar_lea.vmem %s0, 135
  %s156 = smov 192
  %v157 = vld [vmem:[%s155] ss:$16 sm:%s156]
  %vm158 = vcmask 1047558
  %v159 = vsel %vm158, %v157, %v154
  %160 = vrot.lane.b32.xlu0 %v159, 96
  %v161 = vpop.permute.xlu0 %160
  %vm162 = vcmask 1048320
  %s163 = scalar_lea.vmem %s1, 32
  %164 = vst.msk [vmem:[%s163] sm:$0xff] %vm162, %v161
  %s165 = scalar_lea.vmem %s0, 267
  %s166 = smov 3
  %v167 = vld [vmem:[%s165] ss:$16 sm:%s166]
  %s168 = scalar_lea.vmem %s0, 267
  %s169 = smov 12
  %v170 = vld [vmem:[%s168] ss:$16 sm:%s169]
  %vm171 = vcmask 1043458
  %v172 = vsel %vm171, %v170, %v167
  %s173 = scalar_lea.vmem %s0, 267
  %s174 = smov 48
  %v175 = vld [vmem:[%s173] ss:$16 sm:%s174]
  %vm176 = vcmask 1045508
  %v177 = vsel %vm176, %v175, %v172
  %s178 = scalar_lea.vmem %s0, 267
  %s179 = smov 192
  %v180 = vld [vmem:[%s178] ss:$16 sm:%s179]
  %vm181 = vcmask 1047558
  %v182 = vsel %vm181, %v180, %v177
  %183 = vrot.lane.b32.xlu0 %v182, 96
  %v184 = vpop.permute.xlu0 %183
  %vm185 = vcmask 1048320
  %s186 = scalar_lea.vmem %s1, 64
  %187 = vst.msk [vmem:[%s186] sm:$0xff] %vm185, %v184
  %s188 = scalar_lea.vmem %s0, 7
  %s189 = smov 3
  %v190 = vld [vmem:[%s188] ss:$16 sm:%s189]
  %s191 = scalar_lea.vmem %s0, 7
  %s192 = smov 12
  %v193 = vld [vmem:[%s191] ss:$16 sm:%s192]
  %vm194 = vcmask 1043458
  %v195 = vsel %vm194, %v193, %v190
  %s196 = scalar_lea.vmem %s0, 7
  %s197 = smov 48
  %v198 = vld [vmem:[%s196] ss:$16 sm:%s197]
  %vm199 = vcmask 1045508
  %v200 = vsel %vm199, %v198, %v195
  %s201 = scalar_lea.vmem %s0, 7
  %s202 = smov 192
  %v203 = vld [vmem:[%s201] ss:$16 sm:%s202]
  %vm204 = vcmask 1047558
  %v205 = vsel %vm204, %v203, %v200
  %206 = vrot.lane.b32.xlu0 %v205, 96
  %v207 = vpop.permute.xlu0 %206
  %vm208 = vcmask 1048320
  %s209 = scalar_lea.vmem %s1, 8
  %210 = vst.msk [vmem:[%s209] sm:$0xff] %vm208, %v207
  %s211 = scalar_lea.vmem %s0, 139
  %s212 = smov 3
  %v213 = vld [vmem:[%s211] ss:$16 sm:%s212]
  %s214 = scalar_lea.vmem %s0, 139
  %s215 = smov 12
  %v216 = vld [vmem:[%s214] ss:$16 sm:%s215]
  %vm217 = vcmask 1043458
  %v218 = vsel %vm217, %v216, %v213
  %s219 = scalar_lea.vmem %s0, 139
  %s220 = smov 48
  %v221 = vld [vmem:[%s219] ss:$16 sm:%s220]
  %vm222 = vcmask 1045508
  %v223 = vsel %vm222, %v221, %v218
  %s224 = scalar_lea.vmem %s0, 139
  %s225 = smov 192
  %v226 = vld [vmem:[%s224] ss:$16 sm:%s225]
  %vm227 = vcmask 1047558
  %v228 = vsel %vm227, %v226, %v223
  %229 = vrot.lane.b32.xlu0 %v228, 96
  %v230 = vpop.permute.xlu0 %229
  %vm231 = vcmask 1048320
  %s232 = scalar_lea.vmem %s1, 40
  %233 = vst.msk [vmem:[%s232] sm:$0xff] %vm231, %v230
  %s234 = scalar_lea.vmem %s0, 11
  %s235 = smov 3
  %v236 = vld [vmem:[%s234] ss:$16 sm:%s235]
  %s237 = scalar_lea.vmem %s0, 11
  %s238 = smov 12
  %v239 = vld [vmem:[%s237] ss:$16 sm:%s238]
  %vm240 = vcmask 1043458
  %v241 = vsel %vm240, %v239, %v236
  %s242 = scalar_lea.vmem %s0, 11
  %s243 = smov 48
  %v244 = vld [vmem:[%s242] ss:$16 sm:%s243]
  %vm245 = vcmask 1045508
  %v246 = vsel %vm245, %v244, %v241
  %s247 = scalar_lea.vmem %s0, 11
  %s248 = smov 192
  %v249 = vld [vmem:[%s247] ss:$16 sm:%s248]
  %vm250 = vcmask 1047558
  %v251 = vsel %vm250, %v249, %v246
  %252 = vrot.lane.b32.xlu0 %v251, 96
  %v253 = vpop.permute.xlu0 %252
  %vm254 = vcmask 1048320
  %s255 = scalar_lea.vmem %s1, 16
  %256 = vst.msk [vmem:[%s255] sm:$0xff] %vm254, %v253
  %s257 = scalar_lea.vmem %s0, 259
  %s258 = smov 3
  %v259 = vld [vmem:[%s257] ss:$16 sm:%s258]
  %s260 = scalar_lea.vmem %s0, 259
  %s261 = smov 12
  %v262 = vld [vmem:[%s260] ss:$16 sm:%s261]
  %vm263 = vcmask 1043458
  %v264 = vsel %vm263, %v262, %v259
  %s265 = scalar_lea.vmem %s0, 259
  %s266 = smov 48
  %v267 = vld [vmem:[%s265] ss:$16 sm:%s266]
  %vm268 = vcmask 1045508
  %v269 = vsel %vm268, %v267, %v264
  %s270 = scalar_lea.vmem %s0, 259
  %s271 = smov 192
  %v272 = vld [vmem:[%s270] ss:$16 sm:%s271]
  %vm273 = vcmask 1047558
  %v274 = vsel %vm273, %v272, %v269
  %275 = vrot.lane.b32.xlu0 %v274, 96
  %v276 = vpop.permute.xlu0 %275
  %vm277 = vcmask 1048320
  %s278 = scalar_lea.vmem %s1, 48
  %279 = vst.msk [vmem:[%s278] sm:$0xff] %vm277, %v276
  %s280 = scalar_lea.vmem %s0, 131
  %s281 = smov 3
  %v282 = vld [vmem:[%s280] ss:$16 sm:%s281]
  %s283 = scalar_lea.vmem %s0, 131
  %s284 = smov 12
  %v285 = vld [vmem:[%s283] ss:$16 sm:%s284]
  %vm286 = vcmask 1043458
  %v287 = vsel %vm286, %v285, %v282
  %s288 = scalar_lea.vmem %s0, 131
  %s289 = smov 48
  %v290 = vld [vmem:[%s288] ss:$16 sm:%s289]
  %vm291 = vcmask 1045508
  %v292 = vsel %vm291, %v290, %v287
  %s293 = scalar_lea.vmem %s0, 131
  %s294 = smov 192
  %v295 = vld [vmem:[%s293] ss:$16 sm:%s294]
  %vm296 = vcmask 1047558
  %v297 = vsel %vm296, %v295, %v292
  %298 = vrot.lane.b32.xlu0 %v297, 96
  %v299 = vpop.permute.xlu0 %298
  %vm300 = vcmask 1048320
  %s301 = scalar_lea.vmem %s1, 24
  %302 = vst.msk [vmem:[%s301] sm:$0xff] %vm300, %v299
  %s303 = scalar_lea.vmem %s0, 263
  %s304 = smov 3
  %v305 = vld [vmem:[%s303] ss:$16 sm:%s304]
  %s306 = scalar_lea.vmem %s0, 263
  %s307 = smov 12
  %v308 = vld [vmem:[%s306] ss:$16 sm:%s307]
  %vm309 = vcmask 1043458
  %v310 = vsel %vm309, %v308, %v305
  %s311 = scalar_lea.vmem %s0, 263
  %s312 = smov 48
  %v313 = vld [vmem:[%s311] ss:$16 sm:%s312]
  %vm314 = vcmask 1045508
  %v315 = vsel %vm314, %v313, %v310
  %s316 = scalar_lea.vmem %s0, 263
  %s317 = smov 192
  %v318 = vld [vmem:[%s316] ss:$16 sm:%s317]
  %vm319 = vcmask 1047558
  %v320 = vsel %vm319, %v318, %v315
  %321 = vrot.lane.b32.xlu0 %v320, 96
  %v322 = vpop.permute.xlu0 %321
  %vm323 = vcmask 1048320
  %s324 = scalar_lea.vmem %s1, 56
  %325 = vst.msk [vmem:[%s324] sm:$0xff] %vm323, %v322
  %s326 = scalar_lea.vmem %s0, 2
  %s327 = smov 3
  %v328 = vld [vmem:[%s326] ss:$16 sm:%s327]
  %s329 = scalar_lea.vmem %s0, 2
  %s330 = smov 12
  %v331 = vld [vmem:[%s329] ss:$16 sm:%s330]
  %vm332 = vcmask 1043458
  %v333 = vsel %vm332, %v331, %v328
  %s334 = scalar_lea.vmem %s0, 2
  %s335 = smov 48
  %v336 = vld [vmem:[%s334] ss:$16 sm:%s335]
  %vm337 = vcmask 1045508
  %v338 = vsel %vm337, %v336, %v333
  %s339 = scalar_lea.vmem %s0, 2
  %s340 = smov 192
  %v341 = vld [vmem:[%s339] ss:$16 sm:%s340]
  %vm342 = vcmask 1047558
  %v343 = vsel %vm342, %v341, %v338
  %344 = vrot.lane.b32.xlu0 %v343, 64
  %v345 = vpop.permute.xlu0 %344
  %vm346 = vcmask 785920
  %347 = vst.msk [vmem:[%s1] sm:$0xff] %vm346, %v345
  %s348 = scalar_lea.vmem %s0, 134
  %s349 = smov 3
  %v350 = vld [vmem:[%s348] ss:$16 sm:%s349]
  %s351 = scalar_lea.vmem %s0, 134
  %s352 = smov 12
  %v353 = vld [vmem:[%s351] ss:$16 sm:%s352]
  %vm354 = vcmask 1043458
  %v355 = vsel %vm354, %v353, %v350
  %s356 = scalar_lea.vmem %s0, 134
  %s357 = smov 48
  %v358 = vld [vmem:[%s356] ss:$16 sm:%s357]
  %vm359 = vcmask 1045508
  %v360 = vsel %vm359, %v358, %v355
  %s361 = scalar_lea.vmem %s0, 134
  %s362 = smov 192
  %v363 = vld [vmem:[%s361] ss:$16 sm:%s362]
  %vm364 = vcmask 1047558
  %v365 = vsel %vm364, %v363, %v360
  %366 = vrot.lane.b32.xlu0 %v365, 64
  %v367 = vpop.permute.xlu0 %366
  %vm368 = vcmask 785920
  %s369 = scalar_lea.vmem %s1, 32
  %370 = vst.msk [vmem:[%s369] sm:$0xff] %vm368, %v367
  %s371 = scalar_lea.vmem %s0, 266
  %s372 = smov 3
  %v373 = vld [vmem:[%s371] ss:$16 sm:%s372]
  %s374 = scalar_lea.vmem %s0, 266
  %s375 = smov 12
  %v376 = vld [vmem:[%s374] ss:$16 sm:%s375]
  %vm377 = vcmask 1043458
  %v378 = vsel %vm377, %v376, %v373
  %s379 = scalar_lea.vmem %s0, 266
  %s380 = smov 48
  %v381 = vld [vmem:[%s379] ss:$16 sm:%s380]
  %vm382 = vcmask 1045508
  %v383 = vsel %vm382, %v381, %v378
  %s384 = scalar_lea.vmem %s0, 266
  %s385 = smov 192
  %v386 = vld [vmem:[%s384] ss:$16 sm:%s385]
  %vm387 = vcmask 1047558
  %v388 = vsel %vm387, %v386, %v383
  %389 = vrot.lane.b32.xlu0 %v388, 64
  %v390 = vpop.permute.xlu0 %389
  %vm391 = vcmask 785920
  %s392 = scalar_lea.vmem %s1, 64
  %393 = vst.msk [vmem:[%s392] sm:$0xff] %vm391, %v390
  %s394 = scalar_lea.vmem %s0, 6
  %s395 = smov 3
  %v396 = vld [vmem:[%s394] ss:$16 sm:%s395]
  %s397 = scalar_lea.vmem %s0, 6
  %s398 = smov 12
  %v399 = vld [vmem:[%s397] ss:$16 sm:%s398]
  %vm400 = vcmask 1043458
  %v401 = vsel %vm400, %v399, %v396
  %s402 = scalar_lea.vmem %s0, 6
  %s403 = smov 48
  %v404 = vld [vmem:[%s402] ss:$16 sm:%s403]
  %vm405 = vcmask 1045508
  %v406 = vsel %vm405, %v404, %v401
  %s407 = scalar_lea.vmem %s0, 6
  %s408 = smov 192
  %v409 = vld [vmem:[%s407] ss:$16 sm:%s408]
  %vm410 = vcmask 1047558
  %v411 = vsel %vm410, %v409, %v406
  %412 = vrot.lane.b32.xlu0 %v411, 64
  %v413 = vpop.permute.xlu0 %412
  %vm414 = vcmask 785920
  %s415 = scalar_lea.vmem %s1, 8
  %416 = vst.msk [vmem:[%s415] sm:$0xff] %vm414, %v413
  %s417 = scalar_lea.vmem %s0, 138
  %s418 = smov 3
  %v419 = vld [vmem:[%s417] ss:$16 sm:%s418]
  %s420 = scalar_lea.vmem %s0, 138
  %s421 = smov 12
  %v422 = vld [vmem:[%s420] ss:$16 sm:%s421]
  %vm423 = vcmask 1043458
  %v424 = vsel %vm423, %v422, %v419
  %s425 = scalar_lea.vmem %s0, 138
  %s426 = smov 48
  %v427 = vld [vmem:[%s425] ss:$16 sm:%s426]
  %vm428 = vcmask 1045508
  %v429 = vsel %vm428, %v427, %v424
  %s430 = scalar_lea.vmem %s0, 138
  %s431 = smov 192
  %v432 = vld [vmem:[%s430] ss:$16 sm:%s431]
  %vm433 = vcmask 1047558
  %v434 = vsel %vm433, %v432, %v429
  %435 = vrot.lane.b32.xlu0 %v434, 64
  %v436 = vpop.permute.xlu0 %435
  %vm437 = vcmask 785920
  %s438 = scalar_lea.vmem %s1, 40
  %439 = vst.msk [vmem:[%s438] sm:$0xff] %vm437, %v436
  %s440 = scalar_lea.vmem %s0, 10
  %s441 = smov 3
  %v442 = vld [vmem:[%s440] ss:$16 sm:%s441]
  %s443 = scalar_lea.vmem %s0, 10
  %s444 = smov 12
  %v445 = vld [vmem:[%s443] ss:$16 sm:%s444]
  %vm446 = vcmask 1043458
  %v447 = vsel %vm446, %v445, %v442
  %s448 = scalar_lea.vmem %s0, 10
  %s449 = smov 48
  %v450 = vld [vmem:[%s448] ss:$16 sm:%s449]
  %vm451 = vcmask 1045508
  %v452 = vsel %vm451, %v450, %v447
  %s453 = scalar_lea.vmem %s0, 10
  %s454 = smov 192
  %v455 = vld [vmem:[%s453] ss:$16 sm:%s454]
  %vm456 = vcmask 1047558
  %v457 = vsel %vm456, %v455, %v452
  %458 = vrot.lane.b32.xlu0 %v457, 64
  %v459 = vpop.permute.xlu0 %458
  %vm460 = vcmask 785920
  %s461 = scalar_lea.vmem %s1, 16
  %462 = vst.msk [vmem:[%s461] sm:$0xff] %vm460, %v459
  %s463 = scalar_lea.vmem %s0, 258
  %s464 = smov 3
  %v465 = vld [vmem:[%s463] ss:$16 sm:%s464]
  %s466 = scalar_lea.vmem %s0, 258
  %s467 = smov 12
  %v468 = vld [vmem:[%s466] ss:$16 sm:%s467]
  %vm469 = vcmask 1043458
  %v470 = vsel %vm469, %v468, %v465
  %s471 = scalar_lea.vmem %s0, 258
  %s472 = smov 48
  %v473 = vld [vmem:[%s471] ss:$16 sm:%s472]
  %vm474 = vcmask 1045508
  %v475 = vsel %vm474, %v473, %v470
  %s476 = scalar_lea.vmem %s0, 258
  %s477 = smov 192
  %v478 = vld [vmem:[%s476] ss:$16 sm:%s477]
  %vm479 = vcmask 1047558
  %v480 = vsel %vm479, %v478, %v475
  %481 = vrot.lane.b32.xlu0 %v480, 64
  %v482 = vpop.permute.xlu0 %481
  %vm483 = vcmask 785920
  %s484 = scalar_lea.vmem %s1, 48
  %485 = vst.msk [vmem:[%s484] sm:$0xff] %vm483, %v482
  %s486 = scalar_lea.vmem %s0, 130
  %s487 = smov 3
  %v488 = vld [vmem:[%s486] ss:$16 sm:%s487]
  %s489 = scalar_lea.vmem %s0, 130
  %s490 = smov 12
  %v491 = vld [vmem:[%s489] ss:$16 sm:%s490]
  %vm492 = vcmask 1043458
  %v493 = vsel %vm492, %v491, %v488
  %s494 = scalar_lea.vmem %s0, 130
  %s495 = smov 48
  %v496 = vld [vmem:[%s494] ss:$16 sm:%s495]
  %vm497 = vcmask 1045508
  %v498 = vsel %vm497, %v496, %v493
  %s499 = scalar_lea.vmem %s0, 130
  %s500 = smov 192
  %v501 = vld [vmem:[%s499] ss:$16 sm:%s500]
  %vm502 = vcmask 1047558
  %v503 = vsel %vm502, %v501, %v498
  %504 = vrot.lane.b32.xlu0 %v503, 64
  %v505 = vpop.permute.xlu0 %504
  %vm506 = vcmask 785920
  %s507 = scalar_lea.vmem %s1, 24
  %508 = vst.msk [vmem:[%s507] sm:$0xff] %vm506, %v505
  %s509 = scalar_lea.vmem %s0, 262
  %s510 = smov 3
  %v511 = vld [vmem:[%s509] ss:$16 sm:%s510]
  %s512 = scalar_lea.vmem %s0, 262
  %s513 = smov 12
  %v514 = vld [vmem:[%s512] ss:$16 sm:%s513]
  %vm515 = vcmask 1043458
  %v516 = vsel %vm515, %v514, %v511
  %s517 = scalar_lea.vmem %s0, 262
  %s518 = smov 48
  %v519 = vld [vmem:[%s517] ss:$16 sm:%s518]
  %vm520 = vcmask 1045508
  %v521 = vsel %vm520, %v519, %v516
  %s522 = scalar_lea.vmem %s0, 262
  %s523 = smov 192
  %v524 = vld [vmem:[%s522] ss:$16 sm:%s523]
  %vm525 = vcmask 1047558
  %v526 = vsel %vm525, %v524, %v521
  %527 = vrot.lane.b32.xlu0 %v526, 64
  %v528 = vpop.permute.xlu0 %527
  %vm529 = vcmask 785920
  %s530 = scalar_lea.vmem %s1, 56
  %531 = vst.msk [vmem:[%s530] sm:$0xff] %vm529, %v528
  %s532 = scalar_lea.vmem %s0, 1
  %s533 = smov 3
  %v534 = vld [vmem:[%s532] ss:$16 sm:%s533]
  %s535 = scalar_lea.vmem %s0, 1
  %s536 = smov 12
  %v537 = vld [vmem:[%s535] ss:$16 sm:%s536]
  %vm538 = vcmask 1043458
  %v539 = vsel %vm538, %v537, %v534
  %s540 = scalar_lea.vmem %s0, 1
  %s541 = smov 48
  %v542 = vld [vmem:[%s540] ss:$16 sm:%s541]
  %vm543 = vcmask 1045508
  %v544 = vsel %vm543, %v542, %v539
  %s545 = scalar_lea.vmem %s0, 1
  %s546 = smov 192
  %v547 = vld [vmem:[%s545] ss:$16 sm:%s546]
  %vm548 = vcmask 1047558
  %v549 = vsel %vm548, %v547, %v544
  %550 = vrot.lane.b32.xlu0 %v549, 32
  %v551 = vpop.permute.xlu0 %550
  %vm552 = vcmask 523520
  %553 = vst.msk [vmem:[%s1] sm:$0xff] %vm552, %v551
  %s554 = scalar_lea.vmem %s0, 133
  %s555 = smov 3
  %v556 = vld [vmem:[%s554] ss:$16 sm:%s555]
  %s557 = scalar_lea.vmem %s0, 133
  %s558 = smov 12
  %v559 = vld [vmem:[%s557] ss:$16 sm:%s558]
  %vm560 = vcmask 1043458
  %v561 = vsel %vm560, %v559, %v556
  %s562 = scalar_lea.vmem %s0, 133
  %s563 = smov 48
  %v564 = vld [vmem:[%s562] ss:$16 sm:%s563]
  %vm565 = vcmask 1045508
  %v566 = vsel %vm565, %v564, %v561
  %s567 = scalar_lea.vmem %s0, 133
  %s568 = smov 192
  %v569 = vld [vmem:[%s567] ss:$16 sm:%s568]
  %vm570 = vcmask 1047558
  %v571 = vsel %vm570, %v569, %v566
  %572 = vrot.lane.b32.xlu0 %v571, 32
  %v573 = vpop.permute.xlu0 %572
  %vm574 = vcmask 523520
  %s575 = scalar_lea.vmem %s1, 32
  %576 = vst.msk [vmem:[%s575] sm:$0xff] %vm574, %v573
  %s577 = scalar_lea.vmem %s0, 265
  %s578 = smov 3
  %v579 = vld [vmem:[%s577] ss:$16 sm:%s578]
  %s580 = scalar_lea.vmem %s0, 265
  %s581 = smov 12
  %v582 = vld [vmem:[%s580] ss:$16 sm:%s581]
  %vm583 = vcmask 1043458
  %v584 = vsel %vm583, %v582, %v579
  %s585 = scalar_lea.vmem %s0, 265
  %s586 = smov 48
  %v587 = vld [vmem:[%s585] ss:$16 sm:%s586]
  %vm588 = vcmask 1045508
  %v589 = vsel %vm588, %v587, %v584
  %s590 = scalar_lea.vmem %s0, 265
  %s591 = smov 192
  %v592 = vld [vmem:[%s590] ss:$16 sm:%s591]
  %vm593 = vcmask 1047558
  %v594 = vsel %vm593, %v592, %v589
  %595 = vrot.lane.b32.xlu0 %v594, 32
  %v596 = vpop.permute.xlu0 %595
  %vm597 = vcmask 523520
  %s598 = scalar_lea.vmem %s1, 64
  %599 = vst.msk [vmem:[%s598] sm:$0xff] %vm597, %v596
  %s600 = scalar_lea.vmem %s0, 5
  %s601 = smov 3
  %v602 = vld [vmem:[%s600] ss:$16 sm:%s601]
  %s603 = scalar_lea.vmem %s0, 5
  %s604 = smov 12
  %v605 = vld [vmem:[%s603] ss:$16 sm:%s604]
  %vm606 = vcmask 1043458
  %v607 = vsel %vm606, %v605, %v602
  %s608 = scalar_lea.vmem %s0, 5
  %s609 = smov 48
  %v610 = vld [vmem:[%s608] ss:$16 sm:%s609]
  %vm611 = vcmask 1045508
  %v612 = vsel %vm611, %v610, %v607
  %s613 = scalar_lea.vmem %s0, 5
  %s614 = smov 192
  %v615 = vld [vmem:[%s613] ss:$16 sm:%s614]
  %vm616 = vcmask 1047558
  %v617 = vsel %vm616, %v615, %v612
  %618 = vrot.lane.b32.xlu0 %v617, 32
  %v619 = vpop.permute.xlu0 %618
  %vm620 = vcmask 523520
  %s621 = scalar_lea.vmem %s1, 8
  %622 = vst.msk [vmem:[%s621] sm:$0xff] %vm620, %v619
  %s623 = scalar_lea.vmem %s0, 137
  %s624 = smov 3
  %v625 = vld [vmem:[%s623] ss:$16 sm:%s624]
  %s626 = scalar_lea.vmem %s0, 137
  %s627 = smov 12
  %v628 = vld [vmem:[%s626] ss:$16 sm:%s627]
  %vm629 = vcmask 1043458
  %v630 = vsel %vm629, %v628, %v625
  %s631 = scalar_lea.vmem %s0, 137
  %s632 = smov 48
  %v633 = vld [vmem:[%s631] ss:$16 sm:%s632]
  %vm634 = vcmask 1045508
  %v635 = vsel %vm634, %v633, %v630
  %s636 = scalar_lea.vmem %s0, 137
  %s637 = smov 192
  %v638 = vld [vmem:[%s636] ss:$16 sm:%s637]
  %vm639 = vcmask 1047558
  %v640 = vsel %vm639, %v638, %v635
  %641 = vrot.lane.b32.xlu0 %v640, 32
  %v642 = vpop.permute.xlu0 %641
  %vm643 = vcmask 523520
  %s644 = scalar_lea.vmem %s1, 40
  %645 = vst.msk [vmem:[%s644] sm:$0xff] %vm643, %v642
  %s646 = scalar_lea.vmem %s0, 9
  %s647 = smov 3
  %v648 = vld [vmem:[%s646] ss:$16 sm:%s647]
  %s649 = scalar_lea.vmem %s0, 9
  %s650 = smov 12
  %v651 = vld [vmem:[%s649] ss:$16 sm:%s650]
  %vm652 = vcmask 1043458
  %v653 = vsel %vm652, %v651, %v648
  %s654 = scalar_lea.vmem %s0, 9
  %s655 = smov 48
  %v656 = vld [vmem:[%s654] ss:$16 sm:%s655]
  %vm657 = vcmask 1045508
  %v658 = vsel %vm657, %v656, %v653
  %s659 = scalar_lea.vmem %s0, 9
  %s660 = smov 192
  %v661 = vld [vmem:[%s659] ss:$16 sm:%s660]
  %vm662 = vcmask 1047558
  %v663 = vsel %vm662, %v661, %v658
  %664 = vrot.lane.b32.xlu0 %v663, 32
  %v665 = vpop.permute.xlu0 %664
  %vm666 = vcmask 523520
  %s667 = scalar_lea.vmem %s1, 16
  %668 = vst.msk [vmem:[%s667] sm:$0xff] %vm666, %v665
  %s669 = scalar_lea.vmem %s0, 257
  %s670 = smov 3
  %v671 = vld [vmem:[%s669] ss:$16 sm:%s670]
  %s672 = scalar_lea.vmem %s0, 257
  %s673 = smov 12
  %v674 = vld [vmem:[%s672] ss:$16 sm:%s673]
  %vm675 = vcmask 1043458
  %v676 = vsel %vm675, %v674, %v671
  %s677 = scalar_lea.vmem %s0, 257
  %s678 = smov 48
  %v679 = vld [vmem:[%s677] ss:$16 sm:%s678]
  %vm680 = vcmask 1045508
  %v681 = vsel %vm680, %v679, %v676
  %s682 = scalar_lea.vmem %s0, 257
  %s683 = smov 192
  %v684 = vld [vmem:[%s682] ss:$16 sm:%s683]
  %vm685 = vcmask 1047558
  %v686 = vsel %vm685, %v684, %v681
  %687 = vrot.lane.b32.xlu0 %v686, 32
  %v688 = vpop.permute.xlu0 %687
  %vm689 = vcmask 523520
  %s690 = scalar_lea.vmem %s1, 48
  %691 = vst.msk [vmem:[%s690] sm:$0xff] %vm689, %v688
  %s692 = scalar_lea.vmem %s0, 129
  %s693 = smov 3
  %v694 = vld [vmem:[%s692] ss:$16 sm:%s693]
  %s695 = scalar_lea.vmem %s0, 129
  %s696 = smov 12
  %v697 = vld [vmem:[%s695] ss:$16 sm:%s696]
  %vm698 = vcmask 1043458
  %v699 = vsel %vm698, %v697, %v694
  %s700 = scalar_lea.vmem %s0, 129
  %s701 = smov 48
  %v702 = vld [vmem:[%s700] ss:$16 sm:%s701]
  %vm703 = vcmask 1045508
  %v704 = vsel %vm703, %v702, %v699
  %s705 = scalar_lea.vmem %s0, 129
  %s706 = smov 192
  %v707 = vld [vmem:[%s705] ss:$16 sm:%s706]
  %vm708 = vcmask 1047558
  %v709 = vsel %vm708, %v707, %v704
  %710 = vrot.lane.b32.xlu0 %v709, 32
  %v711 = vpop.permute.xlu0 %710
  %vm712 = vcmask 523520
  %s713 = scalar_lea.vmem %s1, 24
  %714 = vst.msk [vmem:[%s713] sm:$0xff] %vm712, %v711
  %s715 = scalar_lea.vmem %s0, 261
  %s716 = smov 3
  %v717 = vld [vmem:[%s715] ss:$16 sm:%s716]
  %s718 = scalar_lea.vmem %s0, 261
  %s719 = smov 12
  %v720 = vld [vmem:[%s718] ss:$16 sm:%s719]
  %vm721 = vcmask 1043458
  %v722 = vsel %vm721, %v720, %v717
  %s723 = scalar_lea.vmem %s0, 261
  %s724 = smov 48
  %v725 = vld [vmem:[%s723] ss:$16 sm:%s724]
  %vm726 = vcmask 1045508
  %v727 = vsel %vm726, %v725, %v722
  %s728 = scalar_lea.vmem %s0, 261
  %s729 = smov 192
  %v730 = vld [vmem:[%s728] ss:$16 sm:%s729]
  %vm731 = vcmask 1047558
  %v732 = vsel %vm731, %v730, %v727
  %733 = vrot.lane.b32.xlu0 %v732, 32
  %v734 = vpop.permute.xlu0 %733
  %vm735 = vcmask 523520
  %s736 = scalar_lea.vmem %s1, 56
  %737 = vst.msk [vmem:[%s736] sm:$0xff] %vm735, %v734

// kernel: _lambda_.6
$region0: #{_lambda_.6}
  #allocation0 [shape = 'u32[]', space=smem, size = 0x4, offset = 0x4, fixed_abs, tag = 'smem constant byte address 0x4 - core index']
  #allocation1 [shape = 'u32[144,128]{1,0:T(1,128)}', space=vmem, size = 0x12000, scoped, tag = 'internal scratch']
  %s0 = inlined_call_operand.vmem [shape: f32[24,384], index: 0, kind: input, shape index: {}]
  %s1 = inlined_call_operand.vmem [shape: f32[24,384], index: 1, kind: input, shape index: {}]
  %s2 = inlined_call_operand.vmem [shape: f32[24,384], index: 2, kind: input, shape index: {}]
  %s3 = inlined_call_operand.vmem [shape: f32[24,384], index: 3, kind: input, shape index: {}]
  %s4 = inlined_call_operand.vmem [shape: f32[24,384], index: 4, kind: output, shape index: {}]
  %s5 = sld [smem:[#allocation0]]
  $region26: #{_lambda_.6} parent=0
    _
  %s7 = ssub.s32 1, %s5
  %s8 = scalar_select 0, %s7, %s5
  // Predicated region
  $region2: #{_lambda_.6} parent=0 // pred_check
    _
  $region3: #{_lambda_.6} parent=0 // pred_check_branch
    %10 = sbr.rel (0) target = $region5
  $region4: #{_lambda_.6} parent=0 // pred_region
    _
  $region5: #{_lambda_.6} parent=0 // pred_fallthru
    _
  // Predicated region
  $region6: #{_lambda_.6} parent=0 // pred_check
    _
  $region7: #{_lambda_.6} parent=0 // pred_check_branch
    %12 = sbr.rel (0) target = $region9
  $region8: #{_lambda_.6} parent=0 // pred_region
    _
  $region9: #{_lambda_.6} parent=0 // pred_fallthru
    _
  // Predicated region
  $region10: #{_lambda_.6} parent=0 // pred_check
    _
  $region11: #{_lambda_.6} parent=0 // pred_check_branch
    %14 = sbr.rel (0) target = $region13
  $region12: #{_lambda_.6} parent=0 // pred_region
    _
  $region13: #{_lambda_.6} parent=0 // pred_fallthru
    _
  // Predicated region
  $region14: #{_lambda_.6} parent=0 // pred_check
    _
  $region15: #{_lambda_.6} parent=0 // pred_check_branch
    %16 = sbr.rel (0) target = $region17
  $region16: #{_lambda_.6} parent=0 // pred_region
    _
  $region17: #{_lambda_.6} parent=0 // pred_fallthru
    _
  %v17 = vld [vmem:[%s0] sm:$0xff]
  %v18 = vld [vmem:[%s0 + $0x8] sm:$0xff]
  %v19 = vld [vmem:[%s0 + $0x10] sm:$0xff]
  %v20 = vld [vmem:[%s0 + $0x18] sm:$0xff]
  %v21 = vld [vmem:[%s0 + $0x20] sm:$0xff]
  %v22 = vld [vmem:[%s0 + $0x28] sm:$0xff]
  %v23 = vld [vmem:[%s0 + $0x30] sm:$0xff]
  %v24 = vld [vmem:[%s0 + $0x38] sm:$0xff]
  %v25 = vld [vmem:[%s0 + $0x40] sm:$0xff]
  %v26 = vld [vmem:[%s1] sm:$0xff]
  %v27 = vld [vmem:[%s1 + $0x8] sm:$0xff]
  %v28 = vld [vmem:[%s1 + $0x10] sm:$0xff]
  %v29 = vld [vmem:[%s1 + $0x18] sm:$0xff]
  %v30 = vld [vmem:[%s1 + $0x20] sm:$0xff]
  %v31 = vld [vmem:[%s1 + $0x28] sm:$0xff]
  %v32 = vld [vmem:[%s1 + $0x30] sm:$0xff]
  %v33 = vld [vmem:[%s1 + $0x38] sm:$0xff]
  %v34 = vld [vmem:[%s1 + $0x40] sm:$0xff]
  %v35 = vmax.f32 %v17, %v26
  %v36 = vmax.f32 %v18, %v27
  %v37 = vmax.f32 %v19, %v28
  %v38 = vmax.f32 %v20, %v29
  %v39 = vmax.f32 %v21, %v30
  %v40 = vmax.f32 %v22, %v31
  %v41 = vmax.f32 %v23, %v32
  %v42 = vmax.f32 %v24, %v33
  %v43 = vmax.f32 %v25, %v34
  %v44 = vld [vmem:[%s2] sm:$0xff]
  %v45 = vld [vmem:[%s2 + $0x8] sm:$0xff]
  %v46 = vld [vmem:[%s2 + $0x10] sm:$0xff]
  %v47 = vld [vmem:[%s2 + $0x18] sm:$0xff]
  %v48 = vld [vmem:[%s2 + $0x20] sm:$0xff]
  %v49 = vld [vmem:[%s2 + $0x28] sm:$0xff]
  %v50 = vld [vmem:[%s2 + $0x30] sm:$0xff]
  %v51 = vld [vmem:[%s2 + $0x38] sm:$0xff]
  %v52 = vld [vmem:[%s2 + $0x40] sm:$0xff]
  %v53 = vld [vmem:[%s3] sm:$0xff]
  %v54 = vld [vmem:[%s3 + $0x8] sm:$0xff]
  %v55 = vld [vmem:[%s3 + $0x10] sm:$0xff]
  %v56 = vld [vmem:[%s3 + $0x18] sm:$0xff]
  %v57 = vld [vmem:[%s3 + $0x20] sm:$0xff]
  %v58 = vld [vmem:[%s3 + $0x28] sm:$0xff]
  %v59 = vld [vmem:[%s3 + $0x30] sm:$0xff]
  %v60 = vld [vmem:[%s3 + $0x38] sm:$0xff]
  %v61 = vld [vmem:[%s3 + $0x40] sm:$0xff]
  %v62 = vmax.f32 %v44, %v53
  %v63 = vmax.f32 %v45, %v54
  %v64 = vmax.f32 %v46, %v55
  %v65 = vmax.f32 %v47, %v56
  %v66 = vmax.f32 %v48, %v57
  %v67 = vmax.f32 %v49, %v58
  %v68 = vmax.f32 %v50, %v59
  %v69 = vmax.f32 %v51, %v60
  %v70 = vmax.f32 %v52, %v61
  %v71 = vmax.f32 %v35, %v62
  %v72 = vmax.f32 %v36, %v63
  %v73 = vmax.f32 %v37, %v64
  %v74 = vmax.f32 %v38, %v65
  %v75 = vmax.f32 %v39, %v66
  %v76 = vmax.f32 %v40, %v67
  %v77 = vmax.f32 %v41, %v68
  %v78 = vmax.f32 %v42, %v69
  %v79 = vmax.f32 %v43, %v70
  %80 = vst [vmem:[%s4] sm:$0xff] %v71
  %81 = vst [vmem:[%s4 + $0x8] sm:$0xff] %v72
  %82 = vst [vmem:[%s4 + $0x10] sm:$0xff] %v73
  %83 = vst [vmem:[%s4 + $0x18] sm:$0xff] %v74
  %84 = vst [vmem:[%s4 + $0x20] sm:$0xff] %v75
  %85 = vst [vmem:[%s4 + $0x28] sm:$0xff] %v76
  %86 = vst [vmem:[%s4 + $0x30] sm:$0xff] %v77
  %87 = vst [vmem:[%s4 + $0x38] sm:$0xff] %v78
  %88 = vst [vmem:[%s4 + $0x40] sm:$0xff] %v79
  // Predicated region
  $region18: #{_lambda_.6} parent=0 // pred_check
    _
  $region19: #{_lambda_.6} parent=0 // pred_check_branch
    %90 = sbr.rel (0) target = $region21
  $region20: #{_lambda_.6} parent=0 // pred_region
    _
  $region21: #{_lambda_.6} parent=0 // pred_fallthru
    _
  // Predicated region
  $region22: #{_lambda_.6} parent=0 // pred_check
    _
  $region23: #{_lambda_.6} parent=0 // pred_check_branch
    %92 = sbr.rel (0) target = $region25
  $region24: #{_lambda_.6} parent=0 // pred_region
    _
  $region25: #{_lambda_.6} parent=0 // pred_fallthru
    _

// kernel: squeeze.12
$region0: #{squeeze.12}
  %s0 = inlined_call_operand.vmem [shape: f32[2,4,1,4,1,64], index: 0, kind: input, shape index: {}]
  %s1 = inlined_call_operand.vmem [shape: f32[8,256], index: 1, kind: output, shape index: {}]
  $region1: #{squeeze.12} parent=0
    #allocation0 [shape = 'u8[32768]{0}', space=vmem, size = 0x8000, scoped, tag = 'scoped mem for input reshape']
    %s3 = sshllo.u32 0, 4
    %s4 = smul.addr 4, 7
    %s5 = scalar_lea.vmem %s0, %s4
    %v6 = vld [vmem:[%s5] sm:%s3]
    %s7 = scalar_lea.vmem [#allocation0], 56
    %8 = vst [vmem:[%s7] sm:%s3] %v6
    %s9 = smul.addr 4, 6
    %s10 = scalar_lea.vmem %s0, %s9
    %v11 = vld [vmem:[%s10] sm:%s3]
    %s12 = scalar_lea.vmem [#allocation0], 48
    %13 = vst [vmem:[%s12] sm:%s3] %v11
    %s14 = smul.addr 4, 5
    %s15 = scalar_lea.vmem %s0, %s14
    %v16 = vld [vmem:[%s15] sm:%s3]
    %s17 = scalar_lea.vmem [#allocation0], 40
    %18 = vst [vmem:[%s17] sm:%s3] %v16
    %s19 = smul.addr 4, 4
    %s20 = scalar_lea.vmem %s0, %s19
    %v21 = vld [vmem:[%s20] sm:%s3]
    %s22 = scalar_lea.vmem [#allocation0], 32
    %23 = vst [vmem:[%s22] sm:%s3] %v21
    %s24 = smul.addr 4, 3
    %s25 = scalar_lea.vmem %s0, %s24
    %v26 = vld [vmem:[%s25] sm:%s3]
    %s27 = scalar_lea.vmem [#allocation0], 24
    %28 = vst [vmem:[%s27] sm:%s3] %v26
    %s29 = smul.addr 4, 2
    %s30 = scalar_lea.vmem %s0, %s29
    %v31 = vld [vmem:[%s30] sm:%s3]
    %s32 = scalar_lea.vmem [#allocation0], 16
    %33 = vst [vmem:[%s32] sm:%s3] %v31
    %s34 = scalar_lea.vmem %s0, 4
    %v35 = vld [vmem:[%s34] sm:%s3]
    %s36 = scalar_lea.vmem [#allocation0], 8
    %37 = vst [vmem:[%s36] sm:%s3] %v35
    %v38 = vld [vmem:[%s0] sm:%s3]
    %39 = vst [vmem:[#allocation0] sm:%s3] %v38
    %s40 = smov 3
    %v41 = vld [vmem:[#allocation0] ss:$2 sm:%s40]
    %vm42 = vcmask 523264
    %43 = vst.msk [vmem:[%s1] ss:$8 sm:$0x3] %vm42, %v41
    %s44 = scalar_lea.vmem [#allocation0], 8
    %s45 = smov 3
    %v46 = vld [vmem:[%s44] ss:$2 sm:%s45]
    %vm47 = vcmask 523264
    %s48 = scalar_lea.vmem %s1, 1
    %49 = vst.msk [vmem:[%s48] ss:$8 sm:$0x3] %vm47, %v46
    %s50 = scalar_lea.vmem [#allocation0], 16
    %s51 = smov 3
    %v52 = vld [vmem:[%s50] ss:$2 sm:%s51]
    %vm53 = vcmask 523264
    %s54 = scalar_lea.vmem %s1, 2
    %55 = vst.msk [vmem:[%s54] ss:$8 sm:$0x3] %vm53, %v52
    %s56 = scalar_lea.vmem [#allocation0], 24
    %s57 = smov 3
    %v58 = vld [vmem:[%s56] ss:$2 sm:%s57]
    %vm59 = vcmask 523264
    %s60 = scalar_lea.vmem %s1, 3
    %61 = vst.msk [vmem:[%s60] ss:$8 sm:$0x3] %vm59, %v58
    %s62 = scalar_lea.vmem [#allocation0], 32
    %s63 = smov 3
    %v64 = vld [vmem:[%s62] ss:$2 sm:%s63]
    %vm65 = vcmask 523264
    %s66 = scalar_lea.vmem %s1, 4
    %67 = vst.msk [vmem:[%s66] ss:$8 sm:$0x3] %vm65, %v64
    %s68 = scalar_lea.vmem [#allocation0], 40
    %s69 = smov 3
    %v70 = vld [vmem:[%s68] ss:$2 sm:%s69]
    %vm71 = vcmask 523264
    %s72 = scalar_lea.vmem %s1, 5
    %73 = vst.msk [vmem:[%s72] ss:$8 sm:$0x3] %vm71, %v70
    %s74 = scalar_lea.vmem [#allocation0], 48
    %s75 = smov 3
    %v76 = vld [vmem:[%s74] ss:$2 sm:%s75]
    %vm77 = vcmask 523264
    %s78 = scalar_lea.vmem %s1, 6
    %79 = vst.msk [vmem:[%s78] ss:$8 sm:$0x3] %vm77, %v76
    %s80 = scalar_lea.vmem [#allocation0], 56
    %s81 = smov 3
    %v82 = vld [vmem:[%s80] ss:$2 sm:%s81]
    %vm83 = vcmask 523264
    %s84 = scalar_lea.vmem %s1, 7
    %85 = vst.msk [vmem:[%s84] ss:$8 sm:$0x3] %vm83, %v82
    %s86 = scalar_lea.vmem [#allocation0], 1
    %v87 = vld [vmem:[%s86] ss:$8 sm:$0xf]
    %s88 = scalar_lea.vmem [#allocation0], 1
    %v89 = vld [vmem:[%s88] ss:$8 sm:$0xf0]
    %vm90 = vcmask 1047556
    %v91 = vsel %vm90, %v89, %v87
    %92 = vrot.lane.b32.xlu0 %v91, 64
    %v93 = vpop.permute.xlu0 %92
    %vm94 = vcmask 1048064
    %95 = vst.msk [vmem:[%s1] sm:$0xff] %vm94, %v93
    %s96 = scalar_lea.vmem [#allocation0], 3
    %v97 = vld [vmem:[%s96] ss:$8 sm:$0xf]
    %s98 = scalar_lea.vmem [#allocation0], 3
    %v99 = vld [vmem:[%s98] ss:$8 sm:$0xf0]
    %vm100 = vcmask 1047556
    %v101 = vsel %vm100, %v99, %v97
    %102 = vrot.lane.b32.xlu0 %v101, 64
    %v103 = vpop.permute.xlu0 %102
    %vm104 = vcmask 1048064
    %s105 = scalar_lea.vmem %s1, 8
    %106 = vst.msk [vmem:[%s105] sm:$0xff] %vm104, %v103

// kernel: _lambda_.7
$region0: #{_lambda_.7}
  #allocation0 [shape = 'u32[]', space=smem, size = 0x4, offset = 0x4, fixed_abs, tag = 'smem constant byte address 0x4 - core index']
  #allocation1 [shape = 'u32[144,128]{1,0:T(1,128)}', space=vmem, size = 0x12000, scoped, tag = 'internal scratch']
  #allocation2 [shape = 'f32[1]{0:T(128)S(6)}', space=smem, size = 0x200, scoped, tag = 'scoped memory for _lambda_.7']
  %s0 = inlined_call_operand.vmem [shape: f32[128,800], index: 0, kind: input, shape index: {}]
  %s1 = inlined_call_operand.vmem [shape: bf16[800,64], index: 1, kind: input, shape index: {}]
  %s2 = inlined_call_operand.vmem [shape: f32[1,64], index: 2, kind: input, shape index: {}]
  %s3 = inlined_call_operand.<no memory space> [shape: f32[1], index: 3, kind: input, shape index: {}]
  %s4 = inlined_call_operand.vmem [shape: f32[128,64], index: 4, kind: output, shape index: {}]
  %s5 = sld [smem:[#allocation0]]
  $region49: #{_lambda_.7} parent=0
    _
  %s7 = ssub.s32 1, %s5
  %s8 = scalar_select 0, %s7, %s5
  %9 = sst [smem:[#allocation2]] %s3
  loop: start=0, step=1, limit=4
  $region2: #{_lambda_.7} parent=0 // loop_pre_header
    _
  $region3: #{_lambda_.7} parent=0 // loop_header
    %s11 = sphi 0, %s15
    %p12 = scmp.ge.s32.totalorder %s11, 4
    %s21 = sphi 0, %s23
    %s24 = sphi 0, %s21
    %s25 = sphi 0, %s24
    %s41 = sphi 0, %s25
    %s45 = sphi 0, %s45
    %s47 = sphi 0, %s45
    %s48 = sphi 0, %s47
    %s62 = sphi 0, %s48
    %s66 = sphi 0, %s66
    %s68 = sphi 0, %s66
    %s69 = sphi 0, %s68
    %s83 = sphi 0, %s69
    %s87 = sphi 0, %s87
    %s89 = sphi 0, %s87
    %s90 = sphi 0, %s89
    %s104 = sphi 0, %s90
    %s110 = sphi 0, %s112
    %s113 = sphi 0, %s110
    %s114 = sphi 0, %s113
    %s130 = sphi 0, %s114
  $region4: #{_lambda_.7} parent=0 // loop_header_branch
    %14 = sbr.rel (%p12) target = $region8
  $region5: #{_lambda_.7} parent=0 // loop_body
    %s16 = ssub.s32 %s11, 1
    %s17 = ssub.s32 %s11, 2
    %s18 = sadd.s32 %s11, 1
    %s19 = ssub.s32 %s11, %s18
    %p20 = scmp.eq.s32.totalorder %s19, 0
    %s22 = sadd.s32 %s21, 1
    %s23 = scalar_select %p20, %s21, %s22
    %p26 = pneg %p20
    %p27 = scmp.eq.s32.totalorder %s11, 1
    %p28 = por %p26, %p27
    %p29 = scmp.ne.s32.totalorder %s21, %s24
    %p30 = scmp.eq.s32.totalorder %s11, 0
    %p31 = por %p29, %p30
    %p32 = scmp.ne.s32.totalorder %s21, %s24
    %p33 = scmp.eq.s32.totalorder %s16, 1
    %p34 = por %p32, %p33
    %p35 = scmp.ne.s32.totalorder %s24, %s25
    %p36 = scmp.eq.s32.totalorder %s16, 0
    %p37 = por %p35, %p36
    %p38 = scmp.ne.s32.totalorder %s24, %s25
    %p39 = scmp.eq.s32.totalorder %s17, 1
    %p40 = por %p38, %p39
    %p42 = scmp.ne.s32.totalorder %s25, %s41
    %p43 = scmp.eq.s32.totalorder %s17, 0
    %p44 = por %p42, %p43
    %s46 = sadd.s32 %s45, 1
    %p49 = scmp.eq.s32.totalorder %s11, 1
    %p50 = scmp.ne.s32.totalorder %s45, %s47
    %p51 = scmp.eq.s32.totalorder %s11, 0
    %p52 = por %p50, %p51
    %p53 = scmp.ne.s32.totalorder %s45, %s47
    %p54 = scmp.eq.s32.totalorder %s16, 1
    %p55 = por %p53, %p54
    %p56 = scmp.ne.s32.totalorder %s47, %s48
    %p57 = scmp.eq.s32.totalorder %s16, 0
    %p58 = por %p56, %p57
    %p59 = scmp.ne.s32.totalorder %s47, %s48
    %p60 = scmp.eq.s32.totalorder %s17, 1
    %p61 = por %p59, %p60
    %p63 = scmp.ne.s32.totalorder %s48, %s62
    %p64 = scmp.eq.s32.totalorder %s17, 0
    %p65 = por %p63, %p64
    %s67 = sadd.s32 %s66, 1
    %p70 = scmp.eq.s32.totalorder %s11, 1
    %p71 = scmp.ne.s32.totalorder %s66, %s68
    %p72 = scmp.eq.s32.totalorder %s11, 0
    %p73 = por %p71, %p72
    %p74 = scmp.ne.s32.totalorder %s66, %s68
    %p75 = scmp.eq.s32.totalorder %s16, 1
    %p76 = por %p74, %p75
    %p77 = scmp.ne.s32.totalorder %s68, %s69
    %p78 = scmp.eq.s32.totalorder %s16, 0
    %p79 = por %p77, %p78
    %p80 = scmp.ne.s32.totalorder %s68, %s69
    %p81 = scmp.eq.s32.totalorder %s17, 1
    %p82 = por %p80, %p81
    %p84 = scmp.ne.s32.totalorder %s69, %s83
    %p85 = scmp.eq.s32.totalorder %s17, 0
    %p86 = por %p84, %p85
    %s88 = sadd.s32 %s87, 1
    %p91 = scmp.eq.s32.totalorder %s11, 1
    %p92 = scmp.ne.s32.totalorder %s87, %s89
    %p93 = scmp.eq.s32.totalorder %s11, 0
    %p94 = por %p92, %p93
    %p95 = scmp.ne.s32.totalorder %s87, %s89
    %p96 = scmp.eq.s32.totalorder %s16, 1
    %p97 = por %p95, %p96
    %p98 = scmp.ne.s32.totalorder %s89, %s90
    %p99 = scmp.eq.s32.totalorder %s16, 0
    %p100 = por %p98, %p99
    %p101 = scmp.ne.s32.totalorder %s89, %s90
    %p102 = scmp.eq.s32.totalorder %s17, 1
    %p103 = por %p101, %p102
    %p105 = scmp.ne.s32.totalorder %s90, %s104
    %p106 = scmp.eq.s32.totalorder %s17, 0
    %p107 = por %p105, %p106
    %s108 = ssub.s32 %s11, %s18
    %p109 = scmp.eq.s32.totalorder %s108, 0
    %s111 = sadd.s32 %s110, 1
    %s112 = scalar_select %p109, %s110, %s111
    %p115 = pneg %p109
    %p116 = scmp.eq.s32.totalorder %s11, 1
    %p117 = por %p115, %p116
    %p118 = scmp.ne.s32.totalorder %s110, %s113
    %p119 = scmp.eq.s32.totalorder %s11, 0
    %p120 = por %p118, %p119
    %p121 = scmp.ne.s32.totalorder %s110, %s113
    %p122 = scmp.eq.s32.totalorder %s16, 1
    %p123 = por %p121, %p122
    %p124 = scmp.ne.s32.totalorder %s113, %s114
    %p125 = scmp.eq.s32.totalorder %s16, 0
    %p126 = por %p124, %p125
    %p127 = scmp.ne.s32.totalorder %s113, %s114
    %p128 = scmp.eq.s32.totalorder %s17, 1
    %p129 = por %p127, %p128
    %p131 = scmp.ne.s32.totalorder %s114, %s130
    %p132 = scmp.eq.s32.totalorder %s17, 0
    %p133 = por %p131, %p132
    %p134 = scmp.le.s32.totalorder 1, %s11
    %p135 = scmp.lt.s32.totalorder %s11, 3
    %p136 = pnand %p134, %p135
    %p137 = pneg %p136
    // Predicated region
    $region9: #{_lambda_.7} parent=5 // pred_check
      _
    $region10: #{_lambda_.7} parent=5 // pred_check_branch
      %139 = sbr.rel (%p136) target = $region12
    $region11: #{_lambda_.7} parent=5 // pred_region
      %s140 = ssub.s32 %s11, 1
      // Predicated region
      $region13: #{_lambda_.7} parent=11 // pred_check
        %p141 = pneg %p58
      $region14: #{_lambda_.7} parent=11 // pred_check_branch
        %143 = sbr.rel (%p141) target = $region16
      $region15: #{_lambda_.7} parent=11 // pred_region
        _
      $region16: #{_lambda_.7} parent=11 // pred_fallthru
        _
      // Predicated region
      $region17: #{_lambda_.7} parent=11 // pred_check
        %p144 = pneg %p79
      $region18: #{_lambda_.7} parent=11 // pred_check_branch
        %146 = sbr.rel (%p144) target = $region20
      $region19: #{_lambda_.7} parent=11 // pred_region
        _
      $region20: #{_lambda_.7} parent=11 // pred_fallthru
        _
      // Predicated region
      $region21: #{_lambda_.7} parent=11 // pred_check
        %p147 = pneg %p100
      $region22: #{_lambda_.7} parent=11 // pred_check_branch
        %149 = sbr.rel (%p147) target = $region24
      $region23: #{_lambda_.7} parent=11 // pred_region
        _
      $region24: #{_lambda_.7} parent=11 // pred_fallthru
        _
    $region12: #{_lambda_.7} parent=5 // pred_fallthru
      _
    %p150 = scmp.lt.s32.totalorder %s11, 2
    // Predicated region
    $region25: #{_lambda_.7} parent=5 // pred_check
      %p151 = pneg %p150
    $region26: #{_lambda_.7} parent=5 // pred_check_branch
      %153 = sbr.rel (%p151) target = $region28
    $region27: #{_lambda_.7} parent=5 // pred_region
      // Predicated region
      $region29: #{_lambda_.7} parent=27 // pred_check
        %p154 = pneg %p31
      $region30: #{_lambda_.7} parent=27 // pred_check_branch
        %156 = sbr.rel (%p154) target = $region32
      $region31: #{_lambda_.7} parent=27 // pred_region
        %s157 = smul.u32 8, %s11
        %p158 = scmp.lt.s32.totalorder %s157, 15
        %s159 = scalar_select %p158, %s157, 15
        %s160 = smul.addr %s159, 7
        %s161 = smul.addr %s160, 8
        %s162 = scalar_lea.vmem %s0, %s161
        %s163 = smul.u32 8, %s11
      $region32: #{_lambda_.7} parent=27 // pred_fallthru
        _
    $region28: #{_lambda_.7} parent=5 // pred_fallthru
      _
    %p164 = scmp.le.s32.totalorder 1, %s11
    %p165 = scmp.lt.s32.totalorder %s11, 3
    %p166 = pnand %p164, %p165
    %p167 = pneg %p166
    // Predicated region
    $region33: #{_lambda_.7} parent=5 // pred_check
      _
    $region34: #{_lambda_.7} parent=5 // pred_check_branch
      %169 = sbr.rel (%p166) target = $region36
    $region35: #{_lambda_.7} parent=5 // pred_region
      %s170 = ssub.s32 %s11, 1
      %s171 = smul.u32 8, %s16
      %p172 = scmp.lt.s32.totalorder %s171, 15
      %s173 = scalar_select %p172, %s171, 15
      %s174 = smul.addr %s173, 7
      %s175 = smul.addr %s174, 8
      %s176 = scalar_lea.vmem %s0, %s175
      %p177 = pneg %p37
      %p178 = pneg %p34
      %p179 = pneg %p58
      %p180 = pneg %p55
      %p181 = pneg %p79
      %p182 = pneg %p76
      %p183 = pneg %p100
      %p184 = pneg %p97
      %p185 = pneg %p126
      %p186 = pneg %p123
      %s187 = smul.u32 8, %s16
      %p188 = scmp.lt.s32.totalorder %s187, 15
      %s189 = scalar_select %p188, %s187, 15
      %s190 = smul.addr %s189, 8
      %s191 = scalar_lea.vmem %s4, %s190
      %s192 = smul.u32 8, %s16
      %p193 = scmp.lt.s32.totalorder %s192, 15
      %s194 = scalar_select %p193, %s192, 15
      %s195 = smul.addr %s194, 7
      %s196 = smul.addr %s195, 8
      %s197 = scalar_lea.vmem %s0, %s196
      %s198 = smul.u32 8, %s16
      %s199 = smul.u32 8, %s16
      %p200 = scmp.lt.s32.totalorder %s199, 15
      %s201 = scalar_select %p200, %s199, 15
      %s202 = smul.addr %s201, 8
      %s203 = scalar_lea.vmem %s4, %s202
      %s204 = smul.u32 8, %s16
      %v206 = vld [vmem:[%s197] sm:$0xff]
      %v207 = vld [vmem:[%s197 + $0x8] sm:$0xff]
      %v208 = vld [vmem:[%s197 + $0x10] sm:$0xff]
      %v209 = vld [vmem:[%s197 + $0x18] sm:$0xff]
      %v210 = vld [vmem:[%s197 + $0x20] sm:$0xff]
      %v211 = vld [vmem:[%s197 + $0x28] sm:$0xff]
      %v212 = vld [vmem:[%s197 + $0x30] sm:$0xff]
      %v213 = vld [vmem:[%s197 + $0x38] sm:$0xff]
      %v214 = vld [vmem:[%s197 + $0x40] sm:$0xff]
      %v215 = vld [vmem:[%s197 + $0x48] sm:$0xff]
      %v216 = vld [vmem:[%s197 + $0x50] sm:$0xff]
      %v217 = vld [vmem:[%s197 + $0x58] sm:$0xff]
      %v218 = vld [vmem:[%s197 + $0x60] sm:$0xff]
      %v219 = vld [vmem:[%s197 + $0x68] sm:$0xff]
      %v220 = vld [vmem:[%s197 + $0x70] sm:$0xff]
      %v221 = vld [vmem:[%s197 + $0x78] sm:$0xff]
      %v222 = vld [vmem:[%s197 + $0x80] sm:$0xff]
      %v223 = vld [vmem:[%s197 + $0x88] sm:$0xff]
      %v224 = vld [vmem:[%s197 + $0x90] sm:$0xff]
      %v225 = vld [vmem:[%s197 + $0x98] sm:$0xff]
      %v226 = vld [vmem:[%s197 + $0xa0] sm:$0xff]
      %v227 = vld [vmem:[%s197 + $0xa8] sm:$0xff]
      %v228 = vld [vmem:[%s197 + $0xb0] sm:$0xff]
      %v229 = vld [vmem:[%s197 + $0xb8] sm:$0xff]
      %v230 = vld [vmem:[%s197 + $0xc0] sm:$0xff]
      %v231 = vld [vmem:[%s197 + $0xc8] sm:$0xff]
      %v232 = vld [vmem:[%s197 + $0xd0] sm:$0xff]
      %v233 = vld [vmem:[%s197 + $0xd8] sm:$0xff]
      %v234 = vld [vmem:[%s197 + $0xe0] sm:$0xff]
      %v235 = vld [vmem:[%s197 + $0xe8] sm:$0xff]
      %v236 = vld [vmem:[%s197 + $0xf0] sm:$0xff]
      %v237 = vld [vmem:[%s197 + $0xf8] sm:$0xff]
      %v238 = vld [vmem:[%s197 + $0x100] sm:$0xff]
      %v239 = vld [vmem:[%s197 + $0x108] sm:$0xff]
      %v240 = vld [vmem:[%s197 + $0x110] sm:$0xff]
      %v241 = vld [vmem:[%s197 + $0x118] sm:$0xff]
      %v242 = vld [vmem:[%s197 + $0x120] sm:$0xff]
      %v243 = vld [vmem:[%s197 + $0x128] sm:$0xff]
      %v244 = vld [vmem:[%s197 + $0x130] sm:$0xff]
      %v245 = vld [vmem:[%s197 + $0x138] sm:$0xff]
      %v246 = vld [vmem:[%s197 + $0x140] sm:$0xff]
      %v247 = vld [vmem:[%s197 + $0x148] sm:$0xff]
      %v248 = vld [vmem:[%s197 + $0x150] sm:$0xff]
      %v249 = vld [vmem:[%s197 + $0x158] sm:$0xff]
      %v250 = vld [vmem:[%s197 + $0x160] sm:$0xff]
      %v251 = vld [vmem:[%s197 + $0x168] sm:$0xff]
      %v252 = vld [vmem:[%s197 + $0x170] sm:$0xff]
      %v253 = vld [vmem:[%s197 + $0x178] sm:$0xff]
      %v254 = vld [vmem:[%s197 + $0x180] sm:$0xff]
      %v255 = vld [vmem:[%s197 + $0x188] sm:$0xff]
      %v256 = vld [vmem:[%s197 + $0x190] sm:$0xff]
      %v257 = vld [vmem:[%s197 + $0x198] sm:$0xff]
      %v258 = vld [vmem:[%s197 + $0x1a0] sm:$0xff]
      %v259 = vld [vmem:[%s197 + $0x1a8] sm:$0xff]
      %v260 = vld [vmem:[%s197 + $0x1b0] sm:$0xff]
      %v261 = vld [vmem:[%s197 + $0x1b8] sm:$0xff]
      %v262 = vpack.c.bf16 %v213, %v206
      %v263 = vpack.c.bf16 %v214, %v207
      %v264 = vpack.c.bf16 %v215, %v208
      %v265 = vpack.c.bf16 %v216, %v209
      %v266 = vpack.c.bf16 %v217, %v210
      %v267 = vpack.c.bf16 %v218, %v211
      %v268 = vpack.c.bf16 %v219, %v212
      %v269 = vpack.c.bf16 %v227, %v220
      %v270 = vpack.c.bf16 %v228, %v221
      %v271 = vpack.c.bf16 %v229, %v222
      %v272 = vpack.c.bf16 %v230, %v223
      %v273 = vpack.c.bf16 %v231, %v224
      %v274 = vpack.c.bf16 %v232, %v225
      %v275 = vpack.c.bf16 %v233, %v226
      %v276 = vpack.c.bf16 %v241, %v234
      %v277 = vpack.c.bf16 %v242, %v235
      %v278 = vpack.c.bf16 %v243, %v236
      %v279 = vpack.c.bf16 %v244, %v237
      %v280 = vpack.c.bf16 %v245, %v238
      %v281 = vpack.c.bf16 %v246, %v239
      %v282 = vpack.c.bf16 %v247, %v240
      %v283 = vpack.c.bf16 %v255, %v248
      %v284 = vpack.c.bf16 %v256, %v249
      %v285 = vpack.c.bf16 %v257, %v250
      %v286 = vpack.c.bf16 %v258, %v251
      %v287 = vpack.c.bf16 %v259, %v252
      %v288 = vpack.c.bf16 %v260, %v253
      %v289 = vpack.c.bf16 %v261, %v254
      %v290 = vld [vmem:[%s1] sm:$0xf]
      %v291 = vld [vmem:[%s1 + $0x4] sm:$0xf]
      %v292 = vld [vmem:[%s1 + $0x8] sm:$0xf]
      %v293 = vld [vmem:[%s1 + $0xc] sm:$0xf]
      %v294 = vld [vmem:[%s1 + $0x10] sm:$0xf]
      %v295 = vld [vmem:[%s1 + $0x14] sm:$0xf]
      %v296 = vld [vmem:[%s1 + $0x18] sm:$0xf]
      %v297 = vld [vmem:[%s1 + $0x1c] sm:$0xf]
      %v298 = vld [vmem:[%s1 + $0x20] sm:$0xf]
      %v299 = vld [vmem:[%s1 + $0x24] sm:$0xf]
      %v300 = vld [vmem:[%s1 + $0x28] sm:$0xf]
      %v301 = vld [vmem:[%s1 + $0x2c] sm:$0xf]
      %v302 = vld [vmem:[%s1 + $0x30] sm:$0xf]
      %v303 = vld [vmem:[%s1 + $0x34] sm:$0xf]
      %v304 = vld [vmem:[%s1 + $0x38] sm:$0xf]
      %v305 = vld [vmem:[%s1 + $0x3c] sm:$0xf]
      %v306 = vld [vmem:[%s1 + $0x40] sm:$0xf]
      %v307 = vld [vmem:[%s1 + $0x44] sm:$0xf]
      %v308 = vld [vmem:[%s1 + $0x48] sm:$0xf]
      %v309 = vld [vmem:[%s1 + $0x4c] sm:$0xf]
      %v310 = vld [vmem:[%s1 + $0x50] sm:$0xf]
      %v311 = vld [vmem:[%s1 + $0x54] sm:$0xf]
      %v312 = vld [vmem:[%s1 + $0x58] sm:$0xf]
      %v313 = vld [vmem:[%s1 + $0x5c] sm:$0xf]
      %v314 = vld [vmem:[%s1 + $0x60] sm:$0xf]
      %v315 = vld [vmem:[%s1 + $0x64] sm:$0xf]
      %v316 = vld [vmem:[%s1 + $0x68] sm:$0xf]
      %v317 = vld [vmem:[%s1 + $0x6c] sm:$0xf]
      %v318 = vld [vmem:[%s1 + $0x70] sm:$0xf]
      %v319 = vld [vmem:[%s1 + $0x74] sm:$0xf]
      %v320 = vld [vmem:[%s1 + $0x78] sm:$0xf]
      %v321 = vld [vmem:[%s1 + $0x7c] sm:$0xf]
      %v322 = vld [vmem:[%s1 + $0x80] sm:$0xf]
      %v323 = vld [vmem:[%s1 + $0x84] sm:$0xf]
      %v324 = vld [vmem:[%s1 + $0x88] sm:$0xf]
      %v325 = vld [vmem:[%s1 + $0x8c] sm:$0xf]
      %v326 = vld [vmem:[%s1 + $0x90] sm:$0xf]
      %v327 = vld [vmem:[%s1 + $0x94] sm:$0xf]
      %v328 = vld [vmem:[%s1 + $0x98] sm:$0xf]
      %v329 = vld [vmem:[%s1 + $0x9c] sm:$0xf]
      %v330 = vld [vmem:[%s1 + $0xa0] sm:$0xf]
      %v331 = vld [vmem:[%s1 + $0xa4] sm:$0xf]
      %v332 = vld [vmem:[%s1 + $0xa8] sm:$0xf]
      %v333 = vld [vmem:[%s1 + $0xac] sm:$0xf]
      %v334 = vld [vmem:[%s1 + $0xb0] sm:$0xf]
      %v335 = vld [vmem:[%s1 + $0xb4] sm:$0xf]
      %v336 = vld [vmem:[%s1 + $0xb8] sm:$0xf]
      %v337 = vld [vmem:[%s1 + $0xbc] sm:$0xf]
      %v338 = vld [vmem:[%s1 + $0xc0] sm:$0xf]
      %v339 = vld [vmem:[%s1 + $0xc4] sm:$0xf]
      %v340 = vld [vmem:[%s1 + $0xc8] sm:$0xf]
      %v341 = vld [vmem:[%s1 + $0xcc] sm:$0xf]
      %v342 = vld [vmem:[%s1 + $0xd0] sm:$0xf]
      %v343 = vld [vmem:[%s1 + $0xd4] sm:$0xf]
      %v344 = vld [vmem:[%s1 + $0xd8] sm:$0xf]
      %v345 = vld [vmem:[%s1 + $0xdc] sm:$0xf]
      %v346 = vld [vmem:[%s1 + $0xe0] sm:$0xf]
      %v347 = vld [vmem:[%s1 + $0xe4] sm:$0xf]
      %v348 = vld [vmem:[%s1 + $0xe8] sm:$0xf]
      %v349 = vld [vmem:[%s1 + $0xec] sm:$0xf]
      %v350 = vld [vmem:[%s1 + $0xf0] sm:$0xf]
      %v351 = vld [vmem:[%s1 + $0xf4] sm:$0xf]
      %v352 = vld [vmem:[%s1 + $0xf8] sm:$0xf]
      %v353 = vld [vmem:[%s1 + $0xfc] sm:$0xf]
      %v354 = vld [vmem:[%s1 + $0x100] sm:$0xf]
      %v355 = vld [vmem:[%s1 + $0x104] sm:$0xf]
      %v356 = vld [vmem:[%s1 + $0x108] sm:$0xf]
      %v357 = vld [vmem:[%s1 + $0x10c] sm:$0xf]
      %v358 = vld [vmem:[%s1 + $0x110] sm:$0xf]
      %v359 = vld [vmem:[%s1 + $0x114] sm:$0xf]
      %v360 = vld [vmem:[%s1 + $0x118] sm:$0xf]
      %v361 = vld [vmem:[%s1 + $0x11c] sm:$0xf]
      %v362 = vld [vmem:[%s1 + $0x120] sm:$0xf]
      %v363 = vld [vmem:[%s1 + $0x124] sm:$0xf]
      %v364 = vld [vmem:[%s1 + $0x128] sm:$0xf]
      %v365 = vld [vmem:[%s1 + $0x12c] sm:$0xf]
      %v366 = vld [vmem:[%s1 + $0x130] sm:$0xf]
      %v367 = vld [vmem:[%s1 + $0x134] sm:$0xf]
      %v368 = vld [vmem:[%s1 + $0x138] sm:$0xf]
      %v369 = vld [vmem:[%s1 + $0x13c] sm:$0xf]
      %v370 = vld [vmem:[%s1 + $0x140] sm:$0xf]
      %v371 = vld [vmem:[%s1 + $0x144] sm:$0xf]
      %v372 = vld [vmem:[%s1 + $0x148] sm:$0xf]
      %v373 = vld [vmem:[%s1 + $0x14c] sm:$0xf]
      %v374 = vld [vmem:[%s1 + $0x150] sm:$0xf]
      %v375 = vld [vmem:[%s1 + $0x154] sm:$0xf]
      %v376 = vld [vmem:[%s1 + $0x158] sm:$0xf]
      %v377 = vld [vmem:[%s1 + $0x15c] sm:$0xf]
      %v378 = vld [vmem:[%s1 + $0x160] sm:$0xf]
      %v379 = vld [vmem:[%s1 + $0x164] sm:$0xf]
      %v380 = vld [vmem:[%s1 + $0x168] sm:$0xf]
      %v381 = vld [vmem:[%s1 + $0x16c] sm:$0xf]
      %v382 = vld [vmem:[%s1 + $0x170] sm:$0xf]
      %v383 = vld [vmem:[%s1 + $0x174] sm:$0xf]
      %v384 = vld [vmem:[%s1 + $0x178] sm:$0xf]
      %v385 = vld [vmem:[%s1 + $0x17c] sm:$0xf]
      %v386 = vld [vmem:[%s1 + $0x180] sm:$0xf]
      %v387 = vld [vmem:[%s1 + $0x184] sm:$0xf]
      %v388 = vld [vmem:[%s1 + $0x188] sm:$0xf]
      %v389 = vld [vmem:[%s1 + $0x18c] sm:$0xf]
      %v390 = vld [vmem:[%s2] sm:$0x1]
      %v392 = vlaneseq
      %v393 = vshrl.u32 %v392, 7
      %v394 = vsub.s32 0, %v393
      %v395 = vrot.slane %v390, %v394
      %v497 = vunpack.c.l.b16 %v290
      %v498 = vunpack.c.l.b16 %v291
      %v499 = vunpack.c.l.b16 %v292
      %v500 = vunpack.c.l.b16 %v293
      %v501 = vunpack.c.l.b16 %v294
      %v502 = vunpack.c.l.b16 %v295
      %v503 = vunpack.c.l.b16 %v296
      %v504 = vunpack.c.l.b16 %v297
      %v505 = vunpack.c.l.b16 %v298
      %v506 = vunpack.c.l.b16 %v299
      %v507 = vunpack.c.l.b16 %v300
      %v508 = vunpack.c.l.b16 %v301
      %v509 = vunpack.c.l.b16 %v302
      %v510 = vunpack.c.l.b16 %v303
      %v511 = vunpack.c.l.b16 %v304
      %v512 = vunpack.c.l.b16 %v305
      %v513 = vunpack.c.l.b16 %v306
      %v514 = vunpack.c.l.b16 %v307
      %v515 = vunpack.c.l.b16 %v308
      %v516 = vunpack.c.l.b16 %v309
      %v517 = vunpack.c.l.b16 %v310
      %v518 = vunpack.c.l.b16 %v311
      %v519 = vunpack.c.l.b16 %v312
      %v520 = vunpack.c.l.b16 %v313
      %v521 = vunpack.c.l.b16 %v314
      %v522 = vunpack.c.l.b16 %v315
      %v523 = vunpack.c.l.b16 %v316
      %v524 = vunpack.c.l.b16 %v317
      %v525 = vunpack.c.l.b16 %v318
      %v526 = vunpack.c.l.b16 %v319
      %v527 = vunpack.c.l.b16 %v320
      %v528 = vunpack.c.l.b16 %v321
      %v529 = vunpack.c.l.b16 %v322
      %v530 = vunpack.c.l.b16 %v323
      %v531 = vunpack.c.l.b16 %v324
      %v532 = vunpack.c.l.b16 %v325
      %v533 = vunpack.c.l.b16 %v326
      %v534 = vunpack.c.l.b16 %v327
      %v535 = vunpack.c.l.b16 %v328
      %v536 = vunpack.c.l.b16 %v329
      %v537 = vunpack.c.l.b16 %v330
      %v538 = vunpack.c.l.b16 %v331
      %v539 = vunpack.c.l.b16 %v332
      %v540 = vunpack.c.l.b16 %v333
      %v541 = vunpack.c.l.b16 %v334
      %v542 = vunpack.c.l.b16 %v335
      %v543 = vunpack.c.l.b16 %v336
      %v544 = vunpack.c.l.b16 %v337
      %v545 = vunpack.c.l.b16 %v338
      %v546 = vunpack.c.l.b16 %v339
      %v547 = vunpack.c.l.b16 %v340
      %v548 = vunpack.c.l.b16 %v341
      %v549 = vunpack.c.l.b16 %v342
      %v550 = vunpack.c.l.b16 %v343
      %v551 = vunpack.c.l.b16 %v344
      %v552 = vunpack.c.l.b16 %v345
      %v553 = vunpack.c.l.b16 %v346
      %v554 = vunpack.c.l.b16 %v347
      %v555 = vunpack.c.l.b16 %v348
      %v556 = vunpack.c.l.b16 %v349
      %v557 = vunpack.c.l.b16 %v350
      %v558 = vunpack.c.l.b16 %v351
      %v559 = vunpack.c.l.b16 %v352
      %v560 = vunpack.c.l.b16 %v353
      %v561 = vunpack.c.l.b16 %v354
      %v562 = vunpack.c.l.b16 %v355
      %v563 = vunpack.c.l.b16 %v356
      %v564 = vunpack.c.l.b16 %v357
      %v565 = vunpack.c.l.b16 %v358
      %v566 = vunpack.c.l.b16 %v359
      %v567 = vunpack.c.l.b16 %v360
      %v568 = vunpack.c.l.b16 %v361
      %v569 = vunpack.c.l.b16 %v362
      %v570 = vunpack.c.l.b16 %v363
      %v571 = vunpack.c.l.b16 %v364
      %v572 = vunpack.c.l.b16 %v365
      %v573 = vunpack.c.l.b16 %v366
      %v574 = vunpack.c.l.b16 %v367
      %v575 = vunpack.c.l.b16 %v368
      %v576 = vunpack.c.l.b16 %v369
      %v577 = vunpack.c.l.b16 %v370
      %v578 = vunpack.c.l.b16 %v371
      %v579 = vunpack.c.l.b16 %v372
      %v580 = vunpack.c.l.b16 %v373
      %v581 = vunpack.c.l.b16 %v374
      %v582 = vunpack.c.l.b16 %v375
      %v583 = vunpack.c.l.b16 %v376
      %v584 = vunpack.c.l.b16 %v377
      %v585 = vunpack.c.l.b16 %v378
      %v586 = vunpack.c.l.b16 %v379
      %v587 = vunpack.c.l.b16 %v380
      %v588 = vunpack.c.l.b16 %v381
      %v589 = vunpack.c.l.b16 %v382
      %v590 = vunpack.c.l.b16 %v383
      %v591 = vunpack.c.l.b16 %v384
      %v592 = vunpack.c.l.b16 %v385
      %v593 = vunpack.c.l.b16 %v386
      %v594 = vunpack.c.l.b16 %v387
      %v595 = vunpack.c.l.b16 %v388
      %v596 = vunpack.c.l.b16 %v389
      %v597 = vpack.c.b16 %v498, %v497
      %v598 = vpack.c.b16 %v500, %v499
      %v599 = vpack.c.b16 %v502, %v501
      %v600 = vpack.c.b16 %v504, %v503
      %v601 = vpack.c.b16 %v506, %v505
      %v602 = vpack.c.b16 %v508, %v507
      %v603 = vpack.c.b16 %v510, %v509
      %v604 = vpack.c.b16 %v512, %v511
      %v605 = vpack.c.b16 %v514, %v513
      %v606 = vpack.c.b16 %v516, %v515
      %v607 = vpack.c.b16 %v518, %v517
      %v608 = vpack.c.b16 %v520, %v519
      %v609 = vpack.c.b16 %v522, %v521
      %v610 = vpack.c.b16 %v524, %v523
      %v611 = vpack.c.b16 %v526, %v525
      %v612 = vpack.c.b16 %v528, %v527
      %v613 = vpack.c.b16 %v530, %v529
      %v614 = vpack.c.b16 %v532, %v531
      %v615 = vpack.c.b16 %v534, %v533
      %v616 = vpack.c.b16 %v536, %v535
      %v617 = vpack.c.b16 %v538, %v537
      %v618 = vpack.c.b16 %v540, %v539
      %v619 = vpack.c.b16 %v542, %v541
      %v620 = vpack.c.b16 %v544, %v543
      %v621 = vpack.c.b16 %v546, %v545
      %v622 = vpack.c.b16 %v548, %v547
      %v623 = vpack.c.b16 %v550, %v549
      %v624 = vpack.c.b16 %v552, %v551
      %v625 = vpack.c.b16 %v554, %v553
      %v626 = vpack.c.b16 %v556, %v555
      %v627 = vpack.c.b16 %v558, %v557
      %v628 = vpack.c.b16 %v560, %v559
      %v629 = vpack.c.b16 %v562, %v561
      %v630 = vpack.c.b16 %v564, %v563
      %v631 = vpack.c.b16 %v566, %v565
      %v632 = vpack.c.b16 %v568, %v567
      %v633 = vpack.c.b16 %v570, %v569
      %v634 = vpack.c.b16 %v572, %v571
      %v635 = vpack.c.b16 %v574, %v573
      %v636 = vpack.c.b16 %v576, %v575
      %v637 = vpack.c.b16 %v578, %v577
      %v638 = vpack.c.b16 %v580, %v579
      %v639 = vpack.c.b16 %v582, %v581
      %v640 = vpack.c.b16 %v584, %v583
      %v641 = vpack.c.b16 %v586, %v585
      %v642 = vpack.c.b16 %v588, %v587
      %v643 = vpack.c.b16 %v590, %v589
      %v644 = vpack.c.b16 %v592, %v591
      %v645 = vpack.c.b16 %v594, %v593
      %v646 = vpack.c.b16 %v596, %v595
      %vm697 = vcmask 261120
      %v699 = vsel %vm697, %v268, 0
      %v702 = vsel %vm697, %v275, 0
      %v705 = vsel %vm697, %v282, 0
      %v708 = vsel %vm697, %v289, 0
      %710 = vmatprep.subr.bf16.mxu0 0
      %711 = vmatpush1.bf16.msra.mxu0 %v597
      %712 = vmatprep.subr.bf16.mxu0 0
      %713 = vmatpush1.bf16.msra.mxu0 %v598
      %714 = vmatprep.subr.bf16.mxu0 0
      %715 = vmatpush1.bf16.msra.mxu0 %v599
      %716 = vmatprep.subr.bf16.mxu0 0
      %717 = vmatpush1.bf16.msra.mxu0 %v600
      %718 = vmatprep.subr.bf16.mxu0 0
      %719 = vmatpush1.bf16.msra.mxu0 %v601
      %720 = vmatprep.subr.bf16.mxu0 0
      %721 = vmatpush1.bf16.msra.mxu0 %v602
      %722 = vmatprep.subr.bf16.mxu0 0
      %723 = vmatpush1.bf16.msra.mxu0 %v603
      %724 = vmatprep.subr.bf16.mxu0 0
      %725 = vmatpush1.bf16.msra.mxu0 %v604
      %726 = vmatprep.subr.bf16.mxu0 0
      %727 = vmatpush1.bf16.msra.mxu0 %v605
      %728 = vmatprep.subr.bf16.mxu0 0
      %729 = vmatpush1.bf16.msra.mxu0 %v606
      %730 = vmatprep.subr.bf16.mxu0 0
      %731 = vmatpush1.bf16.msra.mxu0 %v607
      %732 = vmatprep.subr.bf16.mxu0 0
      %733 = vmatpush1.bf16.msra.mxu0 %v608
      %734 = vmatprep.subr.bf16.mxu0 0
      %735 = vmatpush1.bf16.msra.mxu0 %v609
      %736 = vmatprep.subr.bf16.mxu0 0
      %737 = vmatpush1.bf16.msra.mxu0 %v610
      %738 = vmatprep.subr.bf16.mxu0 0
      %739 = vmatpush1.bf16.msra.mxu0 %v611
      %740 = vmatprep.subr.bf16.mxu0 0
      %741 = vmatpush1.bf16.msra.mxu0 %v612
      %742 = vmatprep.mubr.bf16.mxu0 %v263
      %743 = vmatmul.mubr.bf16.gmra.mrb[0].mxu0 %v262
      %v744 = vpop.f32.mrb[0].mxu0
      %v745 = vadd.f32 %v395, %v744
      %v746 = vpop.f32.mrb[0].mxu0
      %v747 = vpop.f32.mrb[0].mxu0
      %v748 = vadd.f32 %v395, %v747
      %v749 = vpop.f32.mrb[0].mxu0
      %750 = vmatprep.mubr.bf16.mxu0 %v270
      %751 = vmatmul.mubr.bf16.gmra.mrb[0].mxu0 %v269
      %v752 = vpop.f32.mrb[0].mxu0
      %v753 = vadd.f32 %v395, %v752
      %v754 = vpop.f32.mrb[0].mxu0
      %v755 = vpop.f32.mrb[0].mxu0
      %v756 = vadd.f32 %v395, %v755
      %v757 = vpop.f32.mrb[0].mxu0
      %758 = vmatprep.mubr.bf16.mxu0 %v277
      %759 = vmatmul.mubr.bf16.gmra.mrb[0].mxu0 %v276
      %v760 = vpop.f32.mrb[0].mxu0
      %v761 = vadd.f32 %v395, %v760
      %v762 = vpop.f32.mrb[0].mxu0
      %v763 = vpop.f32.mrb[0].mxu0
      %v764 = vadd.f32 %v395, %v763
      %v765 = vpop.f32.mrb[0].mxu0
      %766 = vmatprep.mubr.bf16.mxu0 %v284
      %767 = vmatmul.mubr.bf16.gmra.mrb[0].mxu0 %v283
      %v768 = vpop.f32.mrb[0].mxu0
      %v769 = vadd.f32 %v395, %v768
      %v770 = vpop.f32.mrb[0].mxu0
      %v771 = vpop.f32.mrb[0].mxu0
      %v772 = vadd.f32 %v395, %v771
      %v773 = vpop.f32.mrb[0].mxu0
      %774 = vdwg.mxu0
      %775 = vmatprep.subr.bf16.mxu0 0
      %776 = vmatpush1.bf16.msra.mxu0 %v613
      %777 = vmatprep.subr.bf16.mxu0 0
      %778 = vmatpush1.bf16.msra.mxu0 %v614
      %779 = vmatprep.subr.bf16.mxu0 0
      %780 = vmatpush1.bf16.msra.mxu0 %v615
      %781 = vmatprep.subr.bf16.mxu0 0
      %782 = vmatpush1.bf16.msra.mxu0 %v616
      %783 = vmatprep.subr.bf16.mxu0 0
      %784 = vmatpush1.bf16.msra.mxu0 %v617
      %785 = vmatprep.subr.bf16.mxu0 0
      %786 = vmatpush1.bf16.msra.mxu0 %v618
      %787 = vmatprep.subr.bf16.mxu0 0
      %788 = vmatpush1.bf16.msra.mxu0 %v619
      %789 = vmatprep.subr.bf16.mxu0 0
      %790 = vmatpush1.bf16.msra.mxu0 %v620
      %791 = vmatprep.subr.bf16.mxu0 0
      %792 = vmatpush1.bf16.msra.mxu0 %v621
      %793 = vmatprep.subr.bf16.mxu0 0
      %794 = vmatpush1.bf16.msra.mxu0 %v622
      %795 = vmatprep.subr.bf16.mxu0 0
      %796 = vmatpush1.bf16.msra.mxu0 %v623
      %797 = vmatprep.subr.bf16.mxu0 0
      %798 = vmatpush1.bf16.msra.mxu0 %v624
      %799 = vmatprep.subr.bf16.mxu0 0
      %800 = vmatpush1.bf16.msra.mxu0 %v625
      %801 = vmatprep.subr.bf16.mxu0 0
      %802 = vmatpush1.bf16.msra.mxu0 %v626
      %803 = vmatprep.subr.bf16.mxu0 0
      %804 = vmatpush1.bf16.msra.mxu0 %v627
      %805 = vmatprep.subr.bf16.mxu0 0
      %806 = vmatpush1.bf16.msra.mxu0 %v628
      %807 = vmatprep.mubr.bf16.mxu0 %v265
      %808 = vmatmul.mubr.bf16.gmra.mrb[0].mxu0 %v264
      %v809 = vpop.f32.mrb[0].mxu0
      %v810 = vadd.f32 %v745, %v809
      %v811 = vpop.f32.mrb[0].mxu0
      %v812 = vpop.f32.mrb[0].mxu0
      %v813 = vadd.f32 %v748, %v812
      %v814 = vpop.f32.mrb[0].mxu0
      %815 = vmatprep.mubr.bf16.mxu0 %v272
      %816 = vmatmul.mubr.bf16.gmra.mrb[0].mxu0 %v271
      %v817 = vpop.f32.mrb[0].mxu0
      %v818 = vadd.f32 %v753, %v817
      %v819 = vpop.f32.mrb[0].mxu0
      %v820 = vpop.f32.mrb[0].mxu0
      %v821 = vadd.f32 %v756, %v820
      %v822 = vpop.f32.mrb[0].mxu0
      %823 = vmatprep.mubr.bf16.mxu0 %v279
      %824 = vmatmul.mubr.bf16.gmra.mrb[0].mxu0 %v278
      %v825 = vpop.f32.mrb[0].mxu0
      %v826 = vadd.f32 %v761, %v825
      %v827 = vpop.f32.mrb[0].mxu0
      %v828 = vpop.f32.mrb[0].mxu0
      %v829 = vadd.f32 %v764, %v828
      %v830 = vpop.f32.mrb[0].mxu0
      %831 = vmatprep.mubr.bf16.mxu0 %v286
      %832 = vmatmul.mubr.bf16.gmra.mrb[0].mxu0 %v285
      %v833 = vpop.f32.mrb[0].mxu0
      %v834 = vadd.f32 %v769, %v833
      %v835 = vpop.f32.mrb[0].mxu0
      %v836 = vpop.f32.mrb[0].mxu0
      %v837 = vadd.f32 %v772, %v836
      %v838 = vpop.f32.mrb[0].mxu0
      %839 = vdwg.mxu0
      %840 = vmatprep.subr.bf16.mxu0 0
      %841 = vmatpush1.bf16.msra.mxu0 %v629
      %842 = vmatprep.subr.bf16.mxu0 0
      %843 = vmatpush1.bf16.msra.mxu0 %v630
      %844 = vmatprep.subr.bf16.mxu0 0
      %845 = vmatpush1.bf16.msra.mxu0 %v631
      %846 = vmatprep.subr.bf16.mxu0 0
      %847 = vmatpush1.bf16.msra.mxu0 %v632
      %848 = vmatprep.subr.bf16.mxu0 0
      %849 = vmatpush1.bf16.msra.mxu0 %v633
      %850 = vmatprep.subr.bf16.mxu0 0
      %851 = vmatpush1.bf16.msra.mxu0 %v634
      %852 = vmatprep.subr.bf16.mxu0 0
      %853 = vmatpush1.bf16.msra.mxu0 %v635
      %854 = vmatprep.subr.bf16.mxu0 0
      %855 = vmatpush1.bf16.msra.mxu0 %v636
      %856 = vmatprep.subr.bf16.mxu0 0
      %857 = vmatpush1.bf16.msra.mxu0 %v637
      %858 = vmatprep.subr.bf16.mxu0 0
      %859 = vmatpush1.bf16.msra.mxu0 %v638
      %860 = vmatprep.subr.bf16.mxu0 0
      %861 = vmatpush1.bf16.msra.mxu0 %v639
      %862 = vmatprep.subr.bf16.mxu0 0
      %863 = vmatpush1.bf16.msra.mxu0 %v640
      %864 = vmatprep.subr.bf16.mxu0 0
      %865 = vmatpush1.bf16.msra.mxu0 %v641
      %866 = vmatprep.subr.bf16.mxu0 0
      %867 = vmatpush1.bf16.msra.mxu0 %v642
      %868 = vmatprep.subr.bf16.mxu0 0
      %869 = vmatpush1.bf16.msra.mxu0 %v643
      %870 = vmatprep.subr.bf16.mxu0 0
      %871 = vmatpush1.bf16.msra.mxu0 %v644
      %872 = vmatprep.mubr.bf16.mxu0 %v267
      %873 = vmatmul.mubr.bf16.gmra.mrb[0].mxu0 %v266
      %v874 = vpop.f32.mrb[0].mxu0
      %v875 = vadd.f32 %v810, %v874
      %v876 = vpop.f32.mrb[0].mxu0
      %v877 = vpop.f32.mrb[0].mxu0
      %v878 = vadd.f32 %v813, %v877
      %v879 = vpop.f32.mrb[0].mxu0
      %880 = vmatprep.mubr.bf16.mxu0 %v274
      %881 = vmatmul.mubr.bf16.gmra.mrb[0].mxu0 %v273
      %v882 = vpop.f32.mrb[0].mxu0
      %v883 = vadd.f32 %v818, %v882
      %v884 = vpop.f32.mrb[0].mxu0
      %v885 = vpop.f32.mrb[0].mxu0
      %v886 = vadd.f32 %v821, %v885
      %v887 = vpop.f32.mrb[0].mxu0
      %888 = vmatprep.mubr.bf16.mxu0 %v281
      %889 = vmatmul.mubr.bf16.gmra.mrb[0].mxu0 %v280
      %v890 = vpop.f32.mrb[0].mxu0
      %v891 = vadd.f32 %v826, %v890
      %v892 = vpop.f32.mrb[0].mxu0
      %v893 = vpop.f32.mrb[0].mxu0
      %v894 = vadd.f32 %v829, %v893
      %v895 = vpop.f32.mrb[0].mxu0
      %896 = vmatprep.mubr.bf16.mxu0 %v288
      %897 = vmatmul.mubr.bf16.gmra.mrb[0].mxu0 %v287
      %v898 = vpop.f32.mrb[0].mxu0
      %v899 = vadd.f32 %v834, %v898
      %v900 = vpop.f32.mrb[0].mxu0
      %v901 = vpop.f32.mrb[0].mxu0
      %v902 = vadd.f32 %v837, %v901
      %v903 = vpop.f32.mrb[0].mxu0
      %904 = vdwg.mxu0
      %905 = vmatprep.subr.bf16.mxu0 0
      %906 = vmatpush1.bf16.msra.mxu0 %v645
      %907 = vmatprep.subr.bf16.mxu0 0
      %908 = vmatpush1.bf16.msra.mxu0 %v646
      %909 = vmatprep.subr.bf16.mxu0 0
      %910 = vmatpush1.bf16.msra.mxu0 0
      %911 = vmatprep.subr.bf16.mxu0 0
      %912 = vmatpush1.bf16.msra.mxu0 0
      %913 = vmatprep.subr.bf16.mxu0 0
      %914 = vmatpush1.bf16.msra.mxu0 0
      %915 = vmatprep.subr.bf16.mxu0 0
      %916 = vmatpush1.bf16.msra.mxu0 0
      %917 = vmatprep.subr.bf16.mxu0 0
      %918 = vmatpush1.bf16.msra.mxu0 0
      %919 = vmatprep.subr.bf16.mxu0 0
      %920 = vmatpush1.bf16.msra.mxu0 0
      %921 = vmatprep.subr.bf16.mxu0 0
      %922 = vmatpush1.bf16.msra.mxu0 0
      %923 = vmatprep.subr.bf16.mxu0 0
      %924 = vmatpush1.bf16.msra.mxu0 0
      %925 = vmatprep.subr.bf16.mxu0 0
      %926 = vmatpush1.bf16.msra.mxu0 0
      %927 = vmatprep.subr.bf16.mxu0 0
      %928 = vmatpush1.bf16.msra.mxu0 0
      %929 = vmatprep.subr.bf16.mxu0 0
      %930 = vmatpush1.bf16.msra.mxu0 0
      %931 = vmatprep.subr.bf16.mxu0 0
      %932 = vmatpush1.bf16.msra.mxu0 0
      %933 = vmatprep.subr.bf16.mxu0 0
      %934 = vmatpush1.bf16.msra.mxu0 0
      %935 = vmatprep.subr.bf16.mxu0 0
      %936 = vmatpush1.bf16.msra.mxu0 0
      %937 = vmatprep.mubr.bf16.mxu0 0
      %938 = vmatmul.mubr.bf16.gmra.mrb[0].mxu0 %v699
      %v939 = vpop.f32.mrb[0].mxu0
      %v940 = vadd.f32 %v875, %v939
      %v941 = vpop.f32.mrb[0].mxu0
      %v942 = vpop.f32.mrb[0].mxu0
      %v943 = vadd.f32 %v878, %v942
      %v944 = vpop.f32.mrb[0].mxu0
      %945 = vmatprep.mubr.bf16.mxu0 0
      %946 = vmatmul.mubr.bf16.gmra.mrb[0].mxu0 %v702
      %v947 = vpop.f32.mrb[0].mxu0
      %v948 = vadd.f32 %v883, %v947
      %v949 = vpop.f32.mrb[0].mxu0
      %v950 = vpop.f32.mrb[0].mxu0
      %v951 = vadd.f32 %v886, %v950
      %v952 = vpop.f32.mrb[0].mxu0
      %953 = vmatprep.mubr.bf16.mxu0 0
      %954 = vmatmul.mubr.bf16.gmra.mrb[0].mxu0 %v705
      %v955 = vpop.f32.mrb[0].mxu0
      %v956 = vadd.f32 %v891, %v955
      %v957 = vpop.f32.mrb[0].mxu0
      %v958 = vpop.f32.mrb[0].mxu0
      %v959 = vadd.f32 %v894, %v958
      %v960 = vpop.f32.mrb[0].mxu0
      %961 = vmatprep.mubr.bf16.mxu0 0
      %962 = vmatmul.mubr.bf16.gmra.mrb[0].mxu0 %v708
      %v963 = vpop.f32.mrb[0].mxu0
      %v964 = vadd.f32 %v899, %v963
      %v965 = vpop.f32.mrb[0].mxu0
      %v966 = vpop.f32.mrb[0].mxu0
      %v967 = vadd.f32 %v902, %v966
      %v968 = vpop.f32.mrb[0].mxu0
      %969 = vdwg.mxu0
      %s970 = sld [smem:[#allocation2]]
      %v971 = vmax.f32 %v940, 0.0
      %v972 = vmax.f32 %v943, 0.0
      %v973 = vmax.f32 %v948, 0.0
      %v974 = vmax.f32 %v951, 0.0
      %v975 = vmax.f32 %v956, 0.0
      %v976 = vmax.f32 %v959, 0.0
      %v977 = vmax.f32 %v964, 0.0
      %v978 = vmax.f32 %v967, 0.0
      %v979 = vmin.f32 %v940, 0.0
      %v980 = vmin.f32 %v943, 0.0
      %v981 = vmin.f32 %v948, 0.0
      %v982 = vmin.f32 %v951, 0.0
      %v983 = vmin.f32 %v956, 0.0
      %v984 = vmin.f32 %v959, 0.0
      %v985 = vmin.f32 %v964, 0.0
      %v986 = vmin.f32 %v967, 0.0
      %v987 = vstv %s970
      %v988 = vmul.f32 %v987, %v979
      %v989 = vmul.f32 %v987, %v980
      %v990 = vmul.f32 %v987, %v981
      %v991 = vmul.f32 %v987, %v982
      %v992 = vmul.f32 %v987, %v983
      %v993 = vmul.f32 %v987, %v984
      %v994 = vmul.f32 %v987, %v985
      %v995 = vmul.f32 %v987, %v986
      %v996 = vadd.f32 %v971, %v988
      %v997 = vadd.f32 %v972, %v989
      %v998 = vadd.f32 %v973, %v990
      %v999 = vadd.f32 %v974, %v991
      %v1000 = vadd.f32 %v975, %v992
      %v1001 = vadd.f32 %v976, %v993
      %v1002 = vadd.f32 %v977, %v994
      %v1003 = vadd.f32 %v978, %v995
      %vm1004 = vcmask 523264
      %1005 = vst.msk [vmem:[%s203] sm:$0xff] %vm1004, %v996
      %1006 = vst.msk [vmem:[%s203 + $0x8] sm:$0xff] %vm1004, %v997
      %1007 = vst.msk [vmem:[%s203 + $0x10] sm:$0xff] %vm1004, %v998
      %1008 = vst.msk [vmem:[%s203 + $0x18] sm:$0xff] %vm1004, %v999
      %1009 = vst.msk [vmem:[%s203 + $0x20] sm:$0xff] %vm1004, %v1000
      %1010 = vst.msk [vmem:[%s203 + $0x28] sm:$0xff] %vm1004, %v1001
      %1011 = vst.msk [vmem:[%s203 + $0x30] sm:$0xff] %vm1004, %v1002
      %1012 = vst.msk [vmem:[%s203 + $0x38] sm:$0xff] %vm1004, %v1003
      %s1013 = smul.u32 8, %s16
      %p1014 = scmp.lt.s32.totalorder %s1013, 15
      %s1015 = scalar_select %p1014, %s1013, 15
      %s1016 = smul.addr %s1015, 8
      %s1017 = scalar_lea.vmem %s4, %s1016
      // Predicated region
      $region37: #{_lambda_.7} parent=35 // pred_check
        %p1018 = pneg %p123
      $region38: #{_lambda_.7} parent=35 // pred_check_branch
        %1020 = sbr.rel (%p1018) target = $region40
      $region39: #{_lambda_.7} parent=35 // pred_region
        %s1021 = smul.u32 8, %s16
      $region40: #{_lambda_.7} parent=35 // pred_fallthru
        _
    $region36: #{_lambda_.7} parent=5 // pred_fallthru
      _
    %p1022 = scmp.le.s32.totalorder 2, %s11
    // Predicated region
    $region41: #{_lambda_.7} parent=5 // pred_check
      %p1023 = pneg %p1022
    $region42: #{_lambda_.7} parent=5 // pred_check_branch
      %1025 = sbr.rel (%p1023) target = $region44
    $region43: #{_lambda_.7} parent=5 // pred_region
      %s1026 = ssub.s32 %s11, 2
      // Predicated region
      $region45: #{_lambda_.7} parent=43 // pred_check
        %p1027 = pneg %p129
      $region46: #{_lambda_.7} parent=43 // pred_check_branch
        %1029 = sbr.rel (%p1027) target = $region48
      $region47: #{_lambda_.7} parent=43 // pred_region
        %s1030 = smul.u32 8, %s17
        %p1031 = scmp.lt.s32.totalorder %s1030, 15
        %s1032 = scalar_select %p1031, %s1030, 15
        %s1033 = smul.addr %s1032, 8
        %s1034 = scalar_lea.vmem %s4, %s1033
      $region48: #{_lambda_.7} parent=43 // pred_fallthru
        _
    $region44: #{_lambda_.7} parent=5 // pred_fallthru
      _
  $region6: #{_lambda_.7} parent=0 // loop_footer
    %s15 = sadd.s32 1, %s11
  $region7: #{_lambda_.7} parent=0 // loop_footer_branch
    %10 = sbr.rel target = $region3
  $region8: #{_lambda_.7} parent=0 // loop_exit
    _

// kernel: _lambda_.8
$region0: #{_lambda_.8}
  #allocation0 [shape = 'u32[]', space=smem, size = 0x4, offset = 0x4, fixed_abs, tag = 'smem constant byte address 0x4 - core index']
  #allocation1 [shape = 'u32[144,128]{1,0:T(1,128)}', space=vmem, size = 0x12000, scoped, tag = 'internal scratch']
  %s0 = inlined_call_operand.vmem [shape: f32[8,256], index: 0, kind: input, shape index: {}]
  %s1 = inlined_call_operand.vmem [shape: f32[8,256], index: 1, kind: input, shape index: {}]
  %s2 = inlined_call_operand.vmem [shape: f32[8,256], index: 2, kind: input, shape index: {}]
  %s3 = inlined_call_operand.vmem [shape: f32[8,256], index: 3, kind: input, shape index: {}]
  %s4 = inlined_call_operand.vmem [shape: f32[8,256], index: 4, kind: output, shape index: {}]
  %s5 = sld [smem:[#allocation0]]
  $region26: #{_lambda_.8} parent=0
    _
  %s7 = ssub.s32 1, %s5
  %s8 = scalar_select 0, %s7, %s5
  // Predicated region
  $region2: #{_lambda_.8} parent=0 // pred_check
    _
  $region3: #{_lambda_.8} parent=0 // pred_check_branch
    %10 = sbr.rel (0) target = $region5
  $region4: #{_lambda_.8} parent=0 // pred_region
    _
  $region5: #{_lambda_.8} parent=0 // pred_fallthru
    _
  // Predicated region
  $region6: #{_lambda_.8} parent=0 // pred_check
    _
  $region7: #{_lambda_.8} parent=0 // pred_check_branch
    %12 = sbr.rel (0) target = $region9
  $region8: #{_lambda_.8} parent=0 // pred_region
    _
  $region9: #{_lambda_.8} parent=0 // pred_fallthru
    _
  // Predicated region
  $region10: #{_lambda_.8} parent=0 // pred_check
    _
  $region11: #{_lambda_.8} parent=0 // pred_check_branch
    %14 = sbr.rel (0) target = $region13
  $region12: #{_lambda_.8} parent=0 // pred_region
    _
  $region13: #{_lambda_.8} parent=0 // pred_fallthru
    _
  // Predicated region
  $region14: #{_lambda_.8} parent=0 // pred_check
    _
  $region15: #{_lambda_.8} parent=0 // pred_check_branch
    %16 = sbr.rel (0) target = $region17
  $region16: #{_lambda_.8} parent=0 // pred_region
    _
  $region17: #{_lambda_.8} parent=0 // pred_fallthru
    _
  %v17 = vld [vmem:[%s0] sm:$0xff]
  %v18 = vld [vmem:[%s0 + $0x8] sm:$0xff]
  %v19 = vld [vmem:[%s1] sm:$0xff]
  %v20 = vld [vmem:[%s1 + $0x8] sm:$0xff]
  %v21 = vmax.f32 %v17, %v19
  %v22 = vmax.f32 %v18, %v20
  %v23 = vld [vmem:[%s2] sm:$0xff]
  %v24 = vld [vmem:[%s2 + $0x8] sm:$0xff]
  %v25 = vld [vmem:[%s3] sm:$0xff]
  %v26 = vld [vmem:[%s3 + $0x8] sm:$0xff]
  %v27 = vmax.f32 %v23, %v25
  %v28 = vmax.f32 %v24, %v26
  %v29 = vmax.f32 %v21, %v27
  %v30 = vmax.f32 %v22, %v28
  %31 = vst [vmem:[%s4] sm:$0xff] %v29
  %32 = vst [vmem:[%s4 + $0x8] sm:$0xff] %v30
  // Predicated region
  $region18: #{_lambda_.8} parent=0 // pred_check
    _
  $region19: #{_lambda_.8} parent=0 // pred_check_branch
    %34 = sbr.rel (0) target = $region21
  $region20: #{_lambda_.8} parent=0 // pred_region
    _
  $region21: #{_lambda_.8} parent=0 // pred_fallthru
    _
  // Predicated region
  $region22: #{_lambda_.8} parent=0 // pred_check
    _
  $region23: #{_lambda_.8} parent=0 // pred_check_branch
    %36 = sbr.rel (0) target = $region25
  $region24: #{_lambda_.8} parent=0 // pred_region
    _
  $region25: #{_lambda_.8} parent=0 // pred_fallthru
    _

// kernel: _lambda_.9
$region0: #{_lambda_.9}
  #allocation0 [shape = 'u32[]', space=smem, size = 0x4, offset = 0x4, fixed_abs, tag = 'smem constant byte address 0x4 - core index']
  #allocation1 [shape = 'u32[144,128]{1,0:T(1,128)}', space=vmem, size = 0x12000, scoped, tag = 'internal scratch']
  %s0 = inlined_call_operand.vmem [shape: f32[2,1024], index: 0, kind: input, shape index: {}]
  %s1 = inlined_call_operand.vmem [shape: bf16[1024,256], index: 1, kind: input, shape index: {}]
  %s2 = inlined_call_operand.vmem [shape: f32[1,256], index: 2, kind: input, shape index: {}]
  %s3 = inlined_call_operand.vmem [shape: bf16[256,256], index: 3, kind: input, shape index: {}]
  %s4 = inlined_call_operand.vmem [shape: f32[1,256], index: 4, kind: input, shape index: {}]
  %s5 = inlined_call_operand.vmem [shape: bf16[256,128], index: 5, kind: input, shape index: {}]
  %s6 = inlined_call_operand.vmem [shape: f32[1,128], index: 6, kind: input, shape index: {}]
  %s7 = inlined_call_operand.vmem [shape: f32[2], index: 7, kind: input, shape index: {}]
  %s8 = inlined_call_operand.hbm [shape: f32[2,128], index: 8, kind: output, shape index: {}]
  %s9 = sld [smem:[#allocation0]]
  $region46: #{_lambda_.9} parent=0
    _
  %s11 = ssub.s32 1, %s9
  %s12 = scalar_select 0, %s11, %s9
  $region1: #{_lambda_.9} parent=0
    #allocation2 [shape = 'u8[512]{0}', space=smem, size = 0x200, scoped, tag = 'input window, operand 7, single buffered']
    #allocation3 [shape = 's32[1]{0}', space=sflag, size = 0x4, scoped, tag = 'scoped memory for _lambda_.9']
    #allocation4 [shape = 's32[1]{0}', space=sflag, size = 0x4, scoped, tag = 'scoped memory for _lambda_.9']
    #allocation5 [shape = 'u8[1024]{0}', space=vmem, size = 0x400, scoped, tag = 'output window, operand 0, single buffered']
    %13 = vsyncpa [#allocation4], 0
    %14 = vsyncpa [#allocation3], 0
    // Predicated region
    $region2: #{_lambda_.9} parent=1 // pred_check
      _
    $region3: #{_lambda_.9} parent=1 // pred_check_branch
      %16 = sbr.rel (0) target = $region5
    $region4: #{_lambda_.9} parent=1 // pred_region
      _
    $region5: #{_lambda_.9} parent=1 // pred_fallthru
      _
    // Predicated region
    $region6: #{_lambda_.9} parent=1 // pred_check
      _
    $region7: #{_lambda_.9} parent=1 // pred_check_branch
      %18 = sbr.rel (0) target = $region9
    $region8: #{_lambda_.9} parent=1 // pred_region
      _
    $region9: #{_lambda_.9} parent=1 // pred_fallthru
      _
    // Predicated region
    $region10: #{_lambda_.9} parent=1 // pred_check
      _
    $region11: #{_lambda_.9} parent=1 // pred_check_branch
      %20 = sbr.rel (0) target = $region13
    $region12: #{_lambda_.9} parent=1 // pred_region
      _
    $region13: #{_lambda_.9} parent=1 // pred_fallthru
      _
    // Predicated region
    $region14: #{_lambda_.9} parent=1 // pred_check
      _
    $region15: #{_lambda_.9} parent=1 // pred_check_branch
      %22 = sbr.rel (0) target = $region17
    $region16: #{_lambda_.9} parent=1 // pred_region
      _
    $region17: #{_lambda_.9} parent=1 // pred_fallthru
      _
    // Predicated region
    $region18: #{_lambda_.9} parent=1 // pred_check
      _
    $region19: #{_lambda_.9} parent=1 // pred_check_branch
      %24 = sbr.rel (0) target = $region21
    $region20: #{_lambda_.9} parent=1 // pred_region
      _
    $region21: #{_lambda_.9} parent=1 // pred_fallthru
      _
    // Predicated region
    $region22: #{_lambda_.9} parent=1 // pred_check
      _
    $region23: #{_lambda_.9} parent=1 // pred_check_branch
      %26 = sbr.rel (0) target = $region25
    $region24: #{_lambda_.9} parent=1 // pred_region
      _
    $region25: #{_lambda_.9} parent=1 // pred_fallthru
      _
    // Predicated region
    $region26: #{_lambda_.9} parent=1 // pred_check
      _
    $region27: #{_lambda_.9} parent=1 // pred_check_branch
      %28 = sbr.rel (0) target = $region29
    $region28: #{_lambda_.9} parent=1 // pred_region
      _
    $region29: #{_lambda_.9} parent=1 // pred_fallthru
      _
    // Predicated region
    $region30: #{_lambda_.9} parent=1 // pred_check
      _
    $region31: #{_lambda_.9} parent=1 // pred_check_branch
      %30 = sbr.rel (0) target = $region33
    $region32: #{_lambda_.9} parent=1 // pred_region
      %s32 = ssub.s32 16, 16
      %33 = vsyncadd [#allocation4], %s32
      %s35 = sshll.u32 %s7, 4
      %s36 = int_to_ptr.vmem [resolvable:$true] %s35
      %38 = dma.vmem_to_smem %s36, 16, [#allocation2], [#allocation4]
    $region33: #{_lambda_.9} parent=1 // pred_fallthru
      _
    // Predicated region
    $region34: #{_lambda_.9} parent=1 // pred_check
      _
    $region35: #{_lambda_.9} parent=1 // pred_check_branch
      %40 = sbr.rel (0) target = $region37
    $region36: #{_lambda_.9} parent=1 // pred_region
      %41 = dma.done [#allocation4], 16
    $region37: #{_lambda_.9} parent=1 // pred_fallthru
      _
    %42 = sfence
    %v44 = vld [vmem:[%s0] sm:$0xff]
    %v45 = vld [vmem:[%s0 + $0x8] sm:$0xff]
    %v48 = vcombine.high %v44, %v44
    %v50 = vunpack.c.l.s4 1983009808
    %v51 = vunpack.c.0.s8 %v50
    %v52 = vlaneseq
    %v53 = vshrl.u32 %v52, 7
    %v54 = vsub.s32 %v51, %v53
    %v55 = vrot.slane %v44, %v54
    %v57 = vunpack.c.l.s4 1983009808
    %v58 = vunpack.c.0.s8 %v57
    %v59 = vlaneseq
    %v60 = vshrl.u32 %v59, 7
    %v61 = vsub.s32 %v58, %v60
    %v62 = vrot.slane %v48, %v61
    %v63 = vcombine.high %v55, %v55
    %v64 = vcombine.high %v62, %v62
    %v65 = vcombine.high %v45, %v45
    %v67 = vunpack.c.l.s4 1983009808
    %v68 = vunpack.c.0.s8 %v67
    %v69 = vlaneseq
    %v70 = vshrl.u32 %v69, 7
    %v71 = vsub.s32 %v68, %v70
    %v72 = vrot.slane %v45, %v71
    %v74 = vunpack.c.l.s4 1983009808
    %v75 = vunpack.c.0.s8 %v74
    %v76 = vlaneseq
    %v77 = vshrl.u32 %v76, 7
    %v78 = vsub.s32 %v75, %v77
    %v79 = vrot.slane %v65, %v78
    %v80 = vcombine.high %v72, %v72
    %v81 = vcombine.high %v79, %v79
    %v90 = vpack.c.bf16 %v55, %v55
    %v91 = vpack.c.bf16 %v63, %v63
    %v92 = vpack.c.bf16 %v62, %v62
    %v93 = vpack.c.bf16 %v64, %v64
    %v94 = vpack.c.bf16 %v72, %v72
    %v95 = vpack.c.bf16 %v80, %v80
    %v96 = vpack.c.bf16 %v79, %v79
    %v97 = vpack.c.bf16 %v81, %v81
    %v98 = vld [vmem:[%s1] sm:$0xff]
    %v99 = vld [vmem:[%s1 + $0x8] sm:$0xff]
    %v100 = vld [vmem:[%s1 + $0x10] sm:$0xff]
    %v101 = vld [vmem:[%s1 + $0x18] sm:$0xff]
    %v102 = vld [vmem:[%s1 + $0x20] sm:$0xff]
    %v103 = vld [vmem:[%s1 + $0x28] sm:$0xff]
    %v104 = vld [vmem:[%s1 + $0x30] sm:$0xff]
    %v105 = vld [vmem:[%s1 + $0x38] sm:$0xff]
    %v106 = vld [vmem:[%s1 + $0x40] sm:$0xff]
    %v107 = vld [vmem:[%s1 + $0x48] sm:$0xff]
    %v108 = vld [vmem:[%s1 + $0x50] sm:$0xff]
    %v109 = vld [vmem:[%s1 + $0x58] sm:$0xff]
    %v110 = vld [vmem:[%s1 + $0x60] sm:$0xff]
    %v111 = vld [vmem:[%s1 + $0x68] sm:$0xff]
    %v112 = vld [vmem:[%s1 + $0x70] sm:$0xff]
    %v113 = vld [vmem:[%s1 + $0x78] sm:$0xff]
    %v114 = vld [vmem:[%s1 + $0x80] sm:$0xff]
    %v115 = vld [vmem:[%s1 + $0x88] sm:$0xff]
    %v116 = vld [vmem:[%s1 + $0x90] sm:$0xff]
    %v117 = vld [vmem:[%s1 + $0x98] sm:$0xff]
    %v118 = vld [vmem:[%s1 + $0xa0] sm:$0xff]
    %v119 = vld [vmem:[%s1 + $0xa8] sm:$0xff]
    %v120 = vld [vmem:[%s1 + $0xb0] sm:$0xff]
    %v121 = vld [vmem:[%s1 + $0xb8] sm:$0xff]
    %v122 = vld [vmem:[%s1 + $0xc0] sm:$0xff]
    %v123 = vld [vmem:[%s1 + $0xc8] sm:$0xff]
    %v124 = vld [vmem:[%s1 + $0xd0] sm:$0xff]
    %v125 = vld [vmem:[%s1 + $0xd8] sm:$0xff]
    %v126 = vld [vmem:[%s1 + $0xe0] sm:$0xff]
    %v127 = vld [vmem:[%s1 + $0xe8] sm:$0xff]
    %v128 = vld [vmem:[%s1 + $0xf0] sm:$0xff]
    %v129 = vld [vmem:[%s1 + $0xf8] sm:$0xff]
    %v130 = vld [vmem:[%s1 + $0x100] sm:$0xff]
    %v131 = vld [vmem:[%s1 + $0x108] sm:$0xff]
    %v132 = vld [vmem:[%s1 + $0x110] sm:$0xff]
    %v133 = vld [vmem:[%s1 + $0x118] sm:$0xff]
    %v134 = vld [vmem:[%s1 + $0x120] sm:$0xff]
    %v135 = vld [vmem:[%s1 + $0x128] sm:$0xff]
    %v136 = vld [vmem:[%s1 + $0x130] sm:$0xff]
    %v137 = vld [vmem:[%s1 + $0x138] sm:$0xff]
    %v138 = vld [vmem:[%s1 + $0x140] sm:$0xff]
    %v139 = vld [vmem:[%s1 + $0x148] sm:$0xff]
    %v140 = vld [vmem:[%s1 + $0x150] sm:$0xff]
    %v141 = vld [vmem:[%s1 + $0x158] sm:$0xff]
    %v142 = vld [vmem:[%s1 + $0x160] sm:$0xff]
    %v143 = vld [vmem:[%s1 + $0x168] sm:$0xff]
    %v144 = vld [vmem:[%s1 + $0x170] sm:$0xff]
    %v145 = vld [vmem:[%s1 + $0x178] sm:$0xff]
    %v146 = vld [vmem:[%s1 + $0x180] sm:$0xff]
    %v147 = vld [vmem:[%s1 + $0x188] sm:$0xff]
    %v148 = vld [vmem:[%s1 + $0x190] sm:$0xff]
    %v149 = vld [vmem:[%s1 + $0x198] sm:$0xff]
    %v150 = vld [vmem:[%s1 + $0x1a0] sm:$0xff]
    %v151 = vld [vmem:[%s1 + $0x1a8] sm:$0xff]
    %v152 = vld [vmem:[%s1 + $0x1b0] sm:$0xff]
    %v153 = vld [vmem:[%s1 + $0x1b8] sm:$0xff]
    %v154 = vld [vmem:[%s1 + $0x1c0] sm:$0xff]
    %v155 = vld [vmem:[%s1 + $0x1c8] sm:$0xff]
    %v156 = vld [vmem:[%s1 + $0x1d0] sm:$0xff]
    %v157 = vld [vmem:[%s1 + $0x1d8] sm:$0xff]
    %v158 = vld [vmem:[%s1 + $0x1e0] sm:$0xff]
    %v159 = vld [vmem:[%s1 + $0x1e8] sm:$0xff]
    %v160 = vld [vmem:[%s1 + $0x1f0] sm:$0xff]
    %v161 = vld [vmem:[%s1 + $0x1f8] sm:$0xff]
    %v162 = vld [vmem:[%s1 + $0x200] sm:$0xff]
    %v163 = vld [vmem:[%s1 + $0x208] sm:$0xff]
    %v164 = vld [vmem:[%s1 + $0x210] sm:$0xff]
    %v165 = vld [vmem:[%s1 + $0x218] sm:$0xff]
    %v166 = vld [vmem:[%s1 + $0x220] sm:$0xff]
    %v167 = vld [vmem:[%s1 + $0x228] sm:$0xff]
    %v168 = vld [vmem:[%s1 + $0x230] sm:$0xff]
    %v169 = vld [vmem:[%s1 + $0x238] sm:$0xff]
    %v170 = vld [vmem:[%s1 + $0x240] sm:$0xff]
    %v171 = vld [vmem:[%s1 + $0x248] sm:$0xff]
    %v172 = vld [vmem:[%s1 + $0x250] sm:$0xff]
    %v173 = vld [vmem:[%s1 + $0x258] sm:$0xff]
    %v174 = vld [vmem:[%s1 + $0x260] sm:$0xff]
    %v175 = vld [vmem:[%s1 + $0x268] sm:$0xff]
    %v176 = vld [vmem:[%s1 + $0x270] sm:$0xff]
    %v177 = vld [vmem:[%s1 + $0x278] sm:$0xff]
    %v178 = vld [vmem:[%s1 + $0x280] sm:$0xff]
    %v179 = vld [vmem:[%s1 + $0x288] sm:$0xff]
    %v180 = vld [vmem:[%s1 + $0x290] sm:$0xff]
    %v181 = vld [vmem:[%s1 + $0x298] sm:$0xff]
    %v182 = vld [vmem:[%s1 + $0x2a0] sm:$0xff]
    %v183 = vld [vmem:[%s1 + $0x2a8] sm:$0xff]
    %v184 = vld [vmem:[%s1 + $0x2b0] sm:$0xff]
    %v185 = vld [vmem:[%s1 + $0x2b8] sm:$0xff]
    %v186 = vld [vmem:[%s1 + $0x2c0] sm:$0xff]
    %v187 = vld [vmem:[%s1 + $0x2c8] sm:$0xff]
    %v188 = vld [vmem:[%s1 + $0x2d0] sm:$0xff]
    %v189 = vld [vmem:[%s1 + $0x2d8] sm:$0xff]
    %v190 = vld [vmem:[%s1 + $0x2e0] sm:$0xff]
    %v191 = vld [vmem:[%s1 + $0x2e8] sm:$0xff]
    %v192 = vld [vmem:[%s1 + $0x2f0] sm:$0xff]
    %v193 = vld [vmem:[%s1 + $0x2f8] sm:$0xff]
    %v194 = vld [vmem:[%s1 + $0x300] sm:$0xff]
    %v195 = vld [vmem:[%s1 + $0x308] sm:$0xff]
    %v196 = vld [vmem:[%s1 + $0x310] sm:$0xff]
    %v197 = vld [vmem:[%s1 + $0x318] sm:$0xff]
    %v198 = vld [vmem:[%s1 + $0x320] sm:$0xff]
    %v199 = vld [vmem:[%s1 + $0x328] sm:$0xff]
    %v200 = vld [vmem:[%s1 + $0x330] sm:$0xff]
    %v201 = vld [vmem:[%s1 + $0x338] sm:$0xff]
    %v202 = vld [vmem:[%s1 + $0x340] sm:$0xff]
    %v203 = vld [vmem:[%s1 + $0x348] sm:$0xff]
    %v204 = vld [vmem:[%s1 + $0x350] sm:$0xff]
    %v205 = vld [vmem:[%s1 + $0x358] sm:$0xff]
    %v206 = vld [vmem:[%s1 + $0x360] sm:$0xff]
    %v207 = vld [vmem:[%s1 + $0x368] sm:$0xff]
    %v208 = vld [vmem:[%s1 + $0x370] sm:$0xff]
    %v209 = vld [vmem:[%s1 + $0x378] sm:$0xff]
    %v210 = vld [vmem:[%s1 + $0x380] sm:$0xff]
    %v211 = vld [vmem:[%s1 + $0x388] sm:$0xff]
    %v212 = vld [vmem:[%s1 + $0x390] sm:$0xff]
    %v213 = vld [vmem:[%s1 + $0x398] sm:$0xff]
    %v214 = vld [vmem:[%s1 + $0x3a0] sm:$0xff]
    %v215 = vld [vmem:[%s1 + $0x3a8] sm:$0xff]
    %v216 = vld [vmem:[%s1 + $0x3b0] sm:$0xff]
    %v217 = vld [vmem:[%s1 + $0x3b8] sm:$0xff]
    %v218 = vld [vmem:[%s1 + $0x3c0] sm:$0xff]
    %v219 = vld [vmem:[%s1 + $0x3c8] sm:$0xff]
    %v220 = vld [vmem:[%s1 + $0x3d0] sm:$0xff]
    %v221 = vld [vmem:[%s1 + $0x3d8] sm:$0xff]
    %v222 = vld [vmem:[%s1 + $0x3e0] sm:$0xff]
    %v223 = vld [vmem:[%s1 + $0x3e8] sm:$0xff]
    %v224 = vld [vmem:[%s1 + $0x3f0] sm:$0xff]
    %v225 = vld [vmem:[%s1 + $0x3f8] sm:$0xff]
    %v226 = vld [vmem:[%s2] sm:$0x3]
    %v228 = vlaneseq
    %v229 = vshrl.u32 %v228, 7
    %v230 = vsub.s32 0, %v229
    %v231 = vrot.slane %v226, %v230
    %v232 = vlaneseq
    %v233 = vshrl.u32 %v232, 7
    %v234 = vsub.s32 1, %v233
    %v235 = vrot.slane %v226, %v234
    %v366 = vunpack.c.l.b16 %v98
    %v367 = vunpack.c.h.b16 %v98
    %v368 = vunpack.c.l.b16 %v99
    %v369 = vunpack.c.h.b16 %v99
    %v370 = vunpack.c.l.b16 %v100
    %v371 = vunpack.c.h.b16 %v100
    %v372 = vunpack.c.l.b16 %v101
    %v373 = vunpack.c.h.b16 %v101
    %v374 = vunpack.c.l.b16 %v102
    %v375 = vunpack.c.h.b16 %v102
    %v376 = vunpack.c.l.b16 %v103
    %v377 = vunpack.c.h.b16 %v103
    %v378 = vunpack.c.l.b16 %v104
    %v379 = vunpack.c.h.b16 %v104
    %v380 = vunpack.c.l.b16 %v105
    %v381 = vunpack.c.h.b16 %v105
    %v382 = vunpack.c.l.b16 %v106
    %v383 = vunpack.c.h.b16 %v106
    %v384 = vunpack.c.l.b16 %v107
    %v385 = vunpack.c.h.b16 %v107
    %v386 = vunpack.c.l.b16 %v108
    %v387 = vunpack.c.h.b16 %v108
    %v388 = vunpack.c.l.b16 %v109
    %v389 = vunpack.c.h.b16 %v109
    %v390 = vunpack.c.l.b16 %v110
    %v391 = vunpack.c.h.b16 %v110
    %v392 = vunpack.c.l.b16 %v111
    %v393 = vunpack.c.h.b16 %v111
    %v394 = vunpack.c.l.b16 %v112
    %v395 = vunpack.c.h.b16 %v112
    %v396 = vunpack.c.l.b16 %v113
    %v397 = vunpack.c.h.b16 %v113
    %v398 = vunpack.c.l.b16 %v114
    %v399 = vunpack.c.h.b16 %v114
    %v400 = vunpack.c.l.b16 %v115
    %v401 = vunpack.c.h.b16 %v115
    %v402 = vunpack.c.l.b16 %v116
    %v403 = vunpack.c.h.b16 %v116
    %v404 = vunpack.c.l.b16 %v117
    %v405 = vunpack.c.h.b16 %v117
    %v406 = vunpack.c.l.b16 %v118
    %v407 = vunpack.c.h.b16 %v118
    %v408 = vunpack.c.l.b16 %v119
    %v409 = vunpack.c.h.b16 %v119
    %v410 = vunpack.c.l.b16 %v120
    %v411 = vunpack.c.h.b16 %v120
    %v412 = vunpack.c.l.b16 %v121
    %v413 = vunpack.c.h.b16 %v121
    %v414 = vunpack.c.l.b16 %v122
    %v415 = vunpack.c.h.b16 %v122
    %v416 = vunpack.c.l.b16 %v123
    %v417 = vunpack.c.h.b16 %v123
    %v418 = vunpack.c.l.b16 %v124
    %v419 = vunpack.c.h.b16 %v124
    %v420 = vunpack.c.l.b16 %v125
    %v421 = vunpack.c.h.b16 %v125
    %v422 = vunpack.c.l.b16 %v126
    %v423 = vunpack.c.h.b16 %v126
    %v424 = vunpack.c.l.b16 %v127
    %v425 = vunpack.c.h.b16 %v127
    %v426 = vunpack.c.l.b16 %v128
    %v427 = vunpack.c.h.b16 %v128
    %v428 = vunpack.c.l.b16 %v129
    %v429 = vunpack.c.h.b16 %v129
    %v430 = vunpack.c.l.b16 %v130
    %v431 = vunpack.c.h.b16 %v130
    %v432 = vunpack.c.l.b16 %v131
    %v433 = vunpack.c.h.b16 %v131
    %v434 = vunpack.c.l.b16 %v132
    %v435 = vunpack.c.h.b16 %v132
    %v436 = vunpack.c.l.b16 %v133
    %v437 = vunpack.c.h.b16 %v133
    %v438 = vunpack.c.l.b16 %v134
    %v439 = vunpack.c.h.b16 %v134
    %v440 = vunpack.c.l.b16 %v135
    %v441 = vunpack.c.h.b16 %v135
    %v442 = vunpack.c.l.b16 %v136
    %v443 = vunpack.c.h.b16 %v136
    %v444 = vunpack.c.l.b16 %v137
    %v445 = vunpack.c.h.b16 %v137
    %v446 = vunpack.c.l.b16 %v138
    %v447 = vunpack.c.h.b16 %v138
    %v448 = vunpack.c.l.b16 %v139
    %v449 = vunpack.c.h.b16 %v139
    %v450 = vunpack.c.l.b16 %v140
    %v451 = vunpack.c.h.b16 %v140
    %v452 = vunpack.c.l.b16 %v141
    %v453 = vunpack.c.h.b16 %v141
    %v454 = vunpack.c.l.b16 %v142
    %v455 = vunpack.c.h.b16 %v142
    %v456 = vunpack.c.l.b16 %v143
    %v457 = vunpack.c.h.b16 %v143
    %v458 = vunpack.c.l.b16 %v144
    %v459 = vunpack.c.h.b16 %v144
    %v460 = vunpack.c.l.b16 %v145
    %v461 = vunpack.c.h.b16 %v145
    %v462 = vunpack.c.l.b16 %v146
    %v463 = vunpack.c.h.b16 %v146
    %v464 = vunpack.c.l.b16 %v147
    %v465 = vunpack.c.h.b16 %v147
    %v466 = vunpack.c.l.b16 %v148
    %v467 = vunpack.c.h.b16 %v148
    %v468 = vunpack.c.l.b16 %v149
    %v469 = vunpack.c.h.b16 %v149
    %v470 = vunpack.c.l.b16 %v150
    %v471 = vunpack.c.h.b16 %v150
    %v472 = vunpack.c.l.b16 %v151
    %v473 = vunpack.c.h.b16 %v151
    %v474 = vunpack.c.l.b16 %v152
    %v475 = vunpack.c.h.b16 %v152
    %v476 = vunpack.c.l.b16 %v153
    %v477 = vunpack.c.h.b16 %v153
    %v478 = vunpack.c.l.b16 %v154
    %v479 = vunpack.c.h.b16 %v154
    %v480 = vunpack.c.l.b16 %v155
    %v481 = vunpack.c.h.b16 %v155
    %v482 = vunpack.c.l.b16 %v156
    %v483 = vunpack.c.h.b16 %v156
    %v484 = vunpack.c.l.b16 %v157
    %v485 = vunpack.c.h.b16 %v157
    %v486 = vunpack.c.l.b16 %v158
    %v487 = vunpack.c.h.b16 %v158
    %v488 = vunpack.c.l.b16 %v159
    %v489 = vunpack.c.h.b16 %v159
    %v490 = vunpack.c.l.b16 %v160
    %v491 = vunpack.c.h.b16 %v160
    %v492 = vunpack.c.l.b16 %v161
    %v493 = vunpack.c.h.b16 %v161
    %v494 = vunpack.c.l.b16 %v162
    %v495 = vunpack.c.h.b16 %v162
    %v496 = vunpack.c.l.b16 %v163
    %v497 = vunpack.c.h.b16 %v163
    %v498 = vunpack.c.l.b16 %v164
    %v499 = vunpack.c.h.b16 %v164
    %v500 = vunpack.c.l.b16 %v165
    %v501 = vunpack.c.h.b16 %v165
    %v502 = vunpack.c.l.b16 %v166
    %v503 = vunpack.c.h.b16 %v166
    %v504 = vunpack.c.l.b16 %v167
    %v505 = vunpack.c.h.b16 %v167
    %v506 = vunpack.c.l.b16 %v168
    %v507 = vunpack.c.h.b16 %v168
    %v508 = vunpack.c.l.b16 %v169
    %v509 = vunpack.c.h.b16 %v169
    %v510 = vunpack.c.l.b16 %v170
    %v511 = vunpack.c.h.b16 %v170
    %v512 = vunpack.c.l.b16 %v171
    %v513 = vunpack.c.h.b16 %v171
    %v514 = vunpack.c.l.b16 %v172
    %v515 = vunpack.c.h.b16 %v172
    %v516 = vunpack.c.l.b16 %v173
    %v517 = vunpack.c.h.b16 %v173
    %v518 = vunpack.c.l.b16 %v174
    %v519 = vunpack.c.h.b16 %v174
    %v520 = vunpack.c.l.b16 %v175
    %v521 = vunpack.c.h.b16 %v175
    %v522 = vunpack.c.l.b16 %v176
    %v523 = vunpack.c.h.b16 %v176
    %v524 = vunpack.c.l.b16 %v177
    %v525 = vunpack.c.h.b16 %v177
    %v526 = vunpack.c.l.b16 %v178
    %v527 = vunpack.c.h.b16 %v178
    %v528 = vunpack.c.l.b16 %v179
    %v529 = vunpack.c.h.b16 %v179
    %v530 = vunpack.c.l.b16 %v180
    %v531 = vunpack.c.h.b16 %v180
    %v532 = vunpack.c.l.b16 %v181
    %v533 = vunpack.c.h.b16 %v181
    %v534 = vunpack.c.l.b16 %v182
    %v535 = vunpack.c.h.b16 %v182
    %v536 = vunpack.c.l.b16 %v183
    %v537 = vunpack.c.h.b16 %v183
    %v538 = vunpack.c.l.b16 %v184
    %v539 = vunpack.c.h.b16 %v184
    %v540 = vunpack.c.l.b16 %v185
    %v541 = vunpack.c.h.b16 %v185
    %v542 = vunpack.c.l.b16 %v186
    %v543 = vunpack.c.h.b16 %v186
    %v544 = vunpack.c.l.b16 %v187
    %v545 = vunpack.c.h.b16 %v187
    %v546 = vunpack.c.l.b16 %v188
    %v547 = vunpack.c.h.b16 %v188
    %v548 = vunpack.c.l.b16 %v189
    %v549 = vunpack.c.h.b16 %v189
    %v550 = vunpack.c.l.b16 %v190
    %v551 = vunpack.c.h.b16 %v190
    %v552 = vunpack.c.l.b16 %v191
    %v553 = vunpack.c.h.b16 %v191
    %v554 = vunpack.c.l.b16 %v192
    %v555 = vunpack.c.h.b16 %v192
    %v556 = vunpack.c.l.b16 %v193
    %v557 = vunpack.c.h.b16 %v193
    %v558 = vunpack.c.l.b16 %v194
    %v559 = vunpack.c.h.b16 %v194
    %v560 = vunpack.c.l.b16 %v195
    %v561 = vunpack.c.h.b16 %v195
    %v562 = vunpack.c.l.b16 %v196
    %v563 = vunpack.c.h.b16 %v196
    %v564 = vunpack.c.l.b16 %v197
    %v565 = vunpack.c.h.b16 %v197
    %v566 = vunpack.c.l.b16 %v198
    %v567 = vunpack.c.h.b16 %v198
    %v568 = vunpack.c.l.b16 %v199
    %v569 = vunpack.c.h.b16 %v199
    %v570 = vunpack.c.l.b16 %v200
    %v571 = vunpack.c.h.b16 %v200
    %v572 = vunpack.c.l.b16 %v201
    %v573 = vunpack.c.h.b16 %v201
    %v574 = vunpack.c.l.b16 %v202
    %v575 = vunpack.c.h.b16 %v202
    %v576 = vunpack.c.l.b16 %v203
    %v577 = vunpack.c.h.b16 %v203
    %v578 = vunpack.c.l.b16 %v204
    %v579 = vunpack.c.h.b16 %v204
    %v580 = vunpack.c.l.b16 %v205
    %v581 = vunpack.c.h.b16 %v205
    %v582 = vunpack.c.l.b16 %v206
    %v583 = vunpack.c.h.b16 %v206
    %v584 = vunpack.c.l.b16 %v207
    %v585 = vunpack.c.h.b16 %v207
    %v586 = vunpack.c.l.b16 %v208
    %v587 = vunpack.c.h.b16 %v208
    %v588 = vunpack.c.l.b16 %v209
    %v589 = vunpack.c.h.b16 %v209
    %v590 = vunpack.c.l.b16 %v210
    %v591 = vunpack.c.h.b16 %v210
    %v592 = vunpack.c.l.b16 %v211
    %v593 = vunpack.c.h.b16 %v211
    %v594 = vunpack.c.l.b16 %v212
    %v595 = vunpack.c.h.b16 %v212
    %v596 = vunpack.c.l.b16 %v213
    %v597 = vunpack.c.h.b16 %v213
    %v598 = vunpack.c.l.b16 %v214
    %v599 = vunpack.c.h.b16 %v214
    %v600 = vunpack.c.l.b16 %v215
    %v601 = vunpack.c.h.b16 %v215
    %v602 = vunpack.c.l.b16 %v216
    %v603 = vunpack.c.h.b16 %v216
    %v604 = vunpack.c.l.b16 %v217
    %v605 = vunpack.c.h.b16 %v217
    %v606 = vunpack.c.l.b16 %v218
    %v607 = vunpack.c.h.b16 %v218
    %v608 = vunpack.c.l.b16 %v219
    %v609 = vunpack.c.h.b16 %v219
    %v610 = vunpack.c.l.b16 %v220
    %v611 = vunpack.c.h.b16 %v220
    %v612 = vunpack.c.l.b16 %v221
    %v613 = vunpack.c.h.b16 %v221
    %v614 = vunpack.c.l.b16 %v222
    %v615 = vunpack.c.h.b16 %v222
    %v616 = vunpack.c.l.b16 %v223
    %v617 = vunpack.c.h.b16 %v223
    %v618 = vunpack.c.l.b16 %v224
    %v619 = vunpack.c.h.b16 %v224
    %v620 = vunpack.c.l.b16 %v225
    %v621 = vunpack.c.h.b16 %v225
    %v622 = vpack.c.b16 %v368, %v366
    %v623 = vpack.c.b16 %v369, %v367
    %v624 = vpack.c.b16 %v372, %v370
    %v625 = vpack.c.b16 %v373, %v371
    %v626 = vpack.c.b16 %v376, %v374
    %v627 = vpack.c.b16 %v377, %v375
    %v628 = vpack.c.b16 %v380, %v378
    %v629 = vpack.c.b16 %v381, %v379
    %v630 = vpack.c.b16 %v384, %v382
    %v631 = vpack.c.b16 %v385, %v383
    %v632 = vpack.c.b16 %v388, %v386
    %v633 = vpack.c.b16 %v389, %v387
    %v634 = vpack.c.b16 %v392, %v390
    %v635 = vpack.c.b16 %v393, %v391
    %v636 = vpack.c.b16 %v396, %v394
    %v637 = vpack.c.b16 %v397, %v395
    %v638 = vpack.c.b16 %v400, %v398
    %v639 = vpack.c.b16 %v401, %v399
    %v640 = vpack.c.b16 %v404, %v402
    %v641 = vpack.c.b16 %v405, %v403
    %v642 = vpack.c.b16 %v408, %v406
    %v643 = vpack.c.b16 %v409, %v407
    %v644 = vpack.c.b16 %v412, %v410
    %v645 = vpack.c.b16 %v413, %v411
    %v646 = vpack.c.b16 %v416, %v414
    %v647 = vpack.c.b16 %v417, %v415
    %v648 = vpack.c.b16 %v420, %v418
    %v649 = vpack.c.b16 %v421, %v419
    %v650 = vpack.c.b16 %v424, %v422
    %v651 = vpack.c.b16 %v425, %v423
    %v652 = vpack.c.b16 %v428, %v426
    %v653 = vpack.c.b16 %v429, %v427
    %v654 = vpack.c.b16 %v432, %v430
    %v655 = vpack.c.b16 %v433, %v431
    %v656 = vpack.c.b16 %v436, %v434
    %v657 = vpack.c.b16 %v437, %v435
    %v658 = vpack.c.b16 %v440, %v438
    %v659 = vpack.c.b16 %v441, %v439
    %v660 = vpack.c.b16 %v444, %v442
    %v661 = vpack.c.b16 %v445, %v443
    %v662 = vpack.c.b16 %v448, %v446
    %v663 = vpack.c.b16 %v449, %v447
    %v664 = vpack.c.b16 %v452, %v450
    %v665 = vpack.c.b16 %v453, %v451
    %v666 = vpack.c.b16 %v456, %v454
    %v667 = vpack.c.b16 %v457, %v455
    %v668 = vpack.c.b16 %v460, %v458
    %v669 = vpack.c.b16 %v461, %v459
    %v670 = vpack.c.b16 %v464, %v462
    %v671 = vpack.c.b16 %v465, %v463
    %v672 = vpack.c.b16 %v468, %v466
    %v673 = vpack.c.b16 %v469, %v467
    %v674 = vpack.c.b16 %v472, %v470
    %v675 = vpack.c.b16 %v473, %v471
    %v676 = vpack.c.b16 %v476, %v474
    %v677 = vpack.c.b16 %v477, %v475
    %v678 = vpack.c.b16 %v480, %v478
    %v679 = vpack.c.b16 %v481, %v479
    %v680 = vpack.c.b16 %v484, %v482
    %v681 = vpack.c.b16 %v485, %v483
    %v682 = vpack.c.b16 %v488, %v486
    %v683 = vpack.c.b16 %v489, %v487
    %v684 = vpack.c.b16 %v492, %v490
    %v685 = vpack.c.b16 %v493, %v491
    %v686 = vpack.c.b16 %v496, %v494
    %v687 = vpack.c.b16 %v497, %v495
    %v688 = vpack.c.b16 %v500, %v498
    %v689 = vpack.c.b16 %v501, %v499
    %v690 = vpack.c.b16 %v504, %v502
    %v691 = vpack.c.b16 %v505, %v503
    %v692 = vpack.c.b16 %v508, %v506
    %v693 = vpack.c.b16 %v509, %v507
    %v694 = vpack.c.b16 %v512, %v510
    %v695 = vpack.c.b16 %v513, %v511
    %v696 = vpack.c.b16 %v516, %v514
    %v697 = vpack.c.b16 %v517, %v515
    %v698 = vpack.c.b16 %v520, %v518
    %v699 = vpack.c.b16 %v521, %v519
    %v700 = vpack.c.b16 %v524, %v522
    %v701 = vpack.c.b16 %v525, %v523
    %v702 = vpack.c.b16 %v528, %v526
    %v703 = vpack.c.b16 %v529, %v527
    %v704 = vpack.c.b16 %v532, %v530
    %v705 = vpack.c.b16 %v533, %v531
    %v706 = vpack.c.b16 %v536, %v534
    %v707 = vpack.c.b16 %v537, %v535
    %v708 = vpack.c.b16 %v540, %v538
    %v709 = vpack.c.b16 %v541, %v539
    %v710 = vpack.c.b16 %v544, %v542
    %v711 = vpack.c.b16 %v545, %v543
    %v712 = vpack.c.b16 %v548, %v546
    %v713 = vpack.c.b16 %v549, %v547
    %v714 = vpack.c.b16 %v552, %v550
    %v715 = vpack.c.b16 %v553, %v551
    %v716 = vpack.c.b16 %v556, %v554
    %v717 = vpack.c.b16 %v557, %v555
    %v718 = vpack.c.b16 %v560, %v558
    %v719 = vpack.c.b16 %v561, %v559
    %v720 = vpack.c.b16 %v564, %v562
    %v721 = vpack.c.b16 %v565, %v563
    %v722 = vpack.c.b16 %v568, %v566
    %v723 = vpack.c.b16 %v569, %v567
    %v724 = vpack.c.b16 %v572, %v570
    %v725 = vpack.c.b16 %v573, %v571
    %v726 = vpack.c.b16 %v576, %v574
    %v727 = vpack.c.b16 %v577, %v575
    %v728 = vpack.c.b16 %v580, %v578
    %v729 = vpack.c.b16 %v581, %v579
    %v730 = vpack.c.b16 %v584, %v582
    %v731 = vpack.c.b16 %v585, %v583
    %v732 = vpack.c.b16 %v588, %v586
    %v733 = vpack.c.b16 %v589, %v587
    %v734 = vpack.c.b16 %v592, %v590
    %v735 = vpack.c.b16 %v593, %v591
    %v736 = vpack.c.b16 %v596, %v594
    %v737 = vpack.c.b16 %v597, %v595
    %v738 = vpack.c.b16 %v600, %v598
    %v739 = vpack.c.b16 %v601, %v599
    %v740 = vpack.c.b16 %v604, %v602
    %v741 = vpack.c.b16 %v605, %v603
    %v742 = vpack.c.b16 %v608, %v606
    %v743 = vpack.c.b16 %v609, %v607
    %v744 = vpack.c.b16 %v612, %v610
    %v745 = vpack.c.b16 %v613, %v611
    %v746 = vpack.c.b16 %v616, %v614
    %v747 = vpack.c.b16 %v617, %v615
    %v748 = vpack.c.b16 %v620, %v618
    %v749 = vpack.c.b16 %v621, %v619
    %878 = vmatprep.subr.bf16.mxu0 %v623
    %879 = vmatpush1.bf16.msra.mxu0 %v622
    %880 = vmatprep.subr.bf16.mxu0 %v625
    %881 = vmatpush1.bf16.msra.mxu0 %v624
    %882 = vmatprep.subr.bf16.mxu0 %v627
    %883 = vmatpush1.bf16.msra.mxu0 %v626
    %884 = vmatprep.subr.bf16.mxu0 %v629
    %885 = vmatpush1.bf16.msra.mxu0 %v628
    %886 = vmatprep.subr.bf16.mxu0 %v631
    %887 = vmatpush1.bf16.msra.mxu0 %v630
    %888 = vmatprep.subr.bf16.mxu0 %v633
    %889 = vmatpush1.bf16.msra.mxu0 %v632
    %890 = vmatprep.subr.bf16.mxu0 %v635
    %891 = vmatpush1.bf16.msra.mxu0 %v634
    %892 = vmatprep.subr.bf16.mxu0 %v637
    %893 = vmatpush1.bf16.msra.mxu0 %v636
    %894 = vmatprep.subr.bf16.mxu0 %v639
    %895 = vmatpush1.bf16.msra.mxu0 %v638
    %896 = vmatprep.subr.bf16.mxu0 %v641
    %897 = vmatpush1.bf16.msra.mxu0 %v640
    %898 = vmatprep.subr.bf16.mxu0 %v643
    %899 = vmatpush1.bf16.msra.mxu0 %v642
    %900 = vmatprep.subr.bf16.mxu0 %v645
    %901 = vmatpush1.bf16.msra.mxu0 %v644
    %902 = vmatprep.subr.bf16.mxu0 %v647
    %903 = vmatpush1.bf16.msra.mxu0 %v646
    %904 = vmatprep.subr.bf16.mxu0 %v649
    %905 = vmatpush1.bf16.msra.mxu0 %v648
    %906 = vmatprep.subr.bf16.mxu0 %v651
    %907 = vmatpush1.bf16.msra.mxu0 %v650
    %908 = vmatprep.subr.bf16.mxu0 %v653
    %909 = vmatpush1.bf16.msra.mxu0 %v652
    %910 = vmatprep.mubr.bf16.mxu0 %v91
    %911 = vmatmul.mubr.bf16.gmra.mrb[0].mxu0 %v90
    %v912 = vpop.f32.mrb[0].mxu0
    %v913 = vadd.f32 %v231, %v912
    %v914 = vpop.f32.mrb[0].mxu0
    %v915 = vadd.f32 %v235, %v914
    %v916 = vpop.f32.mrb[0].mxu0
    %v917 = vpop.f32.mrb[0].mxu0
    %918 = vdwg.mxu0
    %919 = vmatprep.subr.bf16.mxu0 %v655
    %920 = vmatpush1.bf16.msra.mxu0 %v654
    %921 = vmatprep.subr.bf16.mxu0 %v657
    %922 = vmatpush1.bf16.msra.mxu0 %v656
    %923 = vmatprep.subr.bf16.mxu0 %v659
    %924 = vmatpush1.bf16.msra.mxu0 %v658
    %925 = vmatprep.subr.bf16.mxu0 %v661
    %926 = vmatpush1.bf16.msra.mxu0 %v660
    %927 = vmatprep.subr.bf16.mxu0 %v663
    %928 = vmatpush1.bf16.msra.mxu0 %v662
    %929 = vmatprep.subr.bf16.mxu0 %v665
    %930 = vmatpush1.bf16.msra.mxu0 %v664
    %931 = vmatprep.subr.bf16.mxu0 %v667
    %932 = vmatpush1.bf16.msra.mxu0 %v666
    %933 = vmatprep.subr.bf16.mxu0 %v669
    %934 = vmatpush1.bf16.msra.mxu0 %v668
    %935 = vmatprep.subr.bf16.mxu0 %v671
    %936 = vmatpush1.bf16.msra.mxu0 %v670
    %937 = vmatprep.subr.bf16.mxu0 %v673
    %938 = vmatpush1.bf16.msra.mxu0 %v672
    %939 = vmatprep.subr.bf16.mxu0 %v675
    %940 = vmatpush1.bf16.msra.mxu0 %v674
    %941 = vmatprep.subr.bf16.mxu0 %v677
    %942 = vmatpush1.bf16.msra.mxu0 %v676
    %943 = vmatprep.subr.bf16.mxu0 %v679
    %944 = vmatpush1.bf16.msra.mxu0 %v678
    %945 = vmatprep.subr.bf16.mxu0 %v681
    %946 = vmatpush1.bf16.msra.mxu0 %v680
    %947 = vmatprep.subr.bf16.mxu0 %v683
    %948 = vmatpush1.bf16.msra.mxu0 %v682
    %949 = vmatprep.subr.bf16.mxu0 %v685
    %950 = vmatpush1.bf16.msra.mxu0 %v684
    %951 = vmatprep.mubr.bf16.mxu0 %v93
    %952 = vmatmul.mubr.bf16.gmra.mrb[0].mxu0 %v92
    %v953 = vpop.f32.mrb[0].mxu0
    %v954 = vadd.f32 %v913, %v953
    %v955 = vpop.f32.mrb[0].mxu0
    %v956 = vadd.f32 %v915, %v955
    %v957 = vpop.f32.mrb[0].mxu0
    %v958 = vpop.f32.mrb[0].mxu0
    %959 = vdwg.mxu0
    %960 = vmatprep.subr.bf16.mxu0 %v687
    %961 = vmatpush1.bf16.msra.mxu0 %v686
    %962 = vmatprep.subr.bf16.mxu0 %v689
    %963 = vmatpush1.bf16.msra.mxu0 %v688
    %964 = vmatprep.subr.bf16.mxu0 %v691
    %965 = vmatpush1.bf16.msra.mxu0 %v690
    %966 = vmatprep.subr.bf16.mxu0 %v693
    %967 = vmatpush1.bf16.msra.mxu0 %v692
    %968 = vmatprep.subr.bf16.mxu0 %v695
    %969 = vmatpush1.bf16.msra.mxu0 %v694
    %970 = vmatprep.subr.bf16.mxu0 %v697
    %971 = vmatpush1.bf16.msra.mxu0 %v696
    %972 = vmatprep.subr.bf16.mxu0 %v699
    %973 = vmatpush1.bf16.msra.mxu0 %v698
    %974 = vmatprep.subr.bf16.mxu0 %v701
    %975 = vmatpush1.bf16.msra.mxu0 %v700
    %976 = vmatprep.subr.bf16.mxu0 %v703
    %977 = vmatpush1.bf16.msra.mxu0 %v702
    %978 = vmatprep.subr.bf16.mxu0 %v705
    %979 = vmatpush1.bf16.msra.mxu0 %v704
    %980 = vmatprep.subr.bf16.mxu0 %v707
    %981 = vmatpush1.bf16.msra.mxu0 %v706
    %982 = vmatprep.subr.bf16.mxu0 %v709
    %983 = vmatpush1.bf16.msra.mxu0 %v708
    %984 = vmatprep.subr.bf16.mxu0 %v711
    %985 = vmatpush1.bf16.msra.mxu0 %v710
    %986 = vmatprep.subr.bf16.mxu0 %v713
    %987 = vmatpush1.bf16.msra.mxu0 %v712
    %988 = vmatprep.subr.bf16.mxu0 %v715
    %989 = vmatpush1.bf16.msra.mxu0 %v714
    %990 = vmatprep.subr.bf16.mxu0 %v717
    %991 = vmatpush1.bf16.msra.mxu0 %v716
    %992 = vmatprep.mubr.bf16.mxu0 %v95
    %993 = vmatmul.mubr.bf16.gmra.mrb[0].mxu0 %v94
    %v994 = vpop.f32.mrb[0].mxu0
    %v995 = vadd.f32 %v954, %v994
    %v996 = vpop.f32.mrb[0].mxu0
    %v997 = vadd.f32 %v956, %v996
    %v998 = vpop.f32.mrb[0].mxu0
    %v999 = vpop.f32.mrb[0].mxu0
    %1000 = vdwg.mxu0
    %1001 = vmatprep.subr.bf16.mxu0 %v719
    %1002 = vmatpush1.bf16.msra.mxu0 %v718
    %1003 = vmatprep.subr.bf16.mxu0 %v721
    %1004 = vmatpush1.bf16.msra.mxu0 %v720
    %1005 = vmatprep.subr.bf16.mxu0 %v723
    %1006 = vmatpush1.bf16.msra.mxu0 %v722
    %1007 = vmatprep.subr.bf16.mxu0 %v725
    %1008 = vmatpush1.bf16.msra.mxu0 %v724
    %1009 = vmatprep.subr.bf16.mxu0 %v727
    %1010 = vmatpush1.bf16.msra.mxu0 %v726
    %1011 = vmatprep.subr.bf16.mxu0 %v729
    %1012 = vmatpush1.bf16.msra.mxu0 %v728
    %1013 = vmatprep.subr.bf16.mxu0 %v731
    %1014 = vmatpush1.bf16.msra.mxu0 %v730
    %1015 = vmatprep.subr.bf16.mxu0 %v733
    %1016 = vmatpush1.bf16.msra.mxu0 %v732
    %1017 = vmatprep.subr.bf16.mxu0 %v735
    %1018 = vmatpush1.bf16.msra.mxu0 %v734
    %1019 = vmatprep.subr.bf16.mxu0 %v737
    %1020 = vmatpush1.bf16.msra.mxu0 %v736
    %1021 = vmatprep.subr.bf16.mxu0 %v739
    %1022 = vmatpush1.bf16.msra.mxu0 %v738
    %1023 = vmatprep.subr.bf16.mxu0 %v741
    %1024 = vmatpush1.bf16.msra.mxu0 %v740
    %1025 = vmatprep.subr.bf16.mxu0 %v743
    %1026 = vmatpush1.bf16.msra.mxu0 %v742
    %1027 = vmatprep.subr.bf16.mxu0 %v745
    %1028 = vmatpush1.bf16.msra.mxu0 %v744
    %1029 = vmatprep.subr.bf16.mxu0 %v747
    %1030 = vmatpush1.bf16.msra.mxu0 %v746
    %1031 = vmatprep.subr.bf16.mxu0 %v749
    %1032 = vmatpush1.bf16.msra.mxu0 %v748
    %1033 = vmatprep.mubr.bf16.mxu0 %v97
    %1034 = vmatmul.mubr.bf16.gmra.mrb[0].mxu0 %v96
    %v1035 = vpop.f32.mrb[0].mxu0
    %v1036 = vadd.f32 %v995, %v1035
    %v1037 = vpop.f32.mrb[0].mxu0
    %v1038 = vadd.f32 %v997, %v1037
    %v1039 = vpop.f32.mrb[0].mxu0
    %v1040 = vpop.f32.mrb[0].mxu0
    %1041 = vdwg.mxu0
    %s1042 = sld [smem:[#allocation2]]
    %v1043 = vmax.f32 %v1036, 0.0
    %v1044 = vmax.f32 %v1038, 0.0
    %v1045 = vmin.f32 %v1036, 0.0
    %v1046 = vmin.f32 %v1038, 0.0
    %v1047 = vstv %s1042
    %v1048 = vmul.f32 %v1047, %v1045
    %v1049 = vmul.f32 %v1047, %v1046
    %v1050 = vadd.f32 %v1043, %v1048
    %v1051 = vadd.f32 %v1044, %v1049
    %v1052 = vpack.c.bf16 %v1050, %v1050
    %v1053 = vpack.c.bf16 %v1051, %v1051
    %v1054 = vld [vmem:[%s3] sm:$0xff]
    %v1055 = vld [vmem:[%s3 + $0x8] sm:$0xff]
    %v1056 = vld [vmem:[%s3 + $0x10] sm:$0xff]
    %v1057 = vld [vmem:[%s3 + $0x18] sm:$0xff]
    %v1058 = vld [vmem:[%s3 + $0x20] sm:$0xff]
    %v1059 = vld [vmem:[%s3 + $0x28] sm:$0xff]
    %v1060 = vld [vmem:[%s3 + $0x30] sm:$0xff]
    %v1061 = vld [vmem:[%s3 + $0x38] sm:$0xff]
    %v1062 = vld [vmem:[%s3 + $0x40] sm:$0xff]
    %v1063 = vld [vmem:[%s3 + $0x48] sm:$0xff]
    %v1064 = vld [vmem:[%s3 + $0x50] sm:$0xff]
    %v1065 = vld [vmem:[%s3 + $0x58] sm:$0xff]
    %v1066 = vld [vmem:[%s3 + $0x60] sm:$0xff]
    %v1067 = vld [vmem:[%s3 + $0x68] sm:$0xff]
    %v1068 = vld [vmem:[%s3 + $0x70] sm:$0xff]
    %v1069 = vld [vmem:[%s3 + $0x78] sm:$0xff]
    %v1070 = vld [vmem:[%s3 + $0x80] sm:$0xff]
    %v1071 = vld [vmem:[%s3 + $0x88] sm:$0xff]
    %v1072 = vld [vmem:[%s3 + $0x90] sm:$0xff]
    %v1073 = vld [vmem:[%s3 + $0x98] sm:$0xff]
    %v1074 = vld [vmem:[%s3 + $0xa0] sm:$0xff]
    %v1075 = vld [vmem:[%s3 + $0xa8] sm:$0xff]
    %v1076 = vld [vmem:[%s3 + $0xb0] sm:$0xff]
    %v1077 = vld [vmem:[%s3 + $0xb8] sm:$0xff]
    %v1078 = vld [vmem:[%s3 + $0xc0] sm:$0xff]
    %v1079 = vld [vmem:[%s3 + $0xc8] sm:$0xff]
    %v1080 = vld [vmem:[%s3 + $0xd0] sm:$0xff]
    %v1081 = vld [vmem:[%s3 + $0xd8] sm:$0xff]
    %v1082 = vld [vmem:[%s3 + $0xe0] sm:$0xff]
    %v1083 = vld [vmem:[%s3 + $0xe8] sm:$0xff]
    %v1084 = vld [vmem:[%s3 + $0xf0] sm:$0xff]
    %v1085 = vld [vmem:[%s3 + $0xf8] sm:$0xff]
    %v1086 = vld [vmem:[%s4] sm:$0x3]
    %v1088 = vlaneseq
    %v1089 = vshrl.u32 %v1088, 7
    %v1090 = vsub.s32 0, %v1089
    %v1091 = vrot.slane %v1086, %v1090
    %v1092 = vlaneseq
    %v1093 = vshrl.u32 %v1092, 7
    %v1094 = vsub.s32 1, %v1093
    %v1095 = vrot.slane %v1086, %v1094
    %v1130 = vunpack.c.l.b16 %v1054
    %v1131 = vunpack.c.h.b16 %v1054
    %v1132 = vunpack.c.l.b16 %v1055
    %v1133 = vunpack.c.h.b16 %v1055
    %v1134 = vunpack.c.l.b16 %v1056
    %v1135 = vunpack.c.h.b16 %v1056
    %v1136 = vunpack.c.l.b16 %v1057
    %v1137 = vunpack.c.h.b16 %v1057
    %v1138 = vunpack.c.l.b16 %v1058
    %v1139 = vunpack.c.h.b16 %v1058
    %v1140 = vunpack.c.l.b16 %v1059
    %v1141 = vunpack.c.h.b16 %v1059
    %v1142 = vunpack.c.l.b16 %v1060
    %v1143 = vunpack.c.h.b16 %v1060
    %v1144 = vunpack.c.l.b16 %v1061
    %v1145 = vunpack.c.h.b16 %v1061
    %v1146 = vunpack.c.l.b16 %v1062
    %v1147 = vunpack.c.h.b16 %v1062
    %v1148 = vunpack.c.l.b16 %v1063
    %v1149 = vunpack.c.h.b16 %v1063
    %v1150 = vunpack.c.l.b16 %v1064
    %v1151 = vunpack.c.h.b16 %v1064
    %v1152 = vunpack.c.l.b16 %v1065
    %v1153 = vunpack.c.h.b16 %v1065
    %v1154 = vunpack.c.l.b16 %v1066
    %v1155 = vunpack.c.h.b16 %v1066
    %v1156 = vunpack.c.l.b16 %v1067
    %v1157 = vunpack.c.h.b16 %v1067
    %v1158 = vunpack.c.l.b16 %v1068
    %v1159 = vunpack.c.h.b16 %v1068
    %v1160 = vunpack.c.l.b16 %v1069
    %v1161 = vunpack.c.h.b16 %v1069
    %v1162 = vunpack.c.l.b16 %v1070
    %v1163 = vunpack.c.h.b16 %v1070
    %v1164 = vunpack.c.l.b16 %v1071
    %v1165 = vunpack.c.h.b16 %v1071
    %v1166 = vunpack.c.l.b16 %v1072
    %v1167 = vunpack.c.h.b16 %v1072
    %v1168 = vunpack.c.l.b16 %v1073
    %v1169 = vunpack.c.h.b16 %v1073
    %v1170 = vunpack.c.l.b16 %v1074
    %v1171 = vunpack.c.h.b16 %v1074
    %v1172 = vunpack.c.l.b16 %v1075
    %v1173 = vunpack.c.h.b16 %v1075
    %v1174 = vunpack.c.l.b16 %v1076
    %v1175 = vunpack.c.h.b16 %v1076
    %v1176 = vunpack.c.l.b16 %v1077
    %v1177 = vunpack.c.h.b16 %v1077
    %v1178 = vunpack.c.l.b16 %v1078
    %v1179 = vunpack.c.h.b16 %v1078
    %v1180 = vunpack.c.l.b16 %v1079
    %v1181 = vunpack.c.h.b16 %v1079
    %v1182 = vunpack.c.l.b16 %v1080
    %v1183 = vunpack.c.h.b16 %v1080
    %v1184 = vunpack.c.l.b16 %v1081
    %v1185 = vunpack.c.h.b16 %v1081
    %v1186 = vunpack.c.l.b16 %v1082
    %v1187 = vunpack.c.h.b16 %v1082
    %v1188 = vunpack.c.l.b16 %v1083
    %v1189 = vunpack.c.h.b16 %v1083
    %v1190 = vunpack.c.l.b16 %v1084
    %v1191 = vunpack.c.h.b16 %v1084
    %v1192 = vunpack.c.l.b16 %v1085
    %v1193 = vunpack.c.h.b16 %v1085
    %v1194 = vpack.c.b16 %v1132, %v1130
    %v1195 = vpack.c.b16 %v1133, %v1131
    %v1196 = vpack.c.b16 %v1136, %v1134
    %v1197 = vpack.c.b16 %v1137, %v1135
    %v1198 = vpack.c.b16 %v1140, %v1138
    %v1199 = vpack.c.b16 %v1141, %v1139
    %v1200 = vpack.c.b16 %v1144, %v1142
    %v1201 = vpack.c.b16 %v1145, %v1143
    %v1202 = vpack.c.b16 %v1148, %v1146
    %v1203 = vpack.c.b16 %v1149, %v1147
    %v1204 = vpack.c.b16 %v1152, %v1150
    %v1205 = vpack.c.b16 %v1153, %v1151
    %v1206 = vpack.c.b16 %v1156, %v1154
    %v1207 = vpack.c.b16 %v1157, %v1155
    %v1208 = vpack.c.b16 %v1160, %v1158
    %v1209 = vpack.c.b16 %v1161, %v1159
    %v1210 = vpack.c.b16 %v1164, %v1162
    %v1211 = vpack.c.b16 %v1165, %v1163
    %v1212 = vpack.c.b16 %v1168, %v1166
    %v1213 = vpack.c.b16 %v1169, %v1167
    %v1214 = vpack.c.b16 %v1172, %v1170
    %v1215 = vpack.c.b16 %v1173, %v1171
    %v1216 = vpack.c.b16 %v1176, %v1174
    %v1217 = vpack.c.b16 %v1177, %v1175
    %v1218 = vpack.c.b16 %v1180, %v1178
    %v1219 = vpack.c.b16 %v1181, %v1179
    %v1220 = vpack.c.b16 %v1184, %v1182
    %v1221 = vpack.c.b16 %v1185, %v1183
    %v1222 = vpack.c.b16 %v1188, %v1186
    %v1223 = vpack.c.b16 %v1189, %v1187
    %v1224 = vpack.c.b16 %v1192, %v1190
    %v1225 = vpack.c.b16 %v1193, %v1191
    %1258 = vmatprep.subr.bf16.mxu0 %v1195
    %1259 = vmatpush1.bf16.msra.mxu0 %v1194
    %1260 = vmatprep.subr.bf16.mxu0 %v1197
    %1261 = vmatpush1.bf16.msra.mxu0 %v1196
    %1262 = vmatprep.subr.bf16.mxu0 %v1199
    %1263 = vmatpush1.bf16.msra.mxu0 %v1198
    %1264 = vmatprep.subr.bf16.mxu0 %v1201
    %1265 = vmatpush1.bf16.msra.mxu0 %v1200
    %1266 = vmatprep.subr.bf16.mxu0 %v1203
    %1267 = vmatpush1.bf16.msra.mxu0 %v1202
    %1268 = vmatprep.subr.bf16.mxu0 %v1205
    %1269 = vmatpush1.bf16.msra.mxu0 %v1204
    %1270 = vmatprep.subr.bf16.mxu0 %v1207
    %1271 = vmatpush1.bf16.msra.mxu0 %v1206
    %1272 = vmatprep.subr.bf16.mxu0 %v1209
    %1273 = vmatpush1.bf16.msra.mxu0 %v1208
    %1274 = vmatprep.subr.bf16.mxu0 %v1211
    %1275 = vmatpush1.bf16.msra.mxu0 %v1210
    %1276 = vmatprep.subr.bf16.mxu0 %v1213
    %1277 = vmatpush1.bf16.msra.mxu0 %v1212
    %1278 = vmatprep.subr.bf16.mxu0 %v1215
    %1279 = vmatpush1.bf16.msra.mxu0 %v1214
    %1280 = vmatprep.subr.bf16.mxu0 %v1217
    %1281 = vmatpush1.bf16.msra.mxu0 %v1216
    %1282 = vmatprep.subr.bf16.mxu0 %v1219
    %1283 = vmatpush1.bf16.msra.mxu0 %v1218
    %1284 = vmatprep.subr.bf16.mxu0 %v1221
    %1285 = vmatpush1.bf16.msra.mxu0 %v1220
    %1286 = vmatprep.subr.bf16.mxu0 %v1223
    %1287 = vmatpush1.bf16.msra.mxu0 %v1222
    %1288 = vmatprep.subr.bf16.mxu0 %v1225
    %1289 = vmatpush1.bf16.msra.mxu0 %v1224
    %1290 = vmatprep.mubr.bf16.mxu0 %v1053
    %1291 = vmatmul.mubr.bf16.gmra.mrb[0].mxu0 %v1052
    %v1292 = vpop.f32.mrb[0].mxu0
    %v1293 = vadd.f32 %v1091, %v1292
    %v1294 = vpop.f32.mrb[0].mxu0
    %v1295 = vadd.f32 %v1095, %v1294
    %v1296 = vpop.f32.mrb[0].mxu0
    %v1297 = vpop.f32.mrb[0].mxu0
    %1298 = vdwg.mxu0
    %s1299 = sld [smem:[#allocation2 + $0x1]]
    %v1300 = vmax.f32 %v1293, 0.0
    %v1301 = vmax.f32 %v1295, 0.0
    %v1302 = vmin.f32 %v1293, 0.0
    %v1303 = vmin.f32 %v1295, 0.0
    %v1304 = vstv %s1299
    %v1305 = vmul.f32 %v1304, %v1302
    %v1306 = vmul.f32 %v1304, %v1303
    %v1307 = vadd.f32 %v1300, %v1305
    %v1308 = vadd.f32 %v1301, %v1306
    %v1309 = vpack.c.bf16 %v1307, %v1307
    %v1310 = vpack.c.bf16 %v1308, %v1308
    %v1311 = vld [vmem:[%s5] sm:$0xf]
    %v1312 = vld [vmem:[%s5 + $0x4] sm:$0xf]
    %v1313 = vld [vmem:[%s5 + $0x8] sm:$0xf]
    %v1314 = vld [vmem:[%s5 + $0xc] sm:$0xf]
    %v1315 = vld [vmem:[%s5 + $0x10] sm:$0xf]
    %v1316 = vld [vmem:[%s5 + $0x14] sm:$0xf]
    %v1317 = vld [vmem:[%s5 + $0x18] sm:$0xf]
    %v1318 = vld [vmem:[%s5 + $0x1c] sm:$0xf]
    %v1319 = vld [vmem:[%s5 + $0x20] sm:$0xf]
    %v1320 = vld [vmem:[%s5 + $0x24] sm:$0xf]
    %v1321 = vld [vmem:[%s5 + $0x28] sm:$0xf]
    %v1322 = vld [vmem:[%s5 + $0x2c] sm:$0xf]
    %v1323 = vld [vmem:[%s5 + $0x30] sm:$0xf]
    %v1324 = vld [vmem:[%s5 + $0x34] sm:$0xf]
    %v1325 = vld [vmem:[%s5 + $0x38] sm:$0xf]
    %v1326 = vld [vmem:[%s5 + $0x3c] sm:$0xf]
    %v1327 = vld [vmem:[%s5 + $0x40] sm:$0xf]
    %v1328 = vld [vmem:[%s5 + $0x44] sm:$0xf]
    %v1329 = vld [vmem:[%s5 + $0x48] sm:$0xf]
    %v1330 = vld [vmem:[%s5 + $0x4c] sm:$0xf]
    %v1331 = vld [vmem:[%s5 + $0x50] sm:$0xf]
    %v1332 = vld [vmem:[%s5 + $0x54] sm:$0xf]
    %v1333 = vld [vmem:[%s5 + $0x58] sm:$0xf]
    %v1334 = vld [vmem:[%s5 + $0x5c] sm:$0xf]
    %v1335 = vld [vmem:[%s5 + $0x60] sm:$0xf]
    %v1336 = vld [vmem:[%s5 + $0x64] sm:$0xf]
    %v1337 = vld [vmem:[%s5 + $0x68] sm:$0xf]
    %v1338 = vld [vmem:[%s5 + $0x6c] sm:$0xf]
    %v1339 = vld [vmem:[%s5 + $0x70] sm:$0xf]
    %v1340 = vld [vmem:[%s5 + $0x74] sm:$0xf]
    %v1341 = vld [vmem:[%s5 + $0x78] sm:$0xf]
    %v1342 = vld [vmem:[%s5 + $0x7c] sm:$0xf]
    %v1343 = vld [vmem:[%s6] sm:$0x1]
    %v1345 = vlaneseq
    %v1346 = vshrl.u32 %v1345, 7
    %v1347 = vsub.s32 0, %v1346
    %v1348 = vrot.slane %v1343, %v1347
    %v1382 = vunpack.c.l.b16 %v1311
    %v1383 = vunpack.c.l.b16 %v1312
    %v1384 = vunpack.c.l.b16 %v1313
    %v1385 = vunpack.c.l.b16 %v1314
    %v1386 = vunpack.c.l.b16 %v1315
    %v1387 = vunpack.c.l.b16 %v1316
    %v1388 = vunpack.c.l.b16 %v1317
    %v1389 = vunpack.c.l.b16 %v1318
    %v1390 = vunpack.c.l.b16 %v1319
    %v1391 = vunpack.c.l.b16 %v1320
    %v1392 = vunpack.c.l.b16 %v1321
    %v1393 = vunpack.c.l.b16 %v1322
    %v1394 = vunpack.c.l.b16 %v1323
    %v1395 = vunpack.c.l.b16 %v1324
    %v1396 = vunpack.c.l.b16 %v1325
    %v1397 = vunpack.c.l.b16 %v1326
    %v1398 = vunpack.c.l.b16 %v1327
    %v1399 = vunpack.c.l.b16 %v1328
    %v1400 = vunpack.c.l.b16 %v1329
    %v1401 = vunpack.c.l.b16 %v1330
    %v1402 = vunpack.c.l.b16 %v1331
    %v1403 = vunpack.c.l.b16 %v1332
    %v1404 = vunpack.c.l.b16 %v1333
    %v1405 = vunpack.c.l.b16 %v1334
    %v1406 = vunpack.c.l.b16 %v1335
    %v1407 = vunpack.c.l.b16 %v1336
    %v1408 = vunpack.c.l.b16 %v1337
    %v1409 = vunpack.c.l.b16 %v1338
    %v1410 = vunpack.c.l.b16 %v1339
    %v1411 = vunpack.c.l.b16 %v1340
    %v1412 = vunpack.c.l.b16 %v1341
    %v1413 = vunpack.c.l.b16 %v1342
    %v1414 = vpack.c.b16 %v1383, %v1382
    %v1415 = vpack.c.b16 %v1385, %v1384
    %v1416 = vpack.c.b16 %v1387, %v1386
    %v1417 = vpack.c.b16 %v1389, %v1388
    %v1418 = vpack.c.b16 %v1391, %v1390
    %v1419 = vpack.c.b16 %v1393, %v1392
    %v1420 = vpack.c.b16 %v1395, %v1394
    %v1421 = vpack.c.b16 %v1397, %v1396
    %v1422 = vpack.c.b16 %v1399, %v1398
    %v1423 = vpack.c.b16 %v1401, %v1400
    %v1424 = vpack.c.b16 %v1403, %v1402
    %v1425 = vpack.c.b16 %v1405, %v1404
    %v1426 = vpack.c.b16 %v1407, %v1406
    %v1427 = vpack.c.b16 %v1409, %v1408
    %v1428 = vpack.c.b16 %v1411, %v1410
    %v1429 = vpack.c.b16 %v1413, %v1412
    %1446 = vmatprep.subr.bf16.mxu0 0
    %1447 = vmatpush1.bf16.msra.mxu0 %v1414
    %1448 = vmatprep.subr.bf16.mxu0 0
    %1449 = vmatpush1.bf16.msra.mxu0 %v1415
    %1450 = vmatprep.subr.bf16.mxu0 0
    %1451 = vmatpush1.bf16.msra.mxu0 %v1416
    %1452 = vmatprep.subr.bf16.mxu0 0
    %1453 = vmatpush1.bf16.msra.mxu0 %v1417
    %1454 = vmatprep.subr.bf16.mxu0 0
    %1455 = vmatpush1.bf16.msra.mxu0 %v1418
    %1456 = vmatprep.subr.bf16.mxu0 0
    %1457 = vmatpush1.bf16.msra.mxu0 %v1419
    %1458 = vmatprep.subr.bf16.mxu0 0
    %1459 = vmatpush1.bf16.msra.mxu0 %v1420
    %1460 = vmatprep.subr.bf16.mxu0 0
    %1461 = vmatpush1.bf16.msra.mxu0 %v1421
    %1462 = vmatprep.subr.bf16.mxu0 0
    %1463 = vmatpush1.bf16.msra.mxu0 %v1422
    %1464 = vmatprep.subr.bf16.mxu0 0
    %1465 = vmatpush1.bf16.msra.mxu0 %v1423
    %1466 = vmatprep.subr.bf16.mxu0 0
    %1467 = vmatpush1.bf16.msra.mxu0 %v1424
    %1468 = vmatprep.subr.bf16.mxu0 0
    %1469 = vmatpush1.bf16.msra.mxu0 %v1425
    %1470 = vmatprep.subr.bf16.mxu0 0
    %1471 = vmatpush1.bf16.msra.mxu0 %v1426
    %1472 = vmatprep.subr.bf16.mxu0 0
    %1473 = vmatpush1.bf16.msra.mxu0 %v1427
    %1474 = vmatprep.subr.bf16.mxu0 0
    %1475 = vmatpush1.bf16.msra.mxu0 %v1428
    %1476 = vmatprep.subr.bf16.mxu0 0
    %1477 = vmatpush1.bf16.msra.mxu0 %v1429
    %1478 = vmatprep.mubr.bf16.mxu0 %v1310
    %1479 = vmatmul.mubr.bf16.gmra.mrb[0].mxu0 %v1309
    %v1480 = vpop.f32.mrb[0].mxu0
    %v1481 = vadd.f32 %v1348, %v1480
    %v1482 = vpop.f32.mrb[0].mxu0
    %v1483 = vpop.f32.mrb[0].mxu0
    %v1484 = vpop.f32.mrb[0].mxu0
    %1485 = vdwg.mxu0
    %1486 = vst [vmem:[#allocation5] sm:$0x3] %v1481
    // Predicated region
    $region38: #{_lambda_.9} parent=1 // pred_check
      _
    $region39: #{_lambda_.9} parent=1 // pred_check_branch
      %1488 = sbr.rel (0) target = $region41
    $region40: #{_lambda_.9} parent=1 // pred_region
      %s1490 = ssub.s32 32, 32
      %1491 = vsyncadd [#allocation3], %s1490
      %s1493 = sshll.u32 [#allocation5], 4
      %s1494 = int_to_ptr.vmem [resolvable:$true] %s1493
      %1496 = dma.vmem_to_hbm [thread:$0]  %s1494, 32, %s8, [#allocation3]
    $region41: #{_lambda_.9} parent=1 // pred_fallthru
      _
    // Predicated region
    $region42: #{_lambda_.9} parent=1 // pred_check
      _
    $region43: #{_lambda_.9} parent=1 // pred_check_branch
      %1498 = sbr.rel (0) target = $region45
    $region44: #{_lambda_.9} parent=1 // pred_region
      %1499 = dma.done [#allocation3], 32
    $region45: #{_lambda_.9} parent=1 // pred_fallthru
      _
    %1500 = vsyncpa [#allocation3], 1
    %1501 = vsyncpa [#allocation4], 1

</llo_original>
